<compile_context>
chip_gen: v7x
topology: tpu7x:2x2x1
jax: 0.10.0
libtpu: 0.0.40
codegen_flags: <defaults>
</compile_context>

<pallas_src>
import functools

import jax
import jax.numpy as jnp
from jax import lax
from jax.experimental import pallas as pl
from jax.experimental.pallas import tpu as pltpu


# ----------------------------------------------------------------------------
# Fused kernel (one batch image per grid step)
# ----------------------------------------------------------------------------
def _bottleneck_kernel(stride, H, W, Ho, Wo, cin, planes, cout, has_shortcut,
                       *refs):
    if has_shortcut:
        (x_ref, s1_ref, b1_ref, w1_ref, b2_ref, w2_ref, b3_ref, w3_ref,
         wsc_ref, out_ref) = refs
    else:
        (x_ref, s1_ref, b1_ref, w1_ref, b2_ref, w2_ref, b3_ref, w3_ref,
         out_ref) = refs
        wsc_ref = None

    x = x_ref[0]                                            # (H, W, cin) f32
    # pre-activation: BN1 (folded running stats) + ReLU, in f32
    a = jnp.maximum(x * s1_ref[0] + b1_ref[0], 0.0)         # (H, W, cin)
    a_bf = a.astype(jnp.bfloat16)                           # single cast, reused

    # conv1: 1x1 conv == channel matmul (bf16 MXU, BN2 scale folded into w1),
    # then BN2 bias + ReLU in f32.
    o1 = jnp.dot(a_bf.reshape(H * W, cin), w1_ref[...],
                 preferred_element_type=jnp.float32)        # (H*W, planes)
    o1 = jnp.maximum(o1 + b2_ref[0], 0.0).reshape(H, W, planes)

    # zero spatial padding for the 3x3 conv, kept entirely on-chip (no HBM).
    zr = jnp.zeros((1, W, planes), jnp.float32)
    zc = jnp.zeros((H + 2, 1, planes), jnp.float32)
    p = jnp.concatenate([zr, o1, zr], axis=0)               # (H+2, W, planes)
    p = jnp.concatenate([zc, p, zc], axis=1)                # (H+2, W+2, planes)
    p = p.astype(jnp.bfloat16)                              # one cast for all taps

    # conv2: 3x3 (stride) as 9 shifted matmuls accumulated in f32.  This avoids
    # the im2col lane-dim concatenate (XLU work) and the 9x-wide VMEM
    # intermediate of the previous version.  Patches are taken only at strided
    # OUTPUT positions (no full-res conv + decimation when stride > 1).
    hi = stride * (Ho - 1) + 1
    wi = stride * (Wo - 1) + 1

    def tap(di, dj):
        if stride == 1:
            return p[di:di + Ho, dj:dj + Wo, :]
        return p[di:di + hi:stride, dj:dj + wi:stride, :]

    w2_all = w2_ref[...]                                    # (3, 3, planes, planes) bf16
    c2 = None
    for di in range(3):
        for dj in range(3):
            t = tap(di, dj).reshape(Ho * Wo, planes)
            d = jnp.dot(t, w2_all[di, dj],
                        preferred_element_type=jnp.float32)
            c2 = d if c2 is None else c2 + d                # (Ho*Wo, planes) f32
    # BN3 bias + ReLU (scale already folded into w2's output channels)
    o2 = jnp.maximum(c2 + b3_ref[0], 0.0)                   # (Ho*Wo, planes)

    # conv3: 1x1 conv == channel matmul
    o3 = jnp.dot(o2.astype(jnp.bfloat16), w3_ref[...],
                 preferred_element_type=jnp.float32)        # (Ho*Wo, cout)

    # shortcut
    if has_shortcut:
        a_s = a_bf if stride == 1 else a_bf[::stride, ::stride, :]
        sc = jnp.dot(a_s.reshape(Ho * Wo, cin), wsc_ref[...],
                     preferred_element_type=jnp.float32)
    else:
        # identity shortcut: stride == 1 and cin == cout (asserted in wrapper);
        # kept in full f32 (no bf16 round-trip).
        sc = x.reshape(H * W, cin)

    out_ref[0] = (o3 + sc).reshape(Ho, Wo, cout).astype(out_ref.dtype)


# ----------------------------------------------------------------------------
# Wrapper
# ----------------------------------------------------------------------------
def bottleneck_block_pallas(x_nchw, params, stride=1):
    eps = 1e-5
    x = jnp.transpose(x_nchw, (0, 2, 3, 1)).astype(jnp.float32)   # NHWC
    N, H, W, cin = x.shape
    planes = params["w1"].shape[0]
    cout = 4 * planes
    has_shortcut = "wsc" in params
    if not has_shortcut:
        assert stride == 1 and cin == cout, (
            "identity shortcut requires stride==1 and in_planes == 4*planes")
    Ho = (H - 1) // stride + 1
    Wo = (W - 1) // stride + 1

    def fold_bn(bn):
        gamma, beta, mean, var = bn
        scale = gamma / jnp.sqrt(var + eps)
        bias = beta - mean * scale
        return scale.astype(jnp.float32), bias.astype(jnp.float32)

    s1, b1 = fold_bn(params["bn1"])
    s2, b2 = fold_bn(params["bn2"])
    s3, b3 = fold_bn(params["bn3"])

    # PyTorch OIHW -> matmul-friendly layouts; fold the BN scale that follows
    # each conv into that conv's output channels; cast MXU operands to bf16.
    w1 = (jnp.transpose(params["w1"][:, :, 0, 0]) * s2[None, :]
          ).astype(jnp.bfloat16)                                  # (cin, planes)
    w2 = jnp.transpose(params["w2"], (2, 3, 1, 0))                # (3,3,in,out) HWIO
    w2 = (w2 * s3[None, None, None, :]).astype(jnp.bfloat16)      # (3,3,planes,planes)
    w3 = jnp.transpose(params["w3"][:, :, 0, 0]).astype(jnp.bfloat16)  # (planes, cout)

    s1 = s1.reshape(1, cin)
    b1 = b1.reshape(1, cin)
    b2 = b2.reshape(1, planes)
    b3 = b3.reshape(1, planes)

    inputs = [x, s1, b1, w1, b2, w2, b3, w3]
    in_specs = [
        pl.BlockSpec((1, H, W, cin), lambda n: (n, 0, 0, 0)),
        pl.BlockSpec((1, cin), lambda n: (0, 0)),
        pl.BlockSpec((1, cin), lambda n: (0, 0)),
        pl.BlockSpec((cin, planes), lambda n: (0, 0)),
        pl.BlockSpec((1, planes), lambda n: (0, 0)),
        pl.BlockSpec((3, 3, planes, planes), lambda n: (0, 0, 0, 0)),
        pl.BlockSpec((1, planes), lambda n: (0, 0)),
        pl.BlockSpec((planes, cout), lambda n: (0, 0)),
    ]
    if has_shortcut:
        wsc = jnp.transpose(params["wsc"][:, :, 0, 0]).astype(jnp.bfloat16)  # (cin, cout)
        inputs.append(wsc)
        in_specs.append(pl.BlockSpec((cin, cout), lambda n: (0, 0)))

    kernel = functools.partial(_bottleneck_kernel, stride, H, W, Ho, Wo,
                               cin, planes, cout, has_shortcut)

    out_nhwc = pl.pallas_call(
        kernel,
        out_shape=jax.ShapeDtypeStruct((N, Ho, Wo, cout), jnp.float32),
        grid_spec=pltpu.PrefetchScalarGridSpec(
            num_scalar_prefetch=0, grid=(N,),
            in_specs=in_specs,
            out_specs=pl.BlockSpec((1, Ho, Wo, cout), lambda n: (n, 0, 0, 0))),
        compiler_params=pltpu.CompilerParams(
            dimension_semantics=("parallel",)),
    )(*inputs)

    return jnp.transpose(out_nhwc, (0, 3, 1, 2))   # back to NCHW


# ----------------------------------------------------------------------------
# Pure-JAX reference (XLA convs, f32 HIGHEST) for verification
# ----------------------------------------------------------------------------
def bottleneck_block_reference(x_nchw, params, stride=1):
    eps = 1e-5
    x = jnp.transpose(x_nchw, (0, 2, 3, 1)).astype(jnp.float32)

    def bn(t, p):
        gamma, beta, mean, var = p
        return (t - mean) * (gamma / jnp.sqrt(var + eps)) + beta

    def conv(t, w_oihw, s, pad):
        w = jnp.transpose(w_oihw, (2, 3, 1, 0)).astype(jnp.float32)  # HWIO
        return lax.conv_general_dilated(
            t, w, (s, s), pad,
            dimension_numbers=("NHWC", "HWIO", "NHWC"),
            precision=lax.Precision.HIGHEST)

    a = jax.nn.relu(bn(x, params["bn1"]))
    sc = conv(a, params["wsc"], stride, "VALID") if "wsc" in params else x
    o = conv(a, params["w1"], 1, "VALID")
    o = conv(jax.nn.relu(bn(o, params["bn2"])), params["w2"], stride,
             ((1, 1), (1, 1)))
    o = conv(jax.nn.relu(bn(o, params["bn3"])), params["w3"], 1, "VALID")
    return jnp.transpose(o + sc, (0, 3, 1, 2))


# ----------------------------------------------------------------------------
# Main
# ----------------------------------------------------------------------------
def _bn_params(k, c):
    k1, k2, k3, k4 = jax.random.split(k, 4)
    gamma = 1.0 + 0.1 * jax.random.normal(k1, (c,), jnp.float32)
    beta = 0.1 * jax.random.normal(k2, (c,), jnp.float32)
    mean = 0.1 * jax.random.normal(k3, (c,), jnp.float32)
    var = jax.random.uniform(k4, (c,), jnp.float32, 0.5, 1.5)
    return (gamma, beta, mean, var)


def _run_case(key, N, in_planes, planes, H, W, stride):
    cout = 4 * planes
    ks = jax.random.split(key, 8)
    params = {
        "bn1": _bn_params(ks[0], in_planes),
        "w1": 0.2 * jax.random.normal(ks[1], (planes, in_planes, 1, 1), jnp.float32),
        "bn2": _bn_params(ks[2], planes),
        "w2": 0.2 * jax.random.normal(ks[3], (planes, planes, 3, 3), jnp.float32),
        "bn3": _bn_params(ks[4], planes),
        "w3": 0.2 * jax.random.normal(ks[5], (cout, planes, 1, 1), jnp.float32),
    }
    if stride != 1 or in_planes != cout:
        params["wsc"] = 0.2 * jax.random.normal(
            ks[6], (cout, in_planes, 1, 1), jnp.float32)

    x = jax.random.normal(ks[7], (N, in_planes, H, W), jnp.float32)

    out = jax.block_until_ready(bottleneck_block_pallas(x, params, stride))
    ref = bottleneck_block_reference(x, params, stride)

    Ho = (H - 1) // stride + 1
    Wo = (W - 1) // stride + 1
    assert out.shape == ref.shape == (N, cout, Ho, Wo), out.shape
    return float(jnp.max(jnp.abs(out - ref)))


if __name__ == "__main__":
    key = jax.random.PRNGKey(0)
    k_a, k_b = jax.random.split(key, 2)

    # Tolerance is sized for bf16 MXU operands (f32 accumulation) vs an f32
    # HIGHEST-precision reference; real layout/semantics bugs give O(0.3+) errors.
    TOL = 8e-2

    # case A: projection shortcut (in_planes != 4*planes), stride 1
    err_a = _run_case(k_a, N=2, in_planes=8, planes=4, H=16, W=16, stride=1)
    if err_a > TOL:
        raise AssertionError(f"case A mismatch vs reference: max abs err {err_a}")

    # case B: identity shortcut (in_planes == 4*planes), stride 1
    err_b = _run_case(k_b, N=2, in_planes=16, planes=4, H=16, W=16, stride=1)
    if err_b > TOL:
        raise AssertionError(f"case B mismatch vs reference: max abs err {err_b}")

    print("KERNEL_OK")
</pallas_src>

<mosaic_0001>
module attributes {stable_mosaic.version = 11 : i64} {
  func.func @_bottleneck_kernel(%arg0: i32, %arg1: memref<1x16x16x8xf32, #tpu.memory_space<vmem>>, %arg2: memref<1x8xf32, #tpu.memory_space<vmem>>, %arg3: memref<1x8xf32, #tpu.memory_space<vmem>>, %arg4: memref<8x4xbf16, #tpu.memory_space<vmem>>, %arg5: memref<1x4xf32, #tpu.memory_space<vmem>>, %arg6: memref<3x3x4x4xbf16, #tpu.memory_space<vmem>>, %arg7: memref<1x4xf32, #tpu.memory_space<vmem>>, %arg8: memref<4x16xbf16, #tpu.memory_space<vmem>>, %arg9: memref<8x16xbf16, #tpu.memory_space<vmem>>, %arg10: memref<1x16x16x16xf32, #tpu.memory_space<vmem>>) attributes {dimension_semantics = [#tpu.dimension_semantics<parallel>], iteration_bounds = array<i64: 2>, scalar_prefetch = 0 : i64, scratch_operands = 0 : i64, tpu.core_type = #tpu.core_type<tc>, window_params = [{transform_indices = @transform_0, window_bounds = array<i64: 1, 16, 16, 8>}, {pipeline_mode = #tpu.pipeline_mode<synchronous>, transform_indices = @transform_1, window_bounds = array<i64: 1, 8>}, {pipeline_mode = #tpu.pipeline_mode<synchronous>, transform_indices = @transform_2, window_bounds = array<i64: 1, 8>}, {pipeline_mode = #tpu.pipeline_mode<synchronous>, transform_indices = @transform_3, window_bounds = array<i64: 8, 4>}, {pipeline_mode = #tpu.pipeline_mode<synchronous>, transform_indices = @transform_4, window_bounds = array<i64: 1, 4>}, {pipeline_mode = #tpu.pipeline_mode<synchronous>, transform_indices = @transform_5, window_bounds = array<i64: 3, 3, 4, 4>}, {pipeline_mode = #tpu.pipeline_mode<synchronous>, transform_indices = @transform_6, window_bounds = array<i64: 1, 4>}, {pipeline_mode = #tpu.pipeline_mode<synchronous>, transform_indices = @transform_7, window_bounds = array<i64: 4, 16>}, {pipeline_mode = #tpu.pipeline_mode<synchronous>, transform_indices = @transform_8, window_bounds = array<i64: 8, 16>}, {transform_indices = @transform_9, window_bounds = array<i64: 1, 16, 16, 16>}]} {
    %c0 = arith.constant 0 : index
    %c0_0 = arith.constant 0 : index
    %c0_1 = arith.constant 0 : index
    %c0_2 = arith.constant 0 : index
    %0 = vector.load %arg1[%c0, %c0_0, %c0_1, %c0_2] : memref<1x16x16x8xf32, #tpu.memory_space<vmem>>, vector<1x16x16x8xf32>
    %1 = vector.shape_cast %0 : vector<1x16x16x8xf32> to vector<16x16x8xf32>
    %c0_3 = arith.constant 0 : index
    %c0_4 = arith.constant 0 : index
    %2 = vector.load %arg2[%c0_3, %c0_4] : memref<1x8xf32, #tpu.memory_space<vmem>>, vector<1x8xf32>
    %3 = vector.shape_cast %2 : vector<1x8xf32> to vector<8xf32>
    %4 = vector.shape_cast %3 : vector<8xf32> to vector<1x1x8xf32>
    %5 = vector.broadcast %4 : vector<1x1x8xf32> to vector<16x16x8xf32>
    %6 = arith.mulf %1, %5 : vector<16x16x8xf32>
    %c0_5 = arith.constant 0 : index
    %c0_6 = arith.constant 0 : index
    %7 = vector.load %arg3[%c0_5, %c0_6] : memref<1x8xf32, #tpu.memory_space<vmem>>, vector<1x8xf32>
    %8 = vector.shape_cast %7 : vector<1x8xf32> to vector<8xf32>
    %9 = vector.shape_cast %8 : vector<8xf32> to vector<1x1x8xf32>
    %10 = vector.broadcast %9 : vector<1x1x8xf32> to vector<16x16x8xf32>
    %11 = arith.addf %6, %10 : vector<16x16x8xf32>
    %cst = arith.constant 0.000000e+00 : f32
    %12 = vector.broadcast %cst : f32 to vector<16x16x8xf32>
    %13 = arith.maximumf %11, %12 : vector<16x16x8xf32>
    %14 = arith.truncf %13 : vector<16x16x8xf32> to vector<16x16x8xbf16>
    %15 = vector.shape_cast %14 : vector<16x16x8xbf16> to vector<256x8xbf16>
    %c0_7 = arith.constant 0 : index
    %c0_8 = arith.constant 0 : index
    %16 = vector.load %arg4[%c0_7, %c0_8] : memref<8x4xbf16, #tpu.memory_space<vmem>>, vector<8x4xbf16>
    %cst_9 = arith.constant dense<0.000000e+00> : vector<256x4xf32>
    %17 = tpu.matmul %15, %16, %cst_9 {dimension_numbers = #tpu.dot_dimension_numbers<[1], [0], [0], [1], [0, 0, 1, 1], [], []>} : vector<256x8xbf16>, vector<8x4xbf16>, vector<256x4xf32> -> vector<256x4xf32>
    %c0_10 = arith.constant 0 : index
    %c0_11 = arith.constant 0 : index
    %18 = vector.load %arg5[%c0_10, %c0_11] : memref<1x4xf32, #tpu.memory_space<vmem>>, vector<1x4xf32>
    %19 = vector.shape_cast %18 : vector<1x4xf32> to vector<4xf32>
    %20 = vector.shape_cast %19 : vector<4xf32> to vector<1x4xf32>
    %21 = vector.broadcast %20 : vector<1x4xf32> to vector<256x4xf32>
    %22 = arith.addf %17, %21 : vector<256x4xf32>
    %cst_12 = arith.constant 0.000000e+00 : f32
    %23 = vector.broadcast %cst_12 : f32 to vector<256x4xf32>
    %24 = arith.maximumf %22, %23 : vector<256x4xf32>
    %25 = vector.shape_cast %24 : vector<256x4xf32> to vector<16x16x4xf32>
    %cst_13 = arith.constant 0.000000e+00 : f32
    %26 = vector.broadcast %cst_13 : f32 to vector<1x16x4xf32>
    %cst_14 = arith.constant 0.000000e+00 : f32
    %27 = vector.broadcast %cst_14 : f32 to vector<18x1x4xf32>
    %28 = tpu.concatenate %26, %25, %26 in 0 : vector<1x16x4xf32>, vector<16x16x4xf32>, vector<1x16x4xf32> -> vector<18x16x4xf32>
    %29 = tpu.concatenate %27, %28, %27 in 1 : vector<18x1x4xf32>, vector<18x16x4xf32>, vector<18x1x4xf32> -> vector<18x18x4xf32>
    %30 = arith.truncf %29 : vector<18x18x4xf32> to vector<18x18x4xbf16>
    %c0_15 = arith.constant 0 : index
    %c0_16 = arith.constant 0 : index
    %c0_17 = arith.constant 0 : index
    %c0_18 = arith.constant 0 : index
    %31 = vector.load %arg6[%c0_15, %c0_16, %c0_17, %c0_18] : memref<3x3x4x4xbf16, #tpu.memory_space<vmem>>, vector<3x3x4x4xbf16>
    %32 = vector.extract_strided_slice %30 {offsets = [0, 0, 0], sizes = [16, 16, 4], strides = [1, 1, 1]} : vector<18x18x4xbf16> to vector<16x16x4xbf16>
    %33 = vector.shape_cast %32 : vector<16x16x4xbf16> to vector<256x4xbf16>
    %34 = vector.extract_strided_slice %31 {offsets = [0, 0, 0, 0], sizes = [1, 1, 4, 4], strides = [1, 1, 1, 1]} : vector<3x3x4x4xbf16> to vector<1x1x4x4xbf16>
    %35 = vector.shape_cast %34 : vector<1x1x4x4xbf16> to vector<4x4xbf16>
    %cst_19 = arith.constant dense<0.000000e+00> : vector<256x4xf32>
    %36 = tpu.matmul %33, %35, %cst_19 {dimension_numbers = #tpu.dot_dimension_numbers<[1], [0], [0], [1], [0, 0, 1, 1], [], []>} : vector<256x4xbf16>, vector<4x4xbf16>, vector<256x4xf32> -> vector<256x4xf32>
    %37 = vector.extract_strided_slice %30 {offsets = [0, 1, 0], sizes = [16, 16, 4], strides = [1, 1, 1]} : vector<18x18x4xbf16> to vector<16x16x4xbf16>
    %38 = vector.shape_cast %37 : vector<16x16x4xbf16> to vector<256x4xbf16>
    %39 = vector.extract_strided_slice %31 {offsets = [0, 1, 0, 0], sizes = [1, 1, 4, 4], strides = [1, 1, 1, 1]} : vector<3x3x4x4xbf16> to vector<1x1x4x4xbf16>
    %40 = vector.shape_cast %39 : vector<1x1x4x4xbf16> to vector<4x4xbf16>
    %cst_20 = arith.constant dense<0.000000e+00> : vector<256x4xf32>
    %41 = tpu.matmul %38, %40, %cst_20 {dimension_numbers = #tpu.dot_dimension_numbers<[1], [0], [0], [1], [0, 0, 1, 1], [], []>} : vector<256x4xbf16>, vector<4x4xbf16>, vector<256x4xf32> -> vector<256x4xf32>
    %42 = arith.addf %36, %41 : vector<256x4xf32>
    %43 = vector.extract_strided_slice %30 {offsets = [0, 2, 0], sizes = [16, 16, 4], strides = [1, 1, 1]} : vector<18x18x4xbf16> to vector<16x16x4xbf16>
    %44 = vector.shape_cast %43 : vector<16x16x4xbf16> to vector<256x4xbf16>
    %45 = vector.extract_strided_slice %31 {offsets = [0, 2, 0, 0], sizes = [1, 1, 4, 4], strides = [1, 1, 1, 1]} : vector<3x3x4x4xbf16> to vector<1x1x4x4xbf16>
    %46 = vector.shape_cast %45 : vector<1x1x4x4xbf16> to vector<4x4xbf16>
    %cst_21 = arith.constant dense<0.000000e+00> : vector<256x4xf32>
    %47 = tpu.matmul %44, %46, %cst_21 {dimension_numbers = #tpu.dot_dimension_numbers<[1], [0], [0], [1], [0, 0, 1, 1], [], []>} : vector<256x4xbf16>, vector<4x4xbf16>, vector<256x4xf32> -> vector<256x4xf32>
    %48 = arith.addf %42, %47 : vector<256x4xf32>
    %49 = vector.extract_strided_slice %30 {offsets = [1, 0, 0], sizes = [16, 16, 4], strides = [1, 1, 1]} : vector<18x18x4xbf16> to vector<16x16x4xbf16>
    %50 = vector.shape_cast %49 : vector<16x16x4xbf16> to vector<256x4xbf16>
    %51 = vector.extract_strided_slice %31 {offsets = [1, 0, 0, 0], sizes = [1, 1, 4, 4], strides = [1, 1, 1, 1]} : vector<3x3x4x4xbf16> to vector<1x1x4x4xbf16>
    %52 = vector.shape_cast %51 : vector<1x1x4x4xbf16> to vector<4x4xbf16>
    %cst_22 = arith.constant dense<0.000000e+00> : vector<256x4xf32>
    %53 = tpu.matmul %50, %52, %cst_22 {dimension_numbers = #tpu.dot_dimension_numbers<[1], [0], [0], [1], [0, 0, 1, 1], [], []>} : vector<256x4xbf16>, vector<4x4xbf16>, vector<256x4xf32> -> vector<256x4xf32>
    %54 = arith.addf %48, %53 : vector<256x4xf32>
    %55 = vector.extract_strided_slice %30 {offsets = [1, 1, 0], sizes = [16, 16, 4], strides = [1, 1, 1]} : vector<18x18x4xbf16> to vector<16x16x4xbf16>
    %56 = vector.shape_cast %55 : vector<16x16x4xbf16> to vector<256x4xbf16>
    %57 = vector.extract_strided_slice %31 {offsets = [1, 1, 0, 0], sizes = [1, 1, 4, 4], strides = [1, 1, 1, 1]} : vector<3x3x4x4xbf16> to vector<1x1x4x4xbf16>
    %58 = vector.shape_cast %57 : vector<1x1x4x4xbf16> to vector<4x4xbf16>
    %cst_23 = arith.constant dense<0.000000e+00> : vector<256x4xf32>
    %59 = tpu.matmul %56, %58, %cst_23 {dimension_numbers = #tpu.dot_dimension_numbers<[1], [0], [0], [1], [0, 0, 1, 1], [], []>} : vector<256x4xbf16>, vector<4x4xbf16>, vector<256x4xf32> -> vector<256x4xf32>
    %60 = arith.addf %54, %59 : vector<256x4xf32>
    %61 = vector.extract_strided_slice %30 {offsets = [1, 2, 0], sizes = [16, 16, 4], strides = [1, 1, 1]} : vector<18x18x4xbf16> to vector<16x16x4xbf16>
    %62 = vector.shape_cast %61 : vector<16x16x4xbf16> to vector<256x4xbf16>
    %63 = vector.extract_strided_slice %31 {offsets = [1, 2, 0, 0], sizes = [1, 1, 4, 4], strides = [1, 1, 1, 1]} : vector<3x3x4x4xbf16> to vector<1x1x4x4xbf16>
    %64 = vector.shape_cast %63 : vector<1x1x4x4xbf16> to vector<4x4xbf16>
    %cst_24 = arith.constant dense<0.000000e+00> : vector<256x4xf32>
    %65 = tpu.matmul %62, %64, %cst_24 {dimension_numbers = #tpu.dot_dimension_numbers<[1], [0], [0], [1], [0, 0, 1, 1], [], []>} : vector<256x4xbf16>, vector<4x4xbf16>, vector<256x4xf32> -> vector<256x4xf32>
    %66 = arith.addf %60, %65 : vector<256x4xf32>
    %67 = vector.extract_strided_slice %30 {offsets = [2, 0, 0], sizes = [16, 16, 4], strides = [1, 1, 1]} : vector<18x18x4xbf16> to vector<16x16x4xbf16>
    %68 = vector.shape_cast %67 : vector<16x16x4xbf16> to vector<256x4xbf16>
    %69 = vector.extract_strided_slice %31 {offsets = [2, 0, 0, 0], sizes = [1, 1, 4, 4], strides = [1, 1, 1, 1]} : vector<3x3x4x4xbf16> to vector<1x1x4x4xbf16>
    %70 = vector.shape_cast %69 : vector<1x1x4x4xbf16> to vector<4x4xbf16>
    %cst_25 = arith.constant dense<0.000000e+00> : vector<256x4xf32>
    %71 = tpu.matmul %68, %70, %cst_25 {dimension_numbers = #tpu.dot_dimension_numbers<[1], [0], [0], [1], [0, 0, 1, 1], [], []>} : vector<256x4xbf16>, vector<4x4xbf16>, vector<256x4xf32> -> vector<256x4xf32>
    %72 = arith.addf %66, %71 : vector<256x4xf32>
    %73 = vector.extract_strided_slice %30 {offsets = [2, 1, 0], sizes = [16, 16, 4], strides = [1, 1, 1]} : vector<18x18x4xbf16> to vector<16x16x4xbf16>
    %74 = vector.shape_cast %73 : vector<16x16x4xbf16> to vector<256x4xbf16>
    %75 = vector.extract_strided_slice %31 {offsets = [2, 1, 0, 0], sizes = [1, 1, 4, 4], strides = [1, 1, 1, 1]} : vector<3x3x4x4xbf16> to vector<1x1x4x4xbf16>
    %76 = vector.shape_cast %75 : vector<1x1x4x4xbf16> to vector<4x4xbf16>
    %cst_26 = arith.constant dense<0.000000e+00> : vector<256x4xf32>
    %77 = tpu.matmul %74, %76, %cst_26 {dimension_numbers = #tpu.dot_dimension_numbers<[1], [0], [0], [1], [0, 0, 1, 1], [], []>} : vector<256x4xbf16>, vector<4x4xbf16>, vector<256x4xf32> -> vector<256x4xf32>
    %78 = arith.addf %72, %77 : vector<256x4xf32>
    %79 = vector.extract_strided_slice %30 {offsets = [2, 2, 0], sizes = [16, 16, 4], strides = [1, 1, 1]} : vector<18x18x4xbf16> to vector<16x16x4xbf16>
    %80 = vector.shape_cast %79 : vector<16x16x4xbf16> to vector<256x4xbf16>
    %81 = vector.extract_strided_slice %31 {offsets = [2, 2, 0, 0], sizes = [1, 1, 4, 4], strides = [1, 1, 1, 1]} : vector<3x3x4x4xbf16> to vector<1x1x4x4xbf16>
    %82 = vector.shape_cast %81 : vector<1x1x4x4xbf16> to vector<4x4xbf16>
    %cst_27 = arith.constant dense<0.000000e+00> : vector<256x4xf32>
    %83 = tpu.matmul %80, %82, %cst_27 {dimension_numbers = #tpu.dot_dimension_numbers<[1], [0], [0], [1], [0, 0, 1, 1], [], []>} : vector<256x4xbf16>, vector<4x4xbf16>, vector<256x4xf32> -> vector<256x4xf32>
    %84 = arith.addf %78, %83 : vector<256x4xf32>
    %c0_28 = arith.constant 0 : index
    %c0_29 = arith.constant 0 : index
    %85 = vector.load %arg7[%c0_28, %c0_29] : memref<1x4xf32, #tpu.memory_space<vmem>>, vector<1x4xf32>
    %86 = vector.shape_cast %85 : vector<1x4xf32> to vector<4xf32>
    %87 = vector.shape_cast %86 : vector<4xf32> to vector<1x4xf32>
    %88 = vector.broadcast %87 : vector<1x4xf32> to vector<256x4xf32>
    %89 = arith.addf %84, %88 : vector<256x4xf32>
    %cst_30 = arith.constant 0.000000e+00 : f32
    %90 = vector.broadcast %cst_30 : f32 to vector<256x4xf32>
    %91 = arith.maximumf %89, %90 : vector<256x4xf32>
    %92 = arith.truncf %91 : vector<256x4xf32> to vector<256x4xbf16>
    %c0_31 = arith.constant 0 : index
    %c0_32 = arith.constant 0 : index
    %93 = vector.load %arg8[%c0_31, %c0_32] : memref<4x16xbf16, #tpu.memory_space<vmem>>, vector<4x16xbf16>
    %cst_33 = arith.constant dense<0.000000e+00> : vector<256x16xf32>
    %94 = tpu.matmul %92, %93, %cst_33 {dimension_numbers = #tpu.dot_dimension_numbers<[1], [0], [0], [1], [0, 0, 1, 1], [], []>} : vector<256x4xbf16>, vector<4x16xbf16>, vector<256x16xf32> -> vector<256x16xf32>
    %95 = vector.shape_cast %14 : vector<16x16x8xbf16> to vector<256x8xbf16>
    %c0_34 = arith.constant 0 : index
    %c0_35 = arith.constant 0 : index
    %96 = vector.load %arg9[%c0_34, %c0_35] : memref<8x16xbf16, #tpu.memory_space<vmem>>, vector<8x16xbf16>
    %cst_36 = arith.constant dense<0.000000e+00> : vector<256x16xf32>
    %97 = tpu.matmul %95, %96, %cst_36 {dimension_numbers = #tpu.dot_dimension_numbers<[1], [0], [0], [1], [0, 0, 1, 1], [], []>} : vector<256x8xbf16>, vector<8x16xbf16>, vector<256x16xf32> -> vector<256x16xf32>
    %98 = arith.addf %94, %97 : vector<256x16xf32>
    %99 = vector.shape_cast %98 : vector<256x16xf32> to vector<16x16x16xf32>
    %c0_37 = arith.constant 0 : index
    %c0_38 = arith.constant 0 : index
    %c0_39 = arith.constant 0 : index
    %c0_40 = arith.constant 0 : index
    %100 = vector.load %arg10[%c0_37, %c0_38, %c0_39, %c0_40] : memref<1x16x16x16xf32, #tpu.memory_space<vmem>>, vector<1x16x16x16xf32>
    %101 = vector.shape_cast %100 : vector<1x16x16x16xf32> to vector<16x16x16xf32>
    %102 = vector.shape_cast %99 : vector<16x16x16xf32> to vector<1x16x16x16xf32>
    tpu.vector_store %arg10[%c0_37, %c0_38, %c0_39, %c0_40], %102 {strides = array<i32>} : memref<1x16x16x16xf32, #tpu.memory_space<vmem>>, vector<1x16x16x16xf32>,
    return
  }
  func.func @transform_0(%arg0: i32) -> (i32, i32, i32, i32) {
    %c0_i32 = arith.constant 0 : i32
    %c0_i32_0 = arith.constant 0 : i32
    %c0_i32_1 = arith.constant 0 : i32
    %c0_i32_2 = arith.constant 0 : i32
    return %arg0, %c0_i32, %c0_i32_0, %c0_i32_1 : i32, i32, i32, i32
  }
  func.func @transform_1(%arg0: i32) -> (i32, i32) {
    %c0_i32 = arith.constant 0 : i32
    %c0_i32_0 = arith.constant 0 : i32
    %c0_i32_1 = arith.constant 0 : i32
    return %c0_i32, %c0_i32_0 : i32, i32
  }
  func.func @transform_2(%arg0: i32) -> (i32, i32) {
    %c0_i32 = arith.constant 0 : i32
    %c0_i32_0 = arith.constant 0 : i32
    %c0_i32_1 = arith.constant 0 : i32
    return %c0_i32, %c0_i32_0 : i32, i32
  }
  func.func @transform_3(%arg0: i32) -> (i32, i32) {
    %c0_i32 = arith.constant 0 : i32
    %c0_i32_0 = arith.constant 0 : i32
    %c0_i32_1 = arith.constant 0 : i32
    return %c0_i32, %c0_i32_0 : i32, i32
  }
  func.func @transform_4(%arg0: i32) -> (i32, i32) {
    %c0_i32 = arith.constant 0 : i32
    %c0_i32_0 = arith.constant 0 : i32
    %c0_i32_1 = arith.constant 0 : i32
    return %c0_i32, %c0_i32_0 : i32, i32
  }
  func.func @transform_5(%arg0: i32) -> (i32, i32, i32, i32) {
    %c0_i32 = arith.constant 0 : i32
    %c0_i32_0 = arith.constant 0 : i32
    %c0_i32_1 = arith.constant 0 : i32
    %c0_i32_2 = arith.constant 0 : i32
    %c0_i32_3 = arith.constant 0 : i32
    return %c0_i32, %c0_i32_0, %c0_i32_1, %c0_i32_2 : i32, i32, i32, i32
  }
  func.func @transform_6(%arg0: i32) -> (i32, i32) {
    %c0_i32 = arith.constant 0 : i32
    %c0_i32_0 = arith.constant 0 : i32
    %c0_i32_1 = arith.constant 0 : i32
    return %c0_i32, %c0_i32_0 : i32, i32
  }
  func.func @transform_7(%arg0: i32) -> (i32, i32) {
    %c0_i32 = arith.constant 0 : i32
    %c0_i32_0 = arith.constant 0 : i32
    %c0_i32_1 = arith.constant 0 : i32
    return %c0_i32, %c0_i32_0 : i32, i32
  }
  func.func @transform_8(%arg0: i32) -> (i32, i32) {
    %c0_i32 = arith.constant 0 : i32
    %c0_i32_0 = arith.constant 0 : i32
    %c0_i32_1 = arith.constant 0 : i32
    return %c0_i32, %c0_i32_0 : i32, i32
  }
  func.func @transform_9(%arg0: i32) -> (i32, i32, i32, i32) {
    %c0_i32 = arith.constant 0 : i32
    %c0_i32_0 = arith.constant 0 : i32
    %c0_i32_1 = arith.constant 0 : i32
    %c0_i32_2 = arith.constant 0 : i32
    return %arg0, %c0_i32, %c0_i32_0, %c0_i32_1 : i32, i32, i32, i32
  }
}

</mosaic_0001>

<llo_original>
// kernel: tpu_custom_call.1
$region0: #{tpu_custom_call.1}
  #allocation0 [shape = 'u32[]', space=smem, size = 0x4, offset = 0x4, fixed_abs, tag = 'smem constant byte address 0x4 - core index']
  #allocation1 [shape = 'u32[144,128]{1,0:T(1,128)}', space=vmem, size = 0x12000, scoped, tag = 'internal scratch']
  %s0 = inlined_call_operand.vmem [shape: f32[2,16,16,8], index: 0, kind: input, shape index: {}]
  %s1 = inlined_call_operand.vmem [shape: f32[1,8], index: 1, kind: input, shape index: {}]
  %s2 = inlined_call_operand.vmem [shape: f32[1,8], index: 2, kind: input, shape index: {}]
  %s3 = inlined_call_operand.vmem [shape: bf16[8,4], index: 3, kind: input, shape index: {}]
  %s4 = inlined_call_operand.vmem [shape: f32[1,4], index: 4, kind: input, shape index: {}]
  %s5 = inlined_call_operand.vmem [shape: bf16[3,3,4,4], index: 5, kind: input, shape index: {}]
  %s6 = inlined_call_operand.vmem [shape: f32[1,4], index: 6, kind: input, shape index: {}]
  %s7 = inlined_call_operand.vmem [shape: bf16[4,16], index: 7, kind: input, shape index: {}]
  %s8 = inlined_call_operand.vmem [shape: bf16[8,16], index: 8, kind: input, shape index: {}]
  %s9 = inlined_call_operand.hbm [shape: f32[2,16,16,16], index: 9, kind: output, shape index: {}]
  %s10 = sld [smem:[#allocation0]]
  $region69: #{tpu_custom_call.1} parent=0
    _
  %s12 = ssub.s32 1, %s10
  %s13 = scalar_select 0, %s12, %s10
  $region1: #{tpu_custom_call.1} parent=0
    #allocation2 [shape = 'u8[262144]{0}', space=vmem, size = 0x40000, scoped, tag = 'output window, operand 0']
    #allocation3 [shape = 's32[2]{0}', space=sflag, size = 0x8, scoped, tag = 'scoped memory for tpu_custom_call.1']
    %14 = vsyncpa [#allocation3], 0
    %s15 = scalar_lea.sflag [#allocation3], 1
    %16 = vsyncpa %s15, 0
    loop: start=0, step=1, limit=4
    $region2: #{tpu_custom_call.1} parent=1 // loop_pre_header
      _
    $region3: #{tpu_custom_call.1} parent=1 // loop_header
      %s18 = sphi 0, %s22
      %p19 = scmp.ge.s32.totalorder %s18, 4
      %s28 = sphi 0, %s30
      %s31 = sphi 0, %s28
      %s32 = sphi 0, %s31
      %s48 = sphi 0, %s32
      %s52 = sphi 0, %s52
      %s54 = sphi 0, %s52
      %s55 = sphi 0, %s54
      %s69 = sphi 0, %s55
      %s73 = sphi 0, %s73
      %s75 = sphi 0, %s73
      %s76 = sphi 0, %s75
      %s90 = sphi 0, %s76
      %s94 = sphi 0, %s94
      %s96 = sphi 0, %s94
      %s97 = sphi 0, %s96
      %s111 = sphi 0, %s97
      %s115 = sphi 0, %s115
      %s117 = sphi 0, %s115
      %s118 = sphi 0, %s117
      %s132 = sphi 0, %s118
      %s136 = sphi 0, %s136
      %s138 = sphi 0, %s136
      %s139 = sphi 0, %s138
      %s153 = sphi 0, %s139
      %s157 = sphi 0, %s157
      %s159 = sphi 0, %s157
      %s160 = sphi 0, %s159
      %s174 = sphi 0, %s160
      %s178 = sphi 0, %s178
      %s180 = sphi 0, %s178
      %s181 = sphi 0, %s180
      %s195 = sphi 0, %s181
      %s199 = sphi 0, %s199
      %s201 = sphi 0, %s199
      %s202 = sphi 0, %s201
      %s216 = sphi 0, %s202
      %s222 = sphi 0, %s224
      %s225 = sphi 0, %s222
      %s226 = sphi 0, %s225
      %s242 = sphi 0, %s226
    $region4: #{tpu_custom_call.1} parent=1 // loop_header_branch
      %21 = sbr.rel (%p19) target = $region8
    $region5: #{tpu_custom_call.1} parent=1 // loop_body
      %s23 = ssub.s32 %s18, 1
      %s24 = ssub.s32 %s18, 2
      %s25 = sadd.s32 %s18, 1
      %s26 = ssub.s32 %s18, %s25
      %p27 = scmp.eq.s32.totalorder %s26, 0
      %s29 = sadd.s32 %s28, 1
      %s30 = scalar_select %p27, %s28, %s29
      %p33 = pneg %p27
      %p34 = scmp.eq.s32.totalorder %s18, 1
      %p35 = por %p33, %p34
      %p36 = scmp.ne.s32.totalorder %s28, %s31
      %p37 = scmp.eq.s32.totalorder %s18, 0
      %p38 = por %p36, %p37
      %p39 = scmp.ne.s32.totalorder %s28, %s31
      %p40 = scmp.eq.s32.totalorder %s23, 1
      %p41 = por %p39, %p40
      %p42 = scmp.ne.s32.totalorder %s31, %s32
      %p43 = scmp.eq.s32.totalorder %s23, 0
      %p44 = por %p42, %p43
      %p45 = scmp.ne.s32.totalorder %s31, %s32
      %p46 = scmp.eq.s32.totalorder %s24, 1
      %p47 = por %p45, %p46
      %p49 = scmp.ne.s32.totalorder %s32, %s48
      %p50 = scmp.eq.s32.totalorder %s24, 0
      %p51 = por %p49, %p50
      %s53 = sadd.s32 %s52, 1
      %p56 = scmp.eq.s32.totalorder %s18, 1
      %p57 = scmp.ne.s32.totalorder %s52, %s54
      %p58 = scmp.eq.s32.totalorder %s18, 0
      %p59 = por %p57, %p58
      %p60 = scmp.ne.s32.totalorder %s52, %s54
      %p61 = scmp.eq.s32.totalorder %s23, 1
      %p62 = por %p60, %p61
      %p63 = scmp.ne.s32.totalorder %s54, %s55
      %p64 = scmp.eq.s32.totalorder %s23, 0
      %p65 = por %p63, %p64
      %p66 = scmp.ne.s32.totalorder %s54, %s55
      %p67 = scmp.eq.s32.totalorder %s24, 1
      %p68 = por %p66, %p67
      %p70 = scmp.ne.s32.totalorder %s55, %s69
      %p71 = scmp.eq.s32.totalorder %s24, 0
      %p72 = por %p70, %p71
      %s74 = sadd.s32 %s73, 1
      %p77 = scmp.eq.s32.totalorder %s18, 1
      %p78 = scmp.ne.s32.totalorder %s73, %s75
      %p79 = scmp.eq.s32.totalorder %s18, 0
      %p80 = por %p78, %p79
      %p81 = scmp.ne.s32.totalorder %s73, %s75
      %p82 = scmp.eq.s32.totalorder %s23, 1
      %p83 = por %p81, %p82
      %p84 = scmp.ne.s32.totalorder %s75, %s76
      %p85 = scmp.eq.s32.totalorder %s23, 0
      %p86 = por %p84, %p85
      %p87 = scmp.ne.s32.totalorder %s75, %s76
      %p88 = scmp.eq.s32.totalorder %s24, 1
      %p89 = por %p87, %p88
      %p91 = scmp.ne.s32.totalorder %s76, %s90
      %p92 = scmp.eq.s32.totalorder %s24, 0
      %p93 = por %p91, %p92
      %s95 = sadd.s32 %s94, 1
      %p98 = scmp.eq.s32.totalorder %s18, 1
      %p99 = scmp.ne.s32.totalorder %s94, %s96
      %p100 = scmp.eq.s32.totalorder %s18, 0
      %p101 = por %p99, %p100
      %p102 = scmp.ne.s32.totalorder %s94, %s96
      %p103 = scmp.eq.s32.totalorder %s23, 1
      %p104 = por %p102, %p103
      %p105 = scmp.ne.s32.totalorder %s96, %s97
      %p106 = scmp.eq.s32.totalorder %s23, 0
      %p107 = por %p105, %p106
      %p108 = scmp.ne.s32.totalorder %s96, %s97
      %p109 = scmp.eq.s32.totalorder %s24, 1
      %p110 = por %p108, %p109
      %p112 = scmp.ne.s32.totalorder %s97, %s111
      %p113 = scmp.eq.s32.totalorder %s24, 0
      %p114 = por %p112, %p113
      %s116 = sadd.s32 %s115, 1
      %p119 = scmp.eq.s32.totalorder %s18, 1
      %p120 = scmp.ne.s32.totalorder %s115, %s117
      %p121 = scmp.eq.s32.totalorder %s18, 0
      %p122 = por %p120, %p121
      %p123 = scmp.ne.s32.totalorder %s115, %s117
      %p124 = scmp.eq.s32.totalorder %s23, 1
      %p125 = por %p123, %p124
      %p126 = scmp.ne.s32.totalorder %s117, %s118
      %p127 = scmp.eq.s32.totalorder %s23, 0
      %p128 = por %p126, %p127
      %p129 = scmp.ne.s32.totalorder %s117, %s118
      %p130 = scmp.eq.s32.totalorder %s24, 1
      %p131 = por %p129, %p130
      %p133 = scmp.ne.s32.totalorder %s118, %s132
      %p134 = scmp.eq.s32.totalorder %s24, 0
      %p135 = por %p133, %p134
      %s137 = sadd.s32 %s136, 1
      %p140 = scmp.eq.s32.totalorder %s18, 1
      %p141 = scmp.ne.s32.totalorder %s136, %s138
      %p142 = scmp.eq.s32.totalorder %s18, 0
      %p143 = por %p141, %p142
      %p144 = scmp.ne.s32.totalorder %s136, %s138
      %p145 = scmp.eq.s32.totalorder %s23, 1
      %p146 = por %p144, %p145
      %p147 = scmp.ne.s32.totalorder %s138, %s139
      %p148 = scmp.eq.s32.totalorder %s23, 0
      %p149 = por %p147, %p148
      %p150 = scmp.ne.s32.totalorder %s138, %s139
      %p151 = scmp.eq.s32.totalorder %s24, 1
      %p152 = por %p150, %p151
      %p154 = scmp.ne.s32.totalorder %s139, %s153
      %p155 = scmp.eq.s32.totalorder %s24, 0
      %p156 = por %p154, %p155
      %s158 = sadd.s32 %s157, 1
      %p161 = scmp.eq.s32.totalorder %s18, 1
      %p162 = scmp.ne.s32.totalorder %s157, %s159
      %p163 = scmp.eq.s32.totalorder %s18, 0
      %p164 = por %p162, %p163
      %p165 = scmp.ne.s32.totalorder %s157, %s159
      %p166 = scmp.eq.s32.totalorder %s23, 1
      %p167 = por %p165, %p166
      %p168 = scmp.ne.s32.totalorder %s159, %s160
      %p169 = scmp.eq.s32.totalorder %s23, 0
      %p170 = por %p168, %p169
      %p171 = scmp.ne.s32.totalorder %s159, %s160
      %p172 = scmp.eq.s32.totalorder %s24, 1
      %p173 = por %p171, %p172
      %p175 = scmp.ne.s32.totalorder %s160, %s174
      %p176 = scmp.eq.s32.totalorder %s24, 0
      %p177 = por %p175, %p176
      %s179 = sadd.s32 %s178, 1
      %p182 = scmp.eq.s32.totalorder %s18, 1
      %p183 = scmp.ne.s32.totalorder %s178, %s180
      %p184 = scmp.eq.s32.totalorder %s18, 0
      %p185 = por %p183, %p184
      %p186 = scmp.ne.s32.totalorder %s178, %s180
      %p187 = scmp.eq.s32.totalorder %s23, 1
      %p188 = por %p186, %p187
      %p189 = scmp.ne.s32.totalorder %s180, %s181
      %p190 = scmp.eq.s32.totalorder %s23, 0
      %p191 = por %p189, %p190
      %p192 = scmp.ne.s32.totalorder %s180, %s181
      %p193 = scmp.eq.s32.totalorder %s24, 1
      %p194 = por %p192, %p193
      %p196 = scmp.ne.s32.totalorder %s181, %s195
      %p197 = scmp.eq.s32.totalorder %s24, 0
      %p198 = por %p196, %p197
      %s200 = sadd.s32 %s199, 1
      %p203 = scmp.eq.s32.totalorder %s18, 1
      %p204 = scmp.ne.s32.totalorder %s199, %s201
      %p205 = scmp.eq.s32.totalorder %s18, 0
      %p206 = por %p204, %p205
      %p207 = scmp.ne.s32.totalorder %s199, %s201
      %p208 = scmp.eq.s32.totalorder %s23, 1
      %p209 = por %p207, %p208
      %p210 = scmp.ne.s32.totalorder %s201, %s202
      %p211 = scmp.eq.s32.totalorder %s23, 0
      %p212 = por %p210, %p211
      %p213 = scmp.ne.s32.totalorder %s201, %s202
      %p214 = scmp.eq.s32.totalorder %s24, 1
      %p215 = por %p213, %p214
      %p217 = scmp.ne.s32.totalorder %s202, %s216
      %p218 = scmp.eq.s32.totalorder %s24, 0
      %p219 = por %p217, %p218
      %s220 = ssub.s32 %s18, %s25
      %p221 = scmp.eq.s32.totalorder %s220, 0
      %s223 = sadd.s32 %s222, 1
      %s224 = scalar_select %p221, %s222, %s223
      %p227 = pneg %p221
      %p228 = scmp.eq.s32.totalorder %s18, 1
      %p229 = por %p227, %p228
      %p230 = scmp.ne.s32.totalorder %s222, %s225
      %p231 = scmp.eq.s32.totalorder %s18, 0
      %p232 = por %p230, %p231
      %p233 = scmp.ne.s32.totalorder %s222, %s225
      %p234 = scmp.eq.s32.totalorder %s23, 1
      %p235 = por %p233, %p234
      %p236 = scmp.ne.s32.totalorder %s225, %s226
      %p237 = scmp.eq.s32.totalorder %s23, 0
      %p238 = por %p236, %p237
      %p239 = scmp.ne.s32.totalorder %s225, %s226
      %p240 = scmp.eq.s32.totalorder %s24, 1
      %p241 = por %p239, %p240
      %p243 = scmp.ne.s32.totalorder %s226, %s242
      %p244 = scmp.eq.s32.totalorder %s24, 0
      %p245 = por %p243, %p244
      %p246 = scmp.le.s32.totalorder 1, %s18
      %p247 = scmp.lt.s32.totalorder %s18, 3
      %p248 = pnand %p246, %p247
      %p249 = pneg %p248
      // Predicated region
      $region9: #{tpu_custom_call.1} parent=5 // pred_check
        _
      $region10: #{tpu_custom_call.1} parent=5 // pred_check_branch
        %251 = sbr.rel (%p248) target = $region12
      $region11: #{tpu_custom_call.1} parent=5 // pred_region
        %s252 = ssub.s32 %s18, 1
        // Predicated region
        $region13: #{tpu_custom_call.1} parent=11 // pred_check
          %p253 = pneg %p65
        $region14: #{tpu_custom_call.1} parent=11 // pred_check_branch
          %255 = sbr.rel (%p253) target = $region16
        $region15: #{tpu_custom_call.1} parent=11 // pred_region
          _
        $region16: #{tpu_custom_call.1} parent=11 // pred_fallthru
          _
        // Predicated region
        $region17: #{tpu_custom_call.1} parent=11 // pred_check
          %p256 = pneg %p86
        $region18: #{tpu_custom_call.1} parent=11 // pred_check_branch
          %258 = sbr.rel (%p256) target = $region20
        $region19: #{tpu_custom_call.1} parent=11 // pred_region
          _
        $region20: #{tpu_custom_call.1} parent=11 // pred_fallthru
          _
        // Predicated region
        $region21: #{tpu_custom_call.1} parent=11 // pred_check
          %p259 = pneg %p107
        $region22: #{tpu_custom_call.1} parent=11 // pred_check_branch
          %261 = sbr.rel (%p259) target = $region24
        $region23: #{tpu_custom_call.1} parent=11 // pred_region
          _
        $region24: #{tpu_custom_call.1} parent=11 // pred_fallthru
          _
        // Predicated region
        $region25: #{tpu_custom_call.1} parent=11 // pred_check
          %p262 = pneg %p128
        $region26: #{tpu_custom_call.1} parent=11 // pred_check_branch
          %264 = sbr.rel (%p262) target = $region28
        $region27: #{tpu_custom_call.1} parent=11 // pred_region
          _
        $region28: #{tpu_custom_call.1} parent=11 // pred_fallthru
          _
        // Predicated region
        $region29: #{tpu_custom_call.1} parent=11 // pred_check
          %p265 = pneg %p149
        $region30: #{tpu_custom_call.1} parent=11 // pred_check_branch
          %267 = sbr.rel (%p265) target = $region32
        $region31: #{tpu_custom_call.1} parent=11 // pred_region
          _
        $region32: #{tpu_custom_call.1} parent=11 // pred_fallthru
          _
        // Predicated region
        $region33: #{tpu_custom_call.1} parent=11 // pred_check
          %p268 = pneg %p170
        $region34: #{tpu_custom_call.1} parent=11 // pred_check_branch
          %270 = sbr.rel (%p268) target = $region36
        $region35: #{tpu_custom_call.1} parent=11 // pred_region
          _
        $region36: #{tpu_custom_call.1} parent=11 // pred_fallthru
          _
        // Predicated region
        $region37: #{tpu_custom_call.1} parent=11 // pred_check
          %p271 = pneg %p191
        $region38: #{tpu_custom_call.1} parent=11 // pred_check_branch
          %273 = sbr.rel (%p271) target = $region40
        $region39: #{tpu_custom_call.1} parent=11 // pred_region
          _
        $region40: #{tpu_custom_call.1} parent=11 // pred_fallthru
          _
        // Predicated region
        $region41: #{tpu_custom_call.1} parent=11 // pred_check
          %p274 = pneg %p212
        $region42: #{tpu_custom_call.1} parent=11 // pred_check_branch
          %276 = sbr.rel (%p274) target = $region44
        $region43: #{tpu_custom_call.1} parent=11 // pred_region
          _
        $region44: #{tpu_custom_call.1} parent=11 // pred_fallthru
          _
      $region12: #{tpu_custom_call.1} parent=5 // pred_fallthru
        _
      %p277 = scmp.lt.s32.totalorder %s18, 2
      // Predicated region
      $region45: #{tpu_custom_call.1} parent=5 // pred_check
        %p278 = pneg %p277
      $region46: #{tpu_custom_call.1} parent=5 // pred_check_branch
        %280 = sbr.rel (%p278) target = $region48
      $region47: #{tpu_custom_call.1} parent=5 // pred_region
        // Predicated region
        $region49: #{tpu_custom_call.1} parent=47 // pred_check
          %p281 = pneg %p38
        $region50: #{tpu_custom_call.1} parent=47 // pred_check_branch
          %283 = sbr.rel (%p281) target = $region52
        $region51: #{tpu_custom_call.1} parent=47 // pred_region
          %p284 = scmp.lt.s32.totalorder %s18, 1
          %s285 = scalar_select %p284, %s18, 1
          %s286 = smul.addr %s285, 32
          %s287 = smul.addr %s286, 8
          %s288 = scalar_lea.vmem %s0, %s287
        $region52: #{tpu_custom_call.1} parent=47 // pred_fallthru
          _
      $region48: #{tpu_custom_call.1} parent=5 // pred_fallthru
        _
      %p289 = scmp.le.s32.totalorder 1, %s18
      %p290 = scmp.lt.s32.totalorder %s18, 3
      %p291 = pnand %p289, %p290
      %p292 = pneg %p291
      // Predicated region
      $region53: #{tpu_custom_call.1} parent=5 // pred_check
        _
      $region54: #{tpu_custom_call.1} parent=5 // pred_check_branch
        %294 = sbr.rel (%p291) target = $region56
      $region55: #{tpu_custom_call.1} parent=5 // pred_region
        %s295 = ssub.s32 %s18, 1
        %p296 = scmp.lt.s32.totalorder %s23, 1
        %s297 = scalar_select %p296, %s23, 1
        %s298 = smul.addr %s297, 32
        %s299 = smul.addr %s298, 8
        %s300 = scalar_lea.vmem %s0, %s299
        %p301 = pneg %p44
        %p302 = pneg %p41
        %p303 = pneg %p65
        %p304 = pneg %p62
        %p305 = pneg %p86
        %p306 = pneg %p83
        %p307 = pneg %p107
        %p308 = pneg %p104
        %p309 = pneg %p128
        %p310 = pneg %p125
        %p311 = pneg %p149
        %p312 = pneg %p146
        %p313 = pneg %p170
        %p314 = pneg %p167
        %p315 = pneg %p191
        %p316 = pneg %p188
        %p317 = pneg %p212
        %p318 = pneg %p209
        %p319 = pneg %p238
        %p320 = pneg %p235
        %s321 = sand.u32 %s225, 1
        %s322 = scalar_lea.sflag [#allocation3], %s321
        %s323 = sand.u32 %s225, 1
        %s324 = smul.addr %s323, 256
        %s325 = scalar_lea.vmem [#allocation2], %s324
        %p326 = scmp.lt.s32.totalorder %s23, 1
        %s327 = scalar_select %p326, %s23, 1
        %s328 = smul.addr %s327, 32
        %s329 = smul.addr %s328, 8
        %s330 = scalar_lea.vmem %s0, %s329
        %v332 = vld [vmem:[%s330] sm:$0xff]
        %v333 = vld [vmem:[%s330 + $0x8] sm:$0xff]
        %v334 = vld [vmem:[%s330 + $0x10] sm:$0xff]
        %v335 = vld [vmem:[%s330 + $0x18] sm:$0xff]
        %v336 = vld [vmem:[%s330 + $0x20] sm:$0xff]
        %v337 = vld [vmem:[%s330 + $0x28] sm:$0xff]
        %v338 = vld [vmem:[%s330 + $0x30] sm:$0xff]
        %v339 = vld [vmem:[%s330 + $0x38] sm:$0xff]
        %v340 = vld [vmem:[%s330 + $0x40] sm:$0xff]
        %v341 = vld [vmem:[%s330 + $0x48] sm:$0xff]
        %v342 = vld [vmem:[%s330 + $0x50] sm:$0xff]
        %v343 = vld [vmem:[%s330 + $0x58] sm:$0xff]
        %v344 = vld [vmem:[%s330 + $0x60] sm:$0xff]
        %v345 = vld [vmem:[%s330 + $0x68] sm:$0xff]
        %v346 = vld [vmem:[%s330 + $0x70] sm:$0xff]
        %v347 = vld [vmem:[%s330 + $0x78] sm:$0xff]
        %v348 = vld [vmem:[%s330 + $0x80] sm:$0xff]
        %v349 = vld [vmem:[%s330 + $0x88] sm:$0xff]
        %v350 = vld [vmem:[%s330 + $0x90] sm:$0xff]
        %v351 = vld [vmem:[%s330 + $0x98] sm:$0xff]
        %v352 = vld [vmem:[%s330 + $0xa0] sm:$0xff]
        %v353 = vld [vmem:[%s330 + $0xa8] sm:$0xff]
        %v354 = vld [vmem:[%s330 + $0xb0] sm:$0xff]
        %v355 = vld [vmem:[%s330 + $0xb8] sm:$0xff]
        %v356 = vld [vmem:[%s330 + $0xc0] sm:$0xff]
        %v357 = vld [vmem:[%s330 + $0xc8] sm:$0xff]
        %v358 = vld [vmem:[%s330 + $0xd0] sm:$0xff]
        %v359 = vld [vmem:[%s330 + $0xd8] sm:$0xff]
        %v360 = vld [vmem:[%s330 + $0xe0] sm:$0xff]
        %v361 = vld [vmem:[%s330 + $0xe8] sm:$0xff]
        %v362 = vld [vmem:[%s330 + $0xf0] sm:$0xff]
        %v363 = vld [vmem:[%s330 + $0xf8] sm:$0xff]
        %v364 = vld [vmem:[%s1] sm:$0x1]
        %v366 = vlaneseq
        %v367 = vshrl.u32 %v366, 7
        %v368 = vsub.s32 0, %v367
        %v369 = vrot.slane %v364, %v368
        %v371 = vmul.f32 %v332, %v369
        %v372 = vmul.f32 %v333, %v369
        %v373 = vmul.f32 %v334, %v369
        %v374 = vmul.f32 %v335, %v369
        %v375 = vmul.f32 %v336, %v369
        %v376 = vmul.f32 %v337, %v369
        %v377 = vmul.f32 %v338, %v369
        %v378 = vmul.f32 %v339, %v369
        %v379 = vmul.f32 %v340, %v369
        %v380 = vmul.f32 %v341, %v369
        %v381 = vmul.f32 %v342, %v369
        %v382 = vmul.f32 %v343, %v369
        %v383 = vmul.f32 %v344, %v369
        %v384 = vmul.f32 %v345, %v369
        %v385 = vmul.f32 %v346, %v369
        %v386 = vmul.f32 %v347, %v369
        %v387 = vmul.f32 %v348, %v369
        %v388 = vmul.f32 %v349, %v369
        %v389 = vmul.f32 %v350, %v369
        %v390 = vmul.f32 %v351, %v369
        %v391 = vmul.f32 %v352, %v369
        %v392 = vmul.f32 %v353, %v369
        %v393 = vmul.f32 %v354, %v369
        %v394 = vmul.f32 %v355, %v369
        %v395 = vmul.f32 %v356, %v369
        %v396 = vmul.f32 %v357, %v369
        %v397 = vmul.f32 %v358, %v369
        %v398 = vmul.f32 %v359, %v369
        %v399 = vmul.f32 %v360, %v369
        %v400 = vmul.f32 %v361, %v369
        %v401 = vmul.f32 %v362, %v369
        %v402 = vmul.f32 %v363, %v369
        %v403 = vld [vmem:[%s2] sm:$0x1]
        %v405 = vlaneseq
        %v406 = vshrl.u32 %v405, 7
        %v407 = vsub.s32 0, %v406
        %v408 = vrot.slane %v403, %v407
        %v410 = vadd.f32 %v371, %v408
        %v411 = vadd.f32 %v372, %v408
        %v412 = vadd.f32 %v373, %v408
        %v413 = vadd.f32 %v374, %v408
        %v414 = vadd.f32 %v375, %v408
        %v415 = vadd.f32 %v376, %v408
        %v416 = vadd.f32 %v377, %v408
        %v417 = vadd.f32 %v378, %v408
        %v418 = vadd.f32 %v379, %v408
        %v419 = vadd.f32 %v380, %v408
        %v420 = vadd.f32 %v381, %v408
        %v421 = vadd.f32 %v382, %v408
        %v422 = vadd.f32 %v383, %v408
        %v423 = vadd.f32 %v384, %v408
        %v424 = vadd.f32 %v385, %v408
        %v425 = vadd.f32 %v386, %v408
        %v426 = vadd.f32 %v387, %v408
        %v427 = vadd.f32 %v388, %v408
        %v428 = vadd.f32 %v389, %v408
        %v429 = vadd.f32 %v390, %v408
        %v430 = vadd.f32 %v391, %v408
        %v431 = vadd.f32 %v392, %v408
        %v432 = vadd.f32 %v393, %v408
        %v433 = vadd.f32 %v394, %v408
        %v434 = vadd.f32 %v395, %v408
        %v435 = vadd.f32 %v396, %v408
        %v436 = vadd.f32 %v397, %v408
        %v437 = vadd.f32 %v398, %v408
        %v438 = vadd.f32 %v399, %v408
        %v439 = vadd.f32 %v400, %v408
        %v440 = vadd.f32 %v401, %v408
        %v441 = vadd.f32 %v402, %v408
        %v442 = vmax.f32 %v410, 0.0
        %v443 = vmax.f32 %v411, 0.0
        %v444 = vmax.f32 %v412, 0.0
        %v445 = vmax.f32 %v413, 0.0
        %v446 = vmax.f32 %v414, 0.0
        %v447 = vmax.f32 %v415, 0.0
        %v448 = vmax.f32 %v416, 0.0
        %v449 = vmax.f32 %v417, 0.0
        %v450 = vmax.f32 %v418, 0.0
        %v451 = vmax.f32 %v419, 0.0
        %v452 = vmax.f32 %v420, 0.0
        %v453 = vmax.f32 %v421, 0.0
        %v454 = vmax.f32 %v422, 0.0
        %v455 = vmax.f32 %v423, 0.0
        %v456 = vmax.f32 %v424, 0.0
        %v457 = vmax.f32 %v425, 0.0
        %v458 = vmax.f32 %v426, 0.0
        %v459 = vmax.f32 %v427, 0.0
        %v460 = vmax.f32 %v428, 0.0
        %v461 = vmax.f32 %v429, 0.0
        %v462 = vmax.f32 %v430, 0.0
        %v463 = vmax.f32 %v431, 0.0
        %v464 = vmax.f32 %v432, 0.0
        %v465 = vmax.f32 %v433, 0.0
        %v466 = vmax.f32 %v434, 0.0
        %v467 = vmax.f32 %v435, 0.0
        %v468 = vmax.f32 %v436, 0.0
        %v469 = vmax.f32 %v437, 0.0
        %v470 = vmax.f32 %v438, 0.0
        %v471 = vmax.f32 %v439, 0.0
        %v472 = vmax.f32 %v440, 0.0
        %v473 = vmax.f32 %v441, 0.0
        %v474 = vpack.c.bf16 %v443, %v442
        %v475 = vpack.c.bf16 %v445, %v444
        %v476 = vpack.c.bf16 %v447, %v446
        %v477 = vpack.c.bf16 %v449, %v448
        %v478 = vpack.c.bf16 %v451, %v450
        %v479 = vpack.c.bf16 %v453, %v452
        %v480 = vpack.c.bf16 %v455, %v454
        %v481 = vpack.c.bf16 %v457, %v456
        %v482 = vpack.c.bf16 %v459, %v458
        %v483 = vpack.c.bf16 %v461, %v460
        %v484 = vpack.c.bf16 %v463, %v462
        %v485 = vpack.c.bf16 %v465, %v464
        %v486 = vpack.c.bf16 %v467, %v466
        %v487 = vpack.c.bf16 %v469, %v468
        %v488 = vpack.c.bf16 %v471, %v470
        %v489 = vpack.c.bf16 %v473, %v472
        %v490 = vld [vmem:[%s3] sm:$0xf]
        %v491 = vld [vmem:[%s4] sm:$0x1]
        %v493 = vlaneseq
        %v494 = vshrl.u32 %v493, 7
        %v495 = vsub.s32 0, %v494
        %v496 = vrot.slane %v491, %v495
        %vm498 = vcmask 64512
        %v500 = vsel %vm498, %v474, 0
        %v503 = vsel %vm498, %v475, 0
        %v506 = vsel %vm498, %v476, 0
        %v509 = vsel %vm498, %v477, 0
        %v512 = vsel %vm498, %v478, 0
        %v515 = vsel %vm498, %v479, 0
        %v518 = vsel %vm498, %v480, 0
        %v521 = vsel %vm498, %v481, 0
        %v524 = vsel %vm498, %v482, 0
        %v527 = vsel %vm498, %v483, 0
        %v530 = vsel %vm498, %v484, 0
        %v533 = vsel %vm498, %v485, 0
        %v536 = vsel %vm498, %v486, 0
        %v539 = vsel %vm498, %v487, 0
        %v542 = vsel %vm498, %v488, 0
        %v545 = vsel %vm498, %v489, 0
        %vm547 = vcmask 1043456
        %v549 = vsel %vm547, %v490, 0
        %551 = vmatprep.subr.bf16.mxu0 0
        %552 = vmatpush1.bf16.msra.mxu0 %v549
        %553 = vmatprep.subr.bf16.mxu0 0
        %554 = vmatpush1.bf16.msra.mxu0 0
        %555 = vmatprep.subr.bf16.mxu0 0
        %556 = vmatpush1.bf16.msra.mxu0 0
        %557 = vmatprep.subr.bf16.mxu0 0
        %558 = vmatpush1.bf16.msra.mxu0 0
        %559 = vmatprep.subr.bf16.mxu0 0
        %560 = vmatpush1.bf16.msra.mxu0 0
        %561 = vmatprep.subr.bf16.mxu0 0
        %562 = vmatpush1.bf16.msra.mxu0 0
        %563 = vmatprep.subr.bf16.mxu0 0
        %564 = vmatpush1.bf16.msra.mxu0 0
        %565 = vmatprep.subr.bf16.mxu0 0
        %566 = vmatpush1.bf16.msra.mxu0 0
        %567 = vmatprep.subr.bf16.mxu0 0
        %568 = vmatpush1.bf16.msra.mxu0 0
        %569 = vmatprep.subr.bf16.mxu0 0
        %570 = vmatpush1.bf16.msra.mxu0 0
        %571 = vmatprep.subr.bf16.mxu0 0
        %572 = vmatpush1.bf16.msra.mxu0 0
        %573 = vmatprep.subr.bf16.mxu0 0
        %574 = vmatpush1.bf16.msra.mxu0 0
        %575 = vmatprep.subr.bf16.mxu0 0
        %576 = vmatpush1.bf16.msra.mxu0 0
        %577 = vmatprep.subr.bf16.mxu0 0
        %578 = vmatpush1.bf16.msra.mxu0 0
        %579 = vmatprep.subr.bf16.mxu0 0
        %580 = vmatpush1.bf16.msra.mxu0 0
        %581 = vmatprep.subr.bf16.mxu0 0
        %582 = vmatpush1.bf16.msra.mxu0 0
        %583 = vmatprep.mubr.bf16.mxu0 0
        %584 = vmatmul.mubr.bf16.gmra.mrb[0].mxu0 %v500
        %v585 = vpop.f32.mrb[0].mxu0
        %v586 = vadd.f32 %v496, %v585
        %v587 = vpop.f32.mrb[0].mxu0
        %v588 = vpop.f32.mrb[0].mxu0
        %v589 = vadd.f32 %v496, %v588
        %v590 = vpop.f32.mrb[0].mxu0
        %591 = vmatprep.mubr.bf16.mxu0 0
        %592 = vmatmul.mubr.bf16.gmra.mrb[0].mxu0 %v503
        %v593 = vpop.f32.mrb[0].mxu0
        %v594 = vadd.f32 %v496, %v593
        %v595 = vpop.f32.mrb[0].mxu0
        %v596 = vpop.f32.mrb[0].mxu0
        %v597 = vadd.f32 %v496, %v596
        %v598 = vpop.f32.mrb[0].mxu0
        %599 = vmatprep.mubr.bf16.mxu0 0
        %600 = vmatmul.mubr.bf16.gmra.mrb[0].mxu0 %v506
        %v601 = vpop.f32.mrb[0].mxu0
        %v602 = vadd.f32 %v496, %v601
        %v603 = vpop.f32.mrb[0].mxu0
        %v604 = vpop.f32.mrb[0].mxu0
        %v605 = vadd.f32 %v496, %v604
        %v606 = vpop.f32.mrb[0].mxu0
        %607 = vmatprep.mubr.bf16.mxu0 0
        %608 = vmatmul.mubr.bf16.gmra.mrb[0].mxu0 %v509
        %v609 = vpop.f32.mrb[0].mxu0
        %v610 = vadd.f32 %v496, %v609
        %v611 = vpop.f32.mrb[0].mxu0
        %v612 = vpop.f32.mrb[0].mxu0
        %v613 = vadd.f32 %v496, %v612
        %v614 = vpop.f32.mrb[0].mxu0
        %615 = vmatprep.mubr.bf16.mxu0 0
        %616 = vmatmul.mubr.bf16.gmra.mrb[0].mxu0 %v512
        %v617 = vpop.f32.mrb[0].mxu0
        %v618 = vadd.f32 %v496, %v617
        %v619 = vpop.f32.mrb[0].mxu0
        %v620 = vpop.f32.mrb[0].mxu0
        %v621 = vadd.f32 %v496, %v620
        %v622 = vpop.f32.mrb[0].mxu0
        %623 = vmatprep.mubr.bf16.mxu0 0
        %624 = vmatmul.mubr.bf16.gmra.mrb[0].mxu0 %v515
        %v625 = vpop.f32.mrb[0].mxu0
        %v626 = vadd.f32 %v496, %v625
        %v627 = vpop.f32.mrb[0].mxu0
        %v628 = vpop.f32.mrb[0].mxu0
        %v629 = vadd.f32 %v496, %v628
        %v630 = vpop.f32.mrb[0].mxu0
        %631 = vmatprep.mubr.bf16.mxu0 0
        %632 = vmatmul.mubr.bf16.gmra.mrb[0].mxu0 %v518
        %v633 = vpop.f32.mrb[0].mxu0
        %v634 = vadd.f32 %v496, %v633
        %v635 = vpop.f32.mrb[0].mxu0
        %v636 = vpop.f32.mrb[0].mxu0
        %v637 = vadd.f32 %v496, %v636
        %v638 = vpop.f32.mrb[0].mxu0
        %639 = vmatprep.mubr.bf16.mxu0 0
        %640 = vmatmul.mubr.bf16.gmra.mrb[0].mxu0 %v521
        %v641 = vpop.f32.mrb[0].mxu0
        %v642 = vadd.f32 %v496, %v641
        %v643 = vpop.f32.mrb[0].mxu0
        %v644 = vpop.f32.mrb[0].mxu0
        %v645 = vadd.f32 %v496, %v644
        %v646 = vpop.f32.mrb[0].mxu0
        %647 = vmatprep.mubr.bf16.mxu0 0
        %648 = vmatmul.mubr.bf16.gmra.mrb[0].mxu0 %v524
        %v649 = vpop.f32.mrb[0].mxu0
        %v650 = vadd.f32 %v496, %v649
        %v651 = vpop.f32.mrb[0].mxu0
        %v652 = vpop.f32.mrb[0].mxu0
        %v653 = vadd.f32 %v496, %v652
        %v654 = vpop.f32.mrb[0].mxu0
        %655 = vmatprep.mubr.bf16.mxu0 0
        %656 = vmatmul.mubr.bf16.gmra.mrb[0].mxu0 %v527
        %v657 = vpop.f32.mrb[0].mxu0
        %v658 = vadd.f32 %v496, %v657
        %v659 = vpop.f32.mrb[0].mxu0
        %v660 = vpop.f32.mrb[0].mxu0
        %v661 = vadd.f32 %v496, %v660
        %v662 = vpop.f32.mrb[0].mxu0
        %663 = vmatprep.mubr.bf16.mxu0 0
        %664 = vmatmul.mubr.bf16.gmra.mrb[0].mxu0 %v530
        %v665 = vpop.f32.mrb[0].mxu0
        %v666 = vadd.f32 %v496, %v665
        %v667 = vpop.f32.mrb[0].mxu0
        %v668 = vpop.f32.mrb[0].mxu0
        %v669 = vadd.f32 %v496, %v668
        %v670 = vpop.f32.mrb[0].mxu0
        %671 = vmatprep.mubr.bf16.mxu0 0
        %672 = vmatmul.mubr.bf16.gmra.mrb[0].mxu0 %v533
        %v673 = vpop.f32.mrb[0].mxu0
        %v674 = vadd.f32 %v496, %v673
        %v675 = vpop.f32.mrb[0].mxu0
        %v676 = vpop.f32.mrb[0].mxu0
        %v677 = vadd.f32 %v496, %v676
        %v678 = vpop.f32.mrb[0].mxu0
        %679 = vmatprep.mubr.bf16.mxu0 0
        %680 = vmatmul.mubr.bf16.gmra.mrb[0].mxu0 %v536
        %v681 = vpop.f32.mrb[0].mxu0
        %v682 = vadd.f32 %v496, %v681
        %v683 = vpop.f32.mrb[0].mxu0
        %v684 = vpop.f32.mrb[0].mxu0
        %v685 = vadd.f32 %v496, %v684
        %v686 = vpop.f32.mrb[0].mxu0
        %687 = vmatprep.mubr.bf16.mxu0 0
        %688 = vmatmul.mubr.bf16.gmra.mrb[0].mxu0 %v539
        %v689 = vpop.f32.mrb[0].mxu0
        %v690 = vadd.f32 %v496, %v689
        %v691 = vpop.f32.mrb[0].mxu0
        %v692 = vpop.f32.mrb[0].mxu0
        %v693 = vadd.f32 %v496, %v692
        %v694 = vpop.f32.mrb[0].mxu0
        %695 = vmatprep.mubr.bf16.mxu0 0
        %696 = vmatmul.mubr.bf16.gmra.mrb[0].mxu0 %v542
        %v697 = vpop.f32.mrb[0].mxu0
        %v698 = vadd.f32 %v496, %v697
        %v699 = vpop.f32.mrb[0].mxu0
        %v700 = vpop.f32.mrb[0].mxu0
        %v701 = vadd.f32 %v496, %v700
        %v702 = vpop.f32.mrb[0].mxu0
        %703 = vmatprep.mubr.bf16.mxu0 0
        %704 = vmatmul.mubr.bf16.gmra.mrb[0].mxu0 %v545
        %v705 = vpop.f32.mrb[0].mxu0
        %v706 = vadd.f32 %v496, %v705
        %v707 = vpop.f32.mrb[0].mxu0
        %v708 = vpop.f32.mrb[0].mxu0
        %v709 = vadd.f32 %v496, %v708
        %v710 = vpop.f32.mrb[0].mxu0
        %711 = vdwg.mxu0
        %v712 = vmax.f32 %v586, 0.0
        %v713 = vmax.f32 %v589, 0.0
        %v714 = vmax.f32 %v594, 0.0
        %v715 = vmax.f32 %v597, 0.0
        %v716 = vmax.f32 %v602, 0.0
        %v717 = vmax.f32 %v605, 0.0
        %v718 = vmax.f32 %v610, 0.0
        %v719 = vmax.f32 %v613, 0.0
        %v720 = vmax.f32 %v618, 0.0
        %v721 = vmax.f32 %v621, 0.0
        %v722 = vmax.f32 %v626, 0.0
        %v723 = vmax.f32 %v629, 0.0
        %v724 = vmax.f32 %v634, 0.0
        %v725 = vmax.f32 %v637, 0.0
        %v726 = vmax.f32 %v642, 0.0
        %v727 = vmax.f32 %v645, 0.0
        %v728 = vmax.f32 %v650, 0.0
        %v729 = vmax.f32 %v653, 0.0
        %v730 = vmax.f32 %v658, 0.0
        %v731 = vmax.f32 %v661, 0.0
        %v732 = vmax.f32 %v666, 0.0
        %v733 = vmax.f32 %v669, 0.0
        %v734 = vmax.f32 %v674, 0.0
        %v735 = vmax.f32 %v677, 0.0
        %v736 = vmax.f32 %v682, 0.0
        %v737 = vmax.f32 %v685, 0.0
        %v738 = vmax.f32 %v690, 0.0
        %v739 = vmax.f32 %v693, 0.0
        %v740 = vmax.f32 %v698, 0.0
        %v741 = vmax.f32 %v701, 0.0
        %v742 = vmax.f32 %v706, 0.0
        %v743 = vmax.f32 %v709, 0.0
        %vm777 = vcmask 1040384
        %v778 = vrot.slane 0.0, 7
        %v779 = vsel %vm777, %v778, %v778
        %v780 = vrot.slane %v712, 7
        %v781 = vrot.slane %v713, 7
        %v782 = vsel %vm777, %v780, %v781
        %v783 = vrot.slane %v714, 7
        %v784 = vrot.slane %v715, 7
        %v785 = vsel %vm777, %v783, %v784
        %v786 = vrot.slane %v716, 7
        %v787 = vrot.slane %v717, 7
        %v788 = vsel %vm777, %v786, %v787
        %v789 = vrot.slane %v718, 7
        %v790 = vrot.slane %v719, 7
        %v791 = vsel %vm777, %v789, %v790
        %v792 = vrot.slane %v720, 7
        %v793 = vrot.slane %v721, 7
        %v794 = vsel %vm777, %v792, %v793
        %v795 = vrot.slane %v722, 7
        %v796 = vrot.slane %v723, 7
        %v797 = vsel %vm777, %v795, %v796
        %v798 = vrot.slane %v724, 7
        %v799 = vrot.slane %v725, 7
        %v800 = vsel %vm777, %v798, %v799
        %v801 = vrot.slane %v726, 7
        %v802 = vrot.slane %v727, 7
        %v803 = vsel %vm777, %v801, %v802
        %v804 = vrot.slane %v728, 7
        %v805 = vrot.slane %v729, 7
        %v806 = vsel %vm777, %v804, %v805
        %v807 = vrot.slane %v730, 7
        %v808 = vrot.slane %v731, 7
        %v809 = vsel %vm777, %v807, %v808
        %v810 = vrot.slane %v732, 7
        %v811 = vrot.slane %v733, 7
        %v812 = vsel %vm777, %v810, %v811
        %v813 = vrot.slane %v734, 7
        %v814 = vrot.slane %v735, 7
        %v815 = vsel %vm777, %v813, %v814
        %v816 = vrot.slane %v736, 7
        %v817 = vrot.slane %v737, 7
        %v818 = vsel %vm777, %v816, %v817
        %v819 = vrot.slane %v738, 7
        %v820 = vrot.slane %v739, 7
        %v821 = vsel %vm777, %v819, %v820
        %v822 = vrot.slane %v740, 7
        %v823 = vrot.slane %v741, 7
        %v824 = vsel %vm777, %v822, %v823
        %v825 = vrot.slane %v742, 7
        %v826 = vrot.slane %v743, 7
        %v827 = vsel %vm777, %v825, %v826
        %v878 = vsel %vm777, 0.0, %v778
        %v879 = vsel %vm777, 0.0, %v780
        %v880 = vsel %vm777, 0.0, %v783
        %v881 = vsel %vm777, 0.0, %v786
        %v882 = vsel %vm777, 0.0, %v789
        %v883 = vsel %vm777, 0.0, %v792
        %v884 = vsel %vm777, 0.0, %v795
        %v885 = vsel %vm777, 0.0, %v798
        %v886 = vsel %vm777, 0.0, %v801
        %v887 = vsel %vm777, 0.0, %v804
        %v888 = vsel %vm777, 0.0, %v807
        %v889 = vsel %vm777, 0.0, %v810
        %v890 = vsel %vm777, 0.0, %v813
        %v891 = vsel %vm777, 0.0, %v816
        %v892 = vsel %vm777, 0.0, %v819
        %v893 = vsel %vm777, 0.0, %v822
        %v894 = vsel %vm777, 0.0, %v825
        %v895 = vsel %vm777, %v778, 0.0
        %v896 = vsel %vm777, %v781, 0.0
        %v897 = vsel %vm777, %v784, 0.0
        %v898 = vsel %vm777, %v787, 0.0
        %v899 = vsel %vm777, %v790, 0.0
        %v900 = vsel %vm777, %v793, 0.0
        %v901 = vsel %vm777, %v796, 0.0
        %v902 = vsel %vm777, %v799, 0.0
        %v903 = vsel %vm777, %v802, 0.0
        %v904 = vsel %vm777, %v805, 0.0
        %v905 = vsel %vm777, %v808, 0.0
        %v906 = vsel %vm777, %v811, 0.0
        %v907 = vsel %vm777, %v814, 0.0
        %v908 = vsel %vm777, %v817, 0.0
        %v909 = vsel %vm777, %v820, 0.0
        %v910 = vsel %vm777, %v823, 0.0
        %v911 = vsel %vm777, %v826, 0.0
        %v912 = vpack.c.bf16 %v779, %v878
        %v913 = vpack.c.bf16 %v895, %v895
        %v914 = vpack.c.bf16 %v782, %v879
        %v915 = vpack.c.bf16 %v896, %v896
        %v916 = vpack.c.bf16 %v785, %v880
        %v917 = vpack.c.bf16 %v897, %v897
        %v918 = vpack.c.bf16 %v788, %v881
        %v919 = vpack.c.bf16 %v898, %v898
        %v920 = vpack.c.bf16 %v791, %v882
        %v921 = vpack.c.bf16 %v899, %v899
        %v922 = vpack.c.bf16 %v794, %v883
        %v923 = vpack.c.bf16 %v900, %v900
        %v924 = vpack.c.bf16 %v797, %v884
        %v925 = vpack.c.bf16 %v901, %v901
        %v926 = vpack.c.bf16 %v800, %v885
        %v927 = vpack.c.bf16 %v902, %v902
        %v928 = vpack.c.bf16 %v803, %v886
        %v929 = vpack.c.bf16 %v903, %v903
        %v930 = vpack.c.bf16 %v806, %v887
        %v931 = vpack.c.bf16 %v904, %v904
        %v932 = vpack.c.bf16 %v809, %v888
        %v933 = vpack.c.bf16 %v905, %v905
        %v934 = vpack.c.bf16 %v812, %v889
        %v935 = vpack.c.bf16 %v906, %v906
        %v936 = vpack.c.bf16 %v815, %v890
        %v937 = vpack.c.bf16 %v907, %v907
        %v938 = vpack.c.bf16 %v818, %v891
        %v939 = vpack.c.bf16 %v908, %v908
        %v940 = vpack.c.bf16 %v821, %v892
        %v941 = vpack.c.bf16 %v909, %v909
        %v942 = vpack.c.bf16 %v824, %v893
        %v943 = vpack.c.bf16 %v910, %v910
        %v944 = vpack.c.bf16 %v827, %v894
        %v945 = vpack.c.bf16 %v911, %v911
        %v946 = vld [vmem:[%s5] sm:$0x3]
        %v947 = vld [vmem:[%s5 + $0x2] sm:$0x3]
        %v948 = vld [vmem:[%s5 + $0x4] sm:$0x3]
        %v949 = vld [vmem:[%s5 + $0x6] sm:$0x3]
        %v950 = vld [vmem:[%s5 + $0x8] sm:$0x3]
        %v951 = vld [vmem:[%s5 + $0xa] sm:$0x3]
        %v952 = vld [vmem:[%s5 + $0xc] sm:$0x3]
        %v953 = vld [vmem:[%s5 + $0xe] sm:$0x3]
        %v954 = vld [vmem:[%s5 + $0x10] sm:$0x3]
        %vm955 = vsmask.f32 7424
        %v957 = vshrl.u32 %v912, 16
        %v959 = vshll.u32 %v912, 16
        %v961 = vrot.slane %v959, 1
        %v962 = vor.u32 %v957, %v961
        %v964 = vshll.u32 %v913, 16
        %v966 = vrot.slane %v964, 1
        %v967 = vsel %vm955, %v962, %v966
        %v969 = vshrl.u32 %v914, 16
        %v971 = vshll.u32 %v914, 16
        %v973 = vrot.slane %v971, 1
        %v974 = vor.u32 %v969, %v973
        %v976 = vshll.u32 %v915, 16
        %v978 = vrot.slane %v976, 1
        %v979 = vsel %vm955, %v974, %v978
        %v981 = vshrl.u32 %v916, 16
        %v983 = vshll.u32 %v916, 16
        %v985 = vrot.slane %v983, 1
        %v986 = vor.u32 %v981, %v985
        %v988 = vshll.u32 %v917, 16
        %v990 = vrot.slane %v988, 1
        %v991 = vsel %vm955, %v986, %v990
        %v993 = vshrl.u32 %v918, 16
        %v995 = vshll.u32 %v918, 16
        %v997 = vrot.slane %v995, 1
        %v998 = vor.u32 %v993, %v997
        %v1000 = vshll.u32 %v919, 16
        %v1002 = vrot.slane %v1000, 1
        %v1003 = vsel %vm955, %v998, %v1002
        %v1005 = vshrl.u32 %v920, 16
        %v1007 = vshll.u32 %v920, 16
        %v1009 = vrot.slane %v1007, 1
        %v1010 = vor.u32 %v1005, %v1009
        %v1012 = vshll.u32 %v921, 16
        %v1014 = vrot.slane %v1012, 1
        %v1015 = vsel %vm955, %v1010, %v1014
        %v1017 = vshrl.u32 %v922, 16
        %v1019 = vshll.u32 %v922, 16
        %v1021 = vrot.slane %v1019, 1
        %v1022 = vor.u32 %v1017, %v1021
        %v1024 = vshll.u32 %v923, 16
        %v1026 = vrot.slane %v1024, 1
        %v1027 = vsel %vm955, %v1022, %v1026
        %v1029 = vshrl.u32 %v924, 16
        %v1031 = vshll.u32 %v924, 16
        %v1033 = vrot.slane %v1031, 1
        %v1034 = vor.u32 %v1029, %v1033
        %v1036 = vshll.u32 %v925, 16
        %v1038 = vrot.slane %v1036, 1
        %v1039 = vsel %vm955, %v1034, %v1038
        %v1041 = vshrl.u32 %v926, 16
        %v1043 = vshll.u32 %v926, 16
        %v1045 = vrot.slane %v1043, 1
        %v1046 = vor.u32 %v1041, %v1045
        %v1048 = vshll.u32 %v927, 16
        %v1050 = vrot.slane %v1048, 1
        %v1051 = vsel %vm955, %v1046, %v1050
        %v1053 = vshrl.u32 %v928, 16
        %v1055 = vshll.u32 %v928, 16
        %v1057 = vrot.slane %v1055, 1
        %v1058 = vor.u32 %v1053, %v1057
        %v1060 = vshll.u32 %v929, 16
        %v1062 = vrot.slane %v1060, 1
        %v1063 = vsel %vm955, %v1058, %v1062
        %v1065 = vshrl.u32 %v930, 16
        %v1067 = vshll.u32 %v930, 16
        %v1069 = vrot.slane %v1067, 1
        %v1070 = vor.u32 %v1065, %v1069
        %v1072 = vshll.u32 %v931, 16
        %v1074 = vrot.slane %v1072, 1
        %v1075 = vsel %vm955, %v1070, %v1074
        %v1077 = vshrl.u32 %v932, 16
        %v1079 = vshll.u32 %v932, 16
        %v1081 = vrot.slane %v1079, 1
        %v1082 = vor.u32 %v1077, %v1081
        %v1084 = vshll.u32 %v933, 16
        %v1086 = vrot.slane %v1084, 1
        %v1087 = vsel %vm955, %v1082, %v1086
        %v1089 = vshrl.u32 %v934, 16
        %v1091 = vshll.u32 %v934, 16
        %v1093 = vrot.slane %v1091, 1
        %v1094 = vor.u32 %v1089, %v1093
        %v1096 = vshll.u32 %v935, 16
        %v1098 = vrot.slane %v1096, 1
        %v1099 = vsel %vm955, %v1094, %v1098
        %v1101 = vshrl.u32 %v936, 16
        %v1103 = vshll.u32 %v936, 16
        %v1105 = vrot.slane %v1103, 1
        %v1106 = vor.u32 %v1101, %v1105
        %v1108 = vshll.u32 %v937, 16
        %v1110 = vrot.slane %v1108, 1
        %v1111 = vsel %vm955, %v1106, %v1110
        %v1113 = vshrl.u32 %v938, 16
        %v1115 = vshll.u32 %v938, 16
        %v1117 = vrot.slane %v1115, 1
        %v1118 = vor.u32 %v1113, %v1117
        %v1120 = vshll.u32 %v939, 16
        %v1122 = vrot.slane %v1120, 1
        %v1123 = vsel %vm955, %v1118, %v1122
        %v1125 = vshrl.u32 %v940, 16
        %v1127 = vshll.u32 %v940, 16
        %v1129 = vrot.slane %v1127, 1
        %v1130 = vor.u32 %v1125, %v1129
        %v1132 = vshll.u32 %v941, 16
        %v1134 = vrot.slane %v1132, 1
        %v1135 = vsel %vm955, %v1130, %v1134
        %v1137 = vshrl.u32 %v942, 16
        %v1139 = vshll.u32 %v942, 16
        %v1141 = vrot.slane %v1139, 1
        %v1142 = vor.u32 %v1137, %v1141
        %v1144 = vshll.u32 %v943, 16
        %v1146 = vrot.slane %v1144, 1
        %v1147 = vsel %vm955, %v1142, %v1146
        %vm1148 = vcmask 31744
        %v1150 = vsel %vm1148, %v967, 0
        %v1153 = vsel %vm1148, %v979, 0
        %v1156 = vsel %vm1148, %v991, 0
        %v1159 = vsel %vm1148, %v1003, 0
        %v1162 = vsel %vm1148, %v1015, 0
        %v1165 = vsel %vm1148, %v1027, 0
        %v1168 = vsel %vm1148, %v1039, 0
        %v1171 = vsel %vm1148, %v1051, 0
        %v1174 = vsel %vm1148, %v1063, 0
        %v1177 = vsel %vm1148, %v1075, 0
        %v1180 = vsel %vm1148, %v1087, 0
        %v1183 = vsel %vm1148, %v1099, 0
        %v1186 = vsel %vm1148, %v1111, 0
        %v1189 = vsel %vm1148, %v1123, 0
        %v1192 = vsel %vm1148, %v1135, 0
        %v1195 = vsel %vm1148, %v1147, 0
        %vm1197 = vcmask 1041408
        %v1199 = vsel %vm1197, %v947, 0
        %1201 = vmatprep.subr.bf16.mxu0 0
        %1202 = vmatpush1.bf16.msra.mxu0 %v1199
        %1203 = vmatprep.subr.bf16.mxu0 0
        %1204 = vmatpush1.bf16.msra.mxu0 0
        %1205 = vmatprep.subr.bf16.mxu0 0
        %1206 = vmatpush1.bf16.msra.mxu0 0
        %1207 = vmatprep.subr.bf16.mxu0 0
        %1208 = vmatpush1.bf16.msra.mxu0 0
        %1209 = vmatprep.subr.bf16.mxu0 0
        %1210 = vmatpush1.bf16.msra.mxu0 0
        %1211 = vmatprep.subr.bf16.mxu0 0
        %1212 = vmatpush1.bf16.msra.mxu0 0
        %1213 = vmatprep.subr.bf16.mxu0 0
        %1214 = vmatpush1.bf16.msra.mxu0 0
        %1215 = vmatprep.subr.bf16.mxu0 0
        %1216 = vmatpush1.bf16.msra.mxu0 0
        %1217 = vmatprep.subr.bf16.mxu0 0
        %1218 = vmatpush1.bf16.msra.mxu0 0
        %1219 = vmatprep.subr.bf16.mxu0 0
        %1220 = vmatpush1.bf16.msra.mxu0 0
        %1221 = vmatprep.subr.bf16.mxu0 0
        %1222 = vmatpush1.bf16.msra.mxu0 0
        %1223 = vmatprep.subr.bf16.mxu0 0
        %1224 = vmatpush1.bf16.msra.mxu0 0
        %1225 = vmatprep.subr.bf16.mxu0 0
        %1226 = vmatpush1.bf16.msra.mxu0 0
        %1227 = vmatprep.subr.bf16.mxu0 0
        %1228 = vmatpush1.bf16.msra.mxu0 0
        %1229 = vmatprep.subr.bf16.mxu0 0
        %1230 = vmatpush1.bf16.msra.mxu0 0
        %1231 = vmatprep.subr.bf16.mxu0 0
        %1232 = vmatpush1.bf16.msra.mxu0 0
        %1233 = vmatprep.mubr.bf16.mxu0 0
        %1234 = vmatmul.mubr.bf16.gmra.mrb[0].mxu0 %v1150
        %v1235 = vpop.f32.mrb[0].mxu0
        %v1236 = vadd.f32 0.0, %v1235
        %v1237 = vpop.f32.mrb[0].mxu0
        %v1238 = vpop.f32.mrb[0].mxu0
        %v1239 = vadd.f32 0.0, %v1238
        %v1240 = vpop.f32.mrb[0].mxu0
        %1241 = vmatprep.mubr.bf16.mxu0 0
        %1242 = vmatmul.mubr.bf16.gmra.mrb[0].mxu0 %v1153
        %v1243 = vpop.f32.mrb[0].mxu0
        %v1244 = vadd.f32 0.0, %v1243
        %v1245 = vpop.f32.mrb[0].mxu0
        %v1246 = vpop.f32.mrb[0].mxu0
        %v1247 = vadd.f32 0.0, %v1246
        %v1248 = vpop.f32.mrb[0].mxu0
        %1249 = vmatprep.mubr.bf16.mxu0 0
        %1250 = vmatmul.mubr.bf16.gmra.mrb[0].mxu0 %v1156
        %v1251 = vpop.f32.mrb[0].mxu0
        %v1252 = vadd.f32 0.0, %v1251
        %v1253 = vpop.f32.mrb[0].mxu0
        %v1254 = vpop.f32.mrb[0].mxu0
        %v1255 = vadd.f32 0.0, %v1254
        %v1256 = vpop.f32.mrb[0].mxu0
        %1257 = vmatprep.mubr.bf16.mxu0 0
        %1258 = vmatmul.mubr.bf16.gmra.mrb[0].mxu0 %v1159
        %v1259 = vpop.f32.mrb[0].mxu0
        %v1260 = vadd.f32 0.0, %v1259
        %v1261 = vpop.f32.mrb[0].mxu0
        %v1262 = vpop.f32.mrb[0].mxu0
        %v1263 = vadd.f32 0.0, %v1262
        %v1264 = vpop.f32.mrb[0].mxu0
        %1265 = vmatprep.mubr.bf16.mxu0 0
        %1266 = vmatmul.mubr.bf16.gmra.mrb[0].mxu0 %v1162
        %v1267 = vpop.f32.mrb[0].mxu0
        %v1268 = vadd.f32 0.0, %v1267
        %v1269 = vpop.f32.mrb[0].mxu0
        %v1270 = vpop.f32.mrb[0].mxu0
        %v1271 = vadd.f32 0.0, %v1270
        %v1272 = vpop.f32.mrb[0].mxu0
        %1273 = vmatprep.mubr.bf16.mxu0 0
        %1274 = vmatmul.mubr.bf16.gmra.mrb[0].mxu0 %v1165
        %v1275 = vpop.f32.mrb[0].mxu0
        %v1276 = vadd.f32 0.0, %v1275
        %v1277 = vpop.f32.mrb[0].mxu0
        %v1278 = vpop.f32.mrb[0].mxu0
        %v1279 = vadd.f32 0.0, %v1278
        %v1280 = vpop.f32.mrb[0].mxu0
        %1281 = vmatprep.mubr.bf16.mxu0 0
        %1282 = vmatmul.mubr.bf16.gmra.mrb[0].mxu0 %v1168
        %v1283 = vpop.f32.mrb[0].mxu0
        %v1284 = vadd.f32 0.0, %v1283
        %v1285 = vpop.f32.mrb[0].mxu0
        %v1286 = vpop.f32.mrb[0].mxu0
        %v1287 = vadd.f32 0.0, %v1286
        %v1288 = vpop.f32.mrb[0].mxu0
        %1289 = vmatprep.mubr.bf16.mxu0 0
        %1290 = vmatmul.mubr.bf16.gmra.mrb[0].mxu0 %v1171
        %v1291 = vpop.f32.mrb[0].mxu0
        %v1292 = vadd.f32 0.0, %v1291
        %v1293 = vpop.f32.mrb[0].mxu0
        %v1294 = vpop.f32.mrb[0].mxu0
        %v1295 = vadd.f32 0.0, %v1294
        %v1296 = vpop.f32.mrb[0].mxu0
        %1297 = vmatprep.mubr.bf16.mxu0 0
        %1298 = vmatmul.mubr.bf16.gmra.mrb[0].mxu0 %v1174
        %v1299 = vpop.f32.mrb[0].mxu0
        %v1300 = vadd.f32 0.0, %v1299
        %v1301 = vpop.f32.mrb[0].mxu0
        %v1302 = vpop.f32.mrb[0].mxu0
        %v1303 = vadd.f32 0.0, %v1302
        %v1304 = vpop.f32.mrb[0].mxu0
        %1305 = vmatprep.mubr.bf16.mxu0 0
        %1306 = vmatmul.mubr.bf16.gmra.mrb[0].mxu0 %v1177
        %v1307 = vpop.f32.mrb[0].mxu0
        %v1308 = vadd.f32 0.0, %v1307
        %v1309 = vpop.f32.mrb[0].mxu0
        %v1310 = vpop.f32.mrb[0].mxu0
        %v1311 = vadd.f32 0.0, %v1310
        %v1312 = vpop.f32.mrb[0].mxu0
        %1313 = vmatprep.mubr.bf16.mxu0 0
        %1314 = vmatmul.mubr.bf16.gmra.mrb[0].mxu0 %v1180
        %v1315 = vpop.f32.mrb[0].mxu0
        %v1316 = vadd.f32 0.0, %v1315
        %v1317 = vpop.f32.mrb[0].mxu0
        %v1318 = vpop.f32.mrb[0].mxu0
        %v1319 = vadd.f32 0.0, %v1318
        %v1320 = vpop.f32.mrb[0].mxu0
        %1321 = vmatprep.mubr.bf16.mxu0 0
        %1322 = vmatmul.mubr.bf16.gmra.mrb[0].mxu0 %v1183
        %v1323 = vpop.f32.mrb[0].mxu0
        %v1324 = vadd.f32 0.0, %v1323
        %v1325 = vpop.f32.mrb[0].mxu0
        %v1326 = vpop.f32.mrb[0].mxu0
        %v1327 = vadd.f32 0.0, %v1326
        %v1328 = vpop.f32.mrb[0].mxu0
        %1329 = vmatprep.mubr.bf16.mxu0 0
        %1330 = vmatmul.mubr.bf16.gmra.mrb[0].mxu0 %v1186
        %v1331 = vpop.f32.mrb[0].mxu0
        %v1332 = vadd.f32 0.0, %v1331
        %v1333 = vpop.f32.mrb[0].mxu0
        %v1334 = vpop.f32.mrb[0].mxu0
        %v1335 = vadd.f32 0.0, %v1334
        %v1336 = vpop.f32.mrb[0].mxu0
        %1337 = vmatprep.mubr.bf16.mxu0 0
        %1338 = vmatmul.mubr.bf16.gmra.mrb[0].mxu0 %v1189
        %v1339 = vpop.f32.mrb[0].mxu0
        %v1340 = vadd.f32 0.0, %v1339
        %v1341 = vpop.f32.mrb[0].mxu0
        %v1342 = vpop.f32.mrb[0].mxu0
        %v1343 = vadd.f32 0.0, %v1342
        %v1344 = vpop.f32.mrb[0].mxu0
        %1345 = vmatprep.mubr.bf16.mxu0 0
        %1346 = vmatmul.mubr.bf16.gmra.mrb[0].mxu0 %v1192
        %v1347 = vpop.f32.mrb[0].mxu0
        %v1348 = vadd.f32 0.0, %v1347
        %v1349 = vpop.f32.mrb[0].mxu0
        %v1350 = vpop.f32.mrb[0].mxu0
        %v1351 = vadd.f32 0.0, %v1350
        %v1352 = vpop.f32.mrb[0].mxu0
        %1353 = vmatprep.mubr.bf16.mxu0 0
        %1354 = vmatmul.mubr.bf16.gmra.mrb[0].mxu0 %v1195
        %v1355 = vpop.f32.mrb[0].mxu0
        %v1356 = vadd.f32 0.0, %v1355
        %v1357 = vpop.f32.mrb[0].mxu0
        %v1358 = vpop.f32.mrb[0].mxu0
        %v1359 = vadd.f32 0.0, %v1358
        %v1360 = vpop.f32.mrb[0].mxu0
        %1361 = vdwg.mxu0
        %v1362 = vsel %vm1148, %v912, 0
        %v1364 = vsel %vm1148, %v914, 0
        %v1366 = vsel %vm1148, %v916, 0
        %v1368 = vsel %vm1148, %v918, 0
        %v1370 = vsel %vm1148, %v920, 0
        %v1372 = vsel %vm1148, %v922, 0
        %v1374 = vsel %vm1148, %v924, 0
        %v1376 = vsel %vm1148, %v926, 0
        %v1378 = vsel %vm1148, %v928, 0
        %v1380 = vsel %vm1148, %v930, 0
        %v1382 = vsel %vm1148, %v932, 0
        %v1384 = vsel %vm1148, %v934, 0
        %v1386 = vsel %vm1148, %v936, 0
        %v1388 = vsel %vm1148, %v938, 0
        %v1390 = vsel %vm1148, %v940, 0
        %v1392 = vsel %vm1148, %v942, 0
        %v1395 = vsel %vm1197, %v946, 0
        %1397 = vmatprep.subr.bf16.mxu0 0
        %1398 = vmatpush1.bf16.msra.mxu0 %v1395
        %1399 = vmatprep.subr.bf16.mxu0 0
        %1400 = vmatpush1.bf16.msra.mxu0 0
        %1401 = vmatprep.subr.bf16.mxu0 0
        %1402 = vmatpush1.bf16.msra.mxu0 0
        %1403 = vmatprep.subr.bf16.mxu0 0
        %1404 = vmatpush1.bf16.msra.mxu0 0
        %1405 = vmatprep.subr.bf16.mxu0 0
        %1406 = vmatpush1.bf16.msra.mxu0 0
        %1407 = vmatprep.subr.bf16.mxu0 0
        %1408 = vmatpush1.bf16.msra.mxu0 0
        %1409 = vmatprep.subr.bf16.mxu0 0
        %1410 = vmatpush1.bf16.msra.mxu0 0
        %1411 = vmatprep.subr.bf16.mxu0 0
        %1412 = vmatpush1.bf16.msra.mxu0 0
        %1413 = vmatprep.subr.bf16.mxu0 0
        %1414 = vmatpush1.bf16.msra.mxu0 0
        %1415 = vmatprep.subr.bf16.mxu0 0
        %1416 = vmatpush1.bf16.msra.mxu0 0
        %1417 = vmatprep.subr.bf16.mxu0 0
        %1418 = vmatpush1.bf16.msra.mxu0 0
        %1419 = vmatprep.subr.bf16.mxu0 0
        %1420 = vmatpush1.bf16.msra.mxu0 0
        %1421 = vmatprep.subr.bf16.mxu0 0
        %1422 = vmatpush1.bf16.msra.mxu0 0
        %1423 = vmatprep.subr.bf16.mxu0 0
        %1424 = vmatpush1.bf16.msra.mxu0 0
        %1425 = vmatprep.subr.bf16.mxu0 0
        %1426 = vmatpush1.bf16.msra.mxu0 0
        %1427 = vmatprep.subr.bf16.mxu0 0
        %1428 = vmatpush1.bf16.msra.mxu0 0
        %1429 = vmatprep.mubr.bf16.mxu0 0
        %1430 = vmatmul.mubr.bf16.gmra.mrb[0].mxu0 %v1362
        %v1431 = vpop.f32.mrb[0].mxu0
        %v1432 = vadd.f32 %v1236, %v1431
        %v1433 = vpop.f32.mrb[0].mxu0
        %v1434 = vpop.f32.mrb[0].mxu0
        %v1435 = vadd.f32 %v1239, %v1434
        %v1436 = vpop.f32.mrb[0].mxu0
        %1437 = vmatprep.mubr.bf16.mxu0 0
        %1438 = vmatmul.mubr.bf16.gmra.mrb[0].mxu0 %v1364
        %v1439 = vpop.f32.mrb[0].mxu0
        %v1440 = vadd.f32 %v1244, %v1439
        %v1441 = vpop.f32.mrb[0].mxu0
        %v1442 = vpop.f32.mrb[0].mxu0
        %v1443 = vadd.f32 %v1247, %v1442
        %v1444 = vpop.f32.mrb[0].mxu0
        %1445 = vmatprep.mubr.bf16.mxu0 0
        %1446 = vmatmul.mubr.bf16.gmra.mrb[0].mxu0 %v1366
        %v1447 = vpop.f32.mrb[0].mxu0
        %v1448 = vadd.f32 %v1252, %v1447
        %v1449 = vpop.f32.mrb[0].mxu0
        %v1450 = vpop.f32.mrb[0].mxu0
        %v1451 = vadd.f32 %v1255, %v1450
        %v1452 = vpop.f32.mrb[0].mxu0
        %1453 = vmatprep.mubr.bf16.mxu0 0
        %1454 = vmatmul.mubr.bf16.gmra.mrb[0].mxu0 %v1368
        %v1455 = vpop.f32.mrb[0].mxu0
        %v1456 = vadd.f32 %v1260, %v1455
        %v1457 = vpop.f32.mrb[0].mxu0
        %v1458 = vpop.f32.mrb[0].mxu0
        %v1459 = vadd.f32 %v1263, %v1458
        %v1460 = vpop.f32.mrb[0].mxu0
        %1461 = vmatprep.mubr.bf16.mxu0 0
        %1462 = vmatmul.mubr.bf16.gmra.mrb[0].mxu0 %v1370
        %v1463 = vpop.f32.mrb[0].mxu0
        %v1464 = vadd.f32 %v1268, %v1463
        %v1465 = vpop.f32.mrb[0].mxu0
        %v1466 = vpop.f32.mrb[0].mxu0
        %v1467 = vadd.f32 %v1271, %v1466
        %v1468 = vpop.f32.mrb[0].mxu0
        %1469 = vmatprep.mubr.bf16.mxu0 0
        %1470 = vmatmul.mubr.bf16.gmra.mrb[0].mxu0 %v1372
        %v1471 = vpop.f32.mrb[0].mxu0
        %v1472 = vadd.f32 %v1276, %v1471
        %v1473 = vpop.f32.mrb[0].mxu0
        %v1474 = vpop.f32.mrb[0].mxu0
        %v1475 = vadd.f32 %v1279, %v1474
        %v1476 = vpop.f32.mrb[0].mxu0
        %1477 = vmatprep.mubr.bf16.mxu0 0
        %1478 = vmatmul.mubr.bf16.gmra.mrb[0].mxu0 %v1374
        %v1479 = vpop.f32.mrb[0].mxu0
        %v1480 = vadd.f32 %v1284, %v1479
        %v1481 = vpop.f32.mrb[0].mxu0
        %v1482 = vpop.f32.mrb[0].mxu0
        %v1483 = vadd.f32 %v1287, %v1482
        %v1484 = vpop.f32.mrb[0].mxu0
        %1485 = vmatprep.mubr.bf16.mxu0 0
        %1486 = vmatmul.mubr.bf16.gmra.mrb[0].mxu0 %v1376
        %v1487 = vpop.f32.mrb[0].mxu0
        %v1488 = vadd.f32 %v1292, %v1487
        %v1489 = vpop.f32.mrb[0].mxu0
        %v1490 = vpop.f32.mrb[0].mxu0
        %v1491 = vadd.f32 %v1295, %v1490
        %v1492 = vpop.f32.mrb[0].mxu0
        %1493 = vmatprep.mubr.bf16.mxu0 0
        %1494 = vmatmul.mubr.bf16.gmra.mrb[0].mxu0 %v1378
        %v1495 = vpop.f32.mrb[0].mxu0
        %v1496 = vadd.f32 %v1300, %v1495
        %v1497 = vpop.f32.mrb[0].mxu0
        %v1498 = vpop.f32.mrb[0].mxu0
        %v1499 = vadd.f32 %v1303, %v1498
        %v1500 = vpop.f32.mrb[0].mxu0
        %1501 = vmatprep.mubr.bf16.mxu0 0
        %1502 = vmatmul.mubr.bf16.gmra.mrb[0].mxu0 %v1380
        %v1503 = vpop.f32.mrb[0].mxu0
        %v1504 = vadd.f32 %v1308, %v1503
        %v1505 = vpop.f32.mrb[0].mxu0
        %v1506 = vpop.f32.mrb[0].mxu0
        %v1507 = vadd.f32 %v1311, %v1506
        %v1508 = vpop.f32.mrb[0].mxu0
        %1509 = vmatprep.mubr.bf16.mxu0 0
        %1510 = vmatmul.mubr.bf16.gmra.mrb[0].mxu0 %v1382
        %v1511 = vpop.f32.mrb[0].mxu0
        %v1512 = vadd.f32 %v1316, %v1511
        %v1513 = vpop.f32.mrb[0].mxu0
        %v1514 = vpop.f32.mrb[0].mxu0
        %v1515 = vadd.f32 %v1319, %v1514
        %v1516 = vpop.f32.mrb[0].mxu0
        %1517 = vmatprep.mubr.bf16.mxu0 0
        %1518 = vmatmul.mubr.bf16.gmra.mrb[0].mxu0 %v1384
        %v1519 = vpop.f32.mrb[0].mxu0
        %v1520 = vadd.f32 %v1324, %v1519
        %v1521 = vpop.f32.mrb[0].mxu0
        %v1522 = vpop.f32.mrb[0].mxu0
        %v1523 = vadd.f32 %v1327, %v1522
        %v1524 = vpop.f32.mrb[0].mxu0
        %1525 = vmatprep.mubr.bf16.mxu0 0
        %1526 = vmatmul.mubr.bf16.gmra.mrb[0].mxu0 %v1386
        %v1527 = vpop.f32.mrb[0].mxu0
        %v1528 = vadd.f32 %v1332, %v1527
        %v1529 = vpop.f32.mrb[0].mxu0
        %v1530 = vpop.f32.mrb[0].mxu0
        %v1531 = vadd.f32 %v1335, %v1530
        %v1532 = vpop.f32.mrb[0].mxu0
        %1533 = vmatprep.mubr.bf16.mxu0 0
        %1534 = vmatmul.mubr.bf16.gmra.mrb[0].mxu0 %v1388
        %v1535 = vpop.f32.mrb[0].mxu0
        %v1536 = vadd.f32 %v1340, %v1535
        %v1537 = vpop.f32.mrb[0].mxu0
        %v1538 = vpop.f32.mrb[0].mxu0
        %v1539 = vadd.f32 %v1343, %v1538
        %v1540 = vpop.f32.mrb[0].mxu0
        %1541 = vmatprep.mubr.bf16.mxu0 0
        %1542 = vmatmul.mubr.bf16.gmra.mrb[0].mxu0 %v1390
        %v1543 = vpop.f32.mrb[0].mxu0
        %v1544 = vadd.f32 %v1348, %v1543
        %v1545 = vpop.f32.mrb[0].mxu0
        %v1546 = vpop.f32.mrb[0].mxu0
        %v1547 = vadd.f32 %v1351, %v1546
        %v1548 = vpop.f32.mrb[0].mxu0
        %1549 = vmatprep.mubr.bf16.mxu0 0
        %1550 = vmatmul.mubr.bf16.gmra.mrb[0].mxu0 %v1392
        %v1551 = vpop.f32.mrb[0].mxu0
        %v1552 = vadd.f32 %v1356, %v1551
        %v1553 = vpop.f32.mrb[0].mxu0
        %v1554 = vpop.f32.mrb[0].mxu0
        %v1555 = vadd.f32 %v1359, %v1554
        %v1556 = vpop.f32.mrb[0].mxu0
        %1557 = vdwg.mxu0
        %vm1590 = vcmask 1046528
        %v1591 = vrot.slane %v912, 1
        %v1592 = vrot.slane %v913, 1
        %v1593 = vsel %vm1590, %v1591, %v1592
        %v1594 = vrot.slane %v914, 1
        %v1595 = vrot.slane %v915, 1
        %v1596 = vsel %vm1590, %v1594, %v1595
        %v1597 = vrot.slane %v916, 1
        %v1598 = vrot.slane %v917, 1
        %v1599 = vsel %vm1590, %v1597, %v1598
        %v1600 = vrot.slane %v918, 1
        %v1601 = vrot.slane %v919, 1
        %v1602 = vsel %vm1590, %v1600, %v1601
        %v1603 = vrot.slane %v920, 1
        %v1604 = vrot.slane %v921, 1
        %v1605 = vsel %vm1590, %v1603, %v1604
        %v1606 = vrot.slane %v922, 1
        %v1607 = vrot.slane %v923, 1
        %v1608 = vsel %vm1590, %v1606, %v1607
        %v1609 = vrot.slane %v924, 1
        %v1610 = vrot.slane %v925, 1
        %v1611 = vsel %vm1590, %v1609, %v1610
        %v1612 = vrot.slane %v926, 1
        %v1613 = vrot.slane %v927, 1
        %v1614 = vsel %vm1590, %v1612, %v1613
        %v1615 = vrot.slane %v928, 1
        %v1616 = vrot.slane %v929, 1
        %v1617 = vsel %vm1590, %v1615, %v1616
        %v1618 = vrot.slane %v930, 1
        %v1619 = vrot.slane %v931, 1
        %v1620 = vsel %vm1590, %v1618, %v1619
        %v1621 = vrot.slane %v932, 1
        %v1622 = vrot.slane %v933, 1
        %v1623 = vsel %vm1590, %v1621, %v1622
        %v1624 = vrot.slane %v934, 1
        %v1625 = vrot.slane %v935, 1
        %v1626 = vsel %vm1590, %v1624, %v1625
        %v1627 = vrot.slane %v936, 1
        %v1628 = vrot.slane %v937, 1
        %v1629 = vsel %vm1590, %v1627, %v1628
        %v1630 = vrot.slane %v938, 1
        %v1631 = vrot.slane %v939, 1
        %v1632 = vsel %vm1590, %v1630, %v1631
        %v1633 = vrot.slane %v940, 1
        %v1634 = vrot.slane %v941, 1
        %v1635 = vsel %vm1590, %v1633, %v1634
        %v1636 = vrot.slane %v942, 1
        %v1637 = vrot.slane %v943, 1
        %v1638 = vsel %vm1590, %v1636, %v1637
        %v1640 = vsel %vm1148, %v1593, 0
        %v1643 = vsel %vm1148, %v1596, 0
        %v1646 = vsel %vm1148, %v1599, 0
        %v1649 = vsel %vm1148, %v1602, 0
        %v1652 = vsel %vm1148, %v1605, 0
        %v1655 = vsel %vm1148, %v1608, 0
        %v1658 = vsel %vm1148, %v1611, 0
        %v1661 = vsel %vm1148, %v1614, 0
        %v1664 = vsel %vm1148, %v1617, 0
        %v1667 = vsel %vm1148, %v1620, 0
        %v1670 = vsel %vm1148, %v1623, 0
        %v1673 = vsel %vm1148, %v1626, 0
        %v1676 = vsel %vm1148, %v1629, 0
        %v1679 = vsel %vm1148, %v1632, 0
        %v1682 = vsel %vm1148, %v1635, 0
        %v1685 = vsel %vm1148, %v1638, 0
        %v1688 = vsel %vm1197, %v948, 0
        %1690 = vmatprep.subr.bf16.mxu0 0
        %1691 = vmatpush1.bf16.msra.mxu0 %v1688
        %1692 = vmatprep.subr.bf16.mxu0 0
        %1693 = vmatpush1.bf16.msra.mxu0 0
        %1694 = vmatprep.subr.bf16.mxu0 0
        %1695 = vmatpush1.bf16.msra.mxu0 0
        %1696 = vmatprep.subr.bf16.mxu0 0
        %1697 = vmatpush1.bf16.msra.mxu0 0
        %1698 = vmatprep.subr.bf16.mxu0 0
        %1699 = vmatpush1.bf16.msra.mxu0 0
        %1700 = vmatprep.subr.bf16.mxu0 0
        %1701 = vmatpush1.bf16.msra.mxu0 0
        %1702 = vmatprep.subr.bf16.mxu0 0
        %1703 = vmatpush1.bf16.msra.mxu0 0
        %1704 = vmatprep.subr.bf16.mxu0 0
        %1705 = vmatpush1.bf16.msra.mxu0 0
        %1706 = vmatprep.subr.bf16.mxu0 0
        %1707 = vmatpush1.bf16.msra.mxu0 0
        %1708 = vmatprep.subr.bf16.mxu0 0
        %1709 = vmatpush1.bf16.msra.mxu0 0
        %1710 = vmatprep.subr.bf16.mxu0 0
        %1711 = vmatpush1.bf16.msra.mxu0 0
        %1712 = vmatprep.subr.bf16.mxu0 0
        %1713 = vmatpush1.bf16.msra.mxu0 0
        %1714 = vmatprep.subr.bf16.mxu0 0
        %1715 = vmatpush1.bf16.msra.mxu0 0
        %1716 = vmatprep.subr.bf16.mxu0 0
        %1717 = vmatpush1.bf16.msra.mxu0 0
        %1718 = vmatprep.subr.bf16.mxu0 0
        %1719 = vmatpush1.bf16.msra.mxu0 0
        %1720 = vmatprep.subr.bf16.mxu0 0
        %1721 = vmatpush1.bf16.msra.mxu0 0
        %1722 = vmatprep.mubr.bf16.mxu0 0
        %1723 = vmatmul.mubr.bf16.gmra.mrb[0].mxu0 %v1640
        %v1724 = vpop.f32.mrb[0].mxu0
        %v1725 = vadd.f32 0.0, %v1724
        %v1726 = vpop.f32.mrb[0].mxu0
        %v1727 = vpop.f32.mrb[0].mxu0
        %v1728 = vadd.f32 0.0, %v1727
        %v1729 = vpop.f32.mrb[0].mxu0
        %1730 = vmatprep.mubr.bf16.mxu0 0
        %1731 = vmatmul.mubr.bf16.gmra.mrb[0].mxu0 %v1643
        %v1732 = vpop.f32.mrb[0].mxu0
        %v1733 = vadd.f32 0.0, %v1732
        %v1734 = vpop.f32.mrb[0].mxu0
        %v1735 = vpop.f32.mrb[0].mxu0
        %v1736 = vadd.f32 0.0, %v1735
        %v1737 = vpop.f32.mrb[0].mxu0
        %1738 = vmatprep.mubr.bf16.mxu0 0
        %1739 = vmatmul.mubr.bf16.gmra.mrb[0].mxu0 %v1646
        %v1740 = vpop.f32.mrb[0].mxu0
        %v1741 = vadd.f32 0.0, %v1740
        %v1742 = vpop.f32.mrb[0].mxu0
        %v1743 = vpop.f32.mrb[0].mxu0
        %v1744 = vadd.f32 0.0, %v1743
        %v1745 = vpop.f32.mrb[0].mxu0
        %1746 = vmatprep.mubr.bf16.mxu0 0
        %1747 = vmatmul.mubr.bf16.gmra.mrb[0].mxu0 %v1649
        %v1748 = vpop.f32.mrb[0].mxu0
        %v1749 = vadd.f32 0.0, %v1748
        %v1750 = vpop.f32.mrb[0].mxu0
        %v1751 = vpop.f32.mrb[0].mxu0
        %v1752 = vadd.f32 0.0, %v1751
        %v1753 = vpop.f32.mrb[0].mxu0
        %1754 = vmatprep.mubr.bf16.mxu0 0
        %1755 = vmatmul.mubr.bf16.gmra.mrb[0].mxu0 %v1652
        %v1756 = vpop.f32.mrb[0].mxu0
        %v1757 = vadd.f32 0.0, %v1756
        %v1758 = vpop.f32.mrb[0].mxu0
        %v1759 = vpop.f32.mrb[0].mxu0
        %v1760 = vadd.f32 0.0, %v1759
        %v1761 = vpop.f32.mrb[0].mxu0
        %1762 = vmatprep.mubr.bf16.mxu0 0
        %1763 = vmatmul.mubr.bf16.gmra.mrb[0].mxu0 %v1655
        %v1764 = vpop.f32.mrb[0].mxu0
        %v1765 = vadd.f32 0.0, %v1764
        %v1766 = vpop.f32.mrb[0].mxu0
        %v1767 = vpop.f32.mrb[0].mxu0
        %v1768 = vadd.f32 0.0, %v1767
        %v1769 = vpop.f32.mrb[0].mxu0
        %1770 = vmatprep.mubr.bf16.mxu0 0
        %1771 = vmatmul.mubr.bf16.gmra.mrb[0].mxu0 %v1658
        %v1772 = vpop.f32.mrb[0].mxu0
        %v1773 = vadd.f32 0.0, %v1772
        %v1774 = vpop.f32.mrb[0].mxu0
        %v1775 = vpop.f32.mrb[0].mxu0
        %v1776 = vadd.f32 0.0, %v1775
        %v1777 = vpop.f32.mrb[0].mxu0
        %1778 = vmatprep.mubr.bf16.mxu0 0
        %1779 = vmatmul.mubr.bf16.gmra.mrb[0].mxu0 %v1661
        %v1780 = vpop.f32.mrb[0].mxu0
        %v1781 = vadd.f32 0.0, %v1780
        %v1782 = vpop.f32.mrb[0].mxu0
        %v1783 = vpop.f32.mrb[0].mxu0
        %v1784 = vadd.f32 0.0, %v1783
        %v1785 = vpop.f32.mrb[0].mxu0
        %1786 = vmatprep.mubr.bf16.mxu0 0
        %1787 = vmatmul.mubr.bf16.gmra.mrb[0].mxu0 %v1664
        %v1788 = vpop.f32.mrb[0].mxu0
        %v1789 = vadd.f32 0.0, %v1788
        %v1790 = vpop.f32.mrb[0].mxu0
        %v1791 = vpop.f32.mrb[0].mxu0
        %v1792 = vadd.f32 0.0, %v1791
        %v1793 = vpop.f32.mrb[0].mxu0
        %1794 = vmatprep.mubr.bf16.mxu0 0
        %1795 = vmatmul.mubr.bf16.gmra.mrb[0].mxu0 %v1667
        %v1796 = vpop.f32.mrb[0].mxu0
        %v1797 = vadd.f32 0.0, %v1796
        %v1798 = vpop.f32.mrb[0].mxu0
        %v1799 = vpop.f32.mrb[0].mxu0
        %v1800 = vadd.f32 0.0, %v1799
        %v1801 = vpop.f32.mrb[0].mxu0
        %1802 = vmatprep.mubr.bf16.mxu0 0
        %1803 = vmatmul.mubr.bf16.gmra.mrb[0].mxu0 %v1670
        %v1804 = vpop.f32.mrb[0].mxu0
        %v1805 = vadd.f32 0.0, %v1804
        %v1806 = vpop.f32.mrb[0].mxu0
        %v1807 = vpop.f32.mrb[0].mxu0
        %v1808 = vadd.f32 0.0, %v1807
        %v1809 = vpop.f32.mrb[0].mxu0
        %1810 = vmatprep.mubr.bf16.mxu0 0
        %1811 = vmatmul.mubr.bf16.gmra.mrb[0].mxu0 %v1673
        %v1812 = vpop.f32.mrb[0].mxu0
        %v1813 = vadd.f32 0.0, %v1812
        %v1814 = vpop.f32.mrb[0].mxu0
        %v1815 = vpop.f32.mrb[0].mxu0
        %v1816 = vadd.f32 0.0, %v1815
        %v1817 = vpop.f32.mrb[0].mxu0
        %1818 = vmatprep.mubr.bf16.mxu0 0
        %1819 = vmatmul.mubr.bf16.gmra.mrb[0].mxu0 %v1676
        %v1820 = vpop.f32.mrb[0].mxu0
        %v1821 = vadd.f32 0.0, %v1820
        %v1822 = vpop.f32.mrb[0].mxu0
        %v1823 = vpop.f32.mrb[0].mxu0
        %v1824 = vadd.f32 0.0, %v1823
        %v1825 = vpop.f32.mrb[0].mxu0
        %1826 = vmatprep.mubr.bf16.mxu0 0
        %1827 = vmatmul.mubr.bf16.gmra.mrb[0].mxu0 %v1679
        %v1828 = vpop.f32.mrb[0].mxu0
        %v1829 = vadd.f32 0.0, %v1828
        %v1830 = vpop.f32.mrb[0].mxu0
        %v1831 = vpop.f32.mrb[0].mxu0
        %v1832 = vadd.f32 0.0, %v1831
        %v1833 = vpop.f32.mrb[0].mxu0
        %1834 = vmatprep.mubr.bf16.mxu0 0
        %1835 = vmatmul.mubr.bf16.gmra.mrb[0].mxu0 %v1682
        %v1836 = vpop.f32.mrb[0].mxu0
        %v1837 = vadd.f32 0.0, %v1836
        %v1838 = vpop.f32.mrb[0].mxu0
        %v1839 = vpop.f32.mrb[0].mxu0
        %v1840 = vadd.f32 0.0, %v1839
        %v1841 = vpop.f32.mrb[0].mxu0
        %1842 = vmatprep.mubr.bf16.mxu0 0
        %1843 = vmatmul.mubr.bf16.gmra.mrb[0].mxu0 %v1685
        %v1844 = vpop.f32.mrb[0].mxu0
        %v1845 = vadd.f32 0.0, %v1844
        %v1846 = vpop.f32.mrb[0].mxu0
        %v1847 = vpop.f32.mrb[0].mxu0
        %v1848 = vadd.f32 0.0, %v1847
        %v1849 = vpop.f32.mrb[0].mxu0
        %1850 = vdwg.mxu0
        %v1851 = vadd.f32 %v1432, %v1725
        %v1852 = vadd.f32 %v1435, %v1728
        %v1853 = vadd.f32 %v1440, %v1733
        %v1854 = vadd.f32 %v1443, %v1736
        %v1855 = vadd.f32 %v1448, %v1741
        %v1856 = vadd.f32 %v1451, %v1744
        %v1857 = vadd.f32 %v1456, %v1749
        %v1858 = vadd.f32 %v1459, %v1752
        %v1859 = vadd.f32 %v1464, %v1757
        %v1860 = vadd.f32 %v1467, %v1760
        %v1861 = vadd.f32 %v1472, %v1765
        %v1862 = vadd.f32 %v1475, %v1768
        %v1863 = vadd.f32 %v1480, %v1773
        %v1864 = vadd.f32 %v1483, %v1776
        %v1865 = vadd.f32 %v1488, %v1781
        %v1866 = vadd.f32 %v1491, %v1784
        %v1867 = vadd.f32 %v1496, %v1789
        %v1868 = vadd.f32 %v1499, %v1792
        %v1869 = vadd.f32 %v1504, %v1797
        %v1870 = vadd.f32 %v1507, %v1800
        %v1871 = vadd.f32 %v1512, %v1805
        %v1872 = vadd.f32 %v1515, %v1808
        %v1873 = vadd.f32 %v1520, %v1813
        %v1874 = vadd.f32 %v1523, %v1816
        %v1875 = vadd.f32 %v1528, %v1821
        %v1876 = vadd.f32 %v1531, %v1824
        %v1877 = vadd.f32 %v1536, %v1829
        %v1878 = vadd.f32 %v1539, %v1832
        %v1879 = vadd.f32 %v1544, %v1837
        %v1880 = vadd.f32 %v1547, %v1840
        %v1881 = vadd.f32 %v1552, %v1845
        %v1882 = vadd.f32 %v1555, %v1848
        %v1884 = vsel %vm1148, %v944, 0
        %v1887 = vsel %vm1197, %v949, 0
        %1889 = vmatprep.subr.bf16.mxu0 0
        %1890 = vmatpush1.bf16.msra.mxu0 %v1887
        %1891 = vmatprep.subr.bf16.mxu0 0
        %1892 = vmatpush1.bf16.msra.mxu0 0
        %1893 = vmatprep.subr.bf16.mxu0 0
        %1894 = vmatpush1.bf16.msra.mxu0 0
        %1895 = vmatprep.subr.bf16.mxu0 0
        %1896 = vmatpush1.bf16.msra.mxu0 0
        %1897 = vmatprep.subr.bf16.mxu0 0
        %1898 = vmatpush1.bf16.msra.mxu0 0
        %1899 = vmatprep.subr.bf16.mxu0 0
        %1900 = vmatpush1.bf16.msra.mxu0 0
        %1901 = vmatprep.subr.bf16.mxu0 0
        %1902 = vmatpush1.bf16.msra.mxu0 0
        %1903 = vmatprep.subr.bf16.mxu0 0
        %1904 = vmatpush1.bf16.msra.mxu0 0
        %1905 = vmatprep.subr.bf16.mxu0 0
        %1906 = vmatpush1.bf16.msra.mxu0 0
        %1907 = vmatprep.subr.bf16.mxu0 0
        %1908 = vmatpush1.bf16.msra.mxu0 0
        %1909 = vmatprep.subr.bf16.mxu0 0
        %1910 = vmatpush1.bf16.msra.mxu0 0
        %1911 = vmatprep.subr.bf16.mxu0 0
        %1912 = vmatpush1.bf16.msra.mxu0 0
        %1913 = vmatprep.subr.bf16.mxu0 0
        %1914 = vmatpush1.bf16.msra.mxu0 0
        %1915 = vmatprep.subr.bf16.mxu0 0
        %1916 = vmatpush1.bf16.msra.mxu0 0
        %1917 = vmatprep.subr.bf16.mxu0 0
        %1918 = vmatpush1.bf16.msra.mxu0 0
        %1919 = vmatprep.subr.bf16.mxu0 0
        %1920 = vmatpush1.bf16.msra.mxu0 0
        %1921 = vmatprep.mubr.bf16.mxu0 0
        %1922 = vmatmul.mubr.bf16.gmra.mrb[0].mxu0 %v1364
        %v1923 = vpop.f32.mrb[0].mxu0
        %v1924 = vadd.f32 0.0, %v1923
        %v1925 = vpop.f32.mrb[0].mxu0
        %v1926 = vpop.f32.mrb[0].mxu0
        %v1927 = vadd.f32 0.0, %v1926
        %v1928 = vpop.f32.mrb[0].mxu0
        %1929 = vmatprep.mubr.bf16.mxu0 0
        %1930 = vmatmul.mubr.bf16.gmra.mrb[0].mxu0 %v1366
        %v1931 = vpop.f32.mrb[0].mxu0
        %v1932 = vadd.f32 0.0, %v1931
        %v1933 = vpop.f32.mrb[0].mxu0
        %v1934 = vpop.f32.mrb[0].mxu0
        %v1935 = vadd.f32 0.0, %v1934
        %v1936 = vpop.f32.mrb[0].mxu0
        %1937 = vmatprep.mubr.bf16.mxu0 0
        %1938 = vmatmul.mubr.bf16.gmra.mrb[0].mxu0 %v1368
        %v1939 = vpop.f32.mrb[0].mxu0
        %v1940 = vadd.f32 0.0, %v1939
        %v1941 = vpop.f32.mrb[0].mxu0
        %v1942 = vpop.f32.mrb[0].mxu0
        %v1943 = vadd.f32 0.0, %v1942
        %v1944 = vpop.f32.mrb[0].mxu0
        %1945 = vmatprep.mubr.bf16.mxu0 0
        %1946 = vmatmul.mubr.bf16.gmra.mrb[0].mxu0 %v1370
        %v1947 = vpop.f32.mrb[0].mxu0
        %v1948 = vadd.f32 0.0, %v1947
        %v1949 = vpop.f32.mrb[0].mxu0
        %v1950 = vpop.f32.mrb[0].mxu0
        %v1951 = vadd.f32 0.0, %v1950
        %v1952 = vpop.f32.mrb[0].mxu0
        %1953 = vmatprep.mubr.bf16.mxu0 0
        %1954 = vmatmul.mubr.bf16.gmra.mrb[0].mxu0 %v1372
        %v1955 = vpop.f32.mrb[0].mxu0
        %v1956 = vadd.f32 0.0, %v1955
        %v1957 = vpop.f32.mrb[0].mxu0
        %v1958 = vpop.f32.mrb[0].mxu0
        %v1959 = vadd.f32 0.0, %v1958
        %v1960 = vpop.f32.mrb[0].mxu0
        %1961 = vmatprep.mubr.bf16.mxu0 0
        %1962 = vmatmul.mubr.bf16.gmra.mrb[0].mxu0 %v1374
        %v1963 = vpop.f32.mrb[0].mxu0
        %v1964 = vadd.f32 0.0, %v1963
        %v1965 = vpop.f32.mrb[0].mxu0
        %v1966 = vpop.f32.mrb[0].mxu0
        %v1967 = vadd.f32 0.0, %v1966
        %v1968 = vpop.f32.mrb[0].mxu0
        %1969 = vmatprep.mubr.bf16.mxu0 0
        %1970 = vmatmul.mubr.bf16.gmra.mrb[0].mxu0 %v1376
        %v1971 = vpop.f32.mrb[0].mxu0
        %v1972 = vadd.f32 0.0, %v1971
        %v1973 = vpop.f32.mrb[0].mxu0
        %v1974 = vpop.f32.mrb[0].mxu0
        %v1975 = vadd.f32 0.0, %v1974
        %v1976 = vpop.f32.mrb[0].mxu0
        %1977 = vmatprep.mubr.bf16.mxu0 0
        %1978 = vmatmul.mubr.bf16.gmra.mrb[0].mxu0 %v1378
        %v1979 = vpop.f32.mrb[0].mxu0
        %v1980 = vadd.f32 0.0, %v1979
        %v1981 = vpop.f32.mrb[0].mxu0
        %v1982 = vpop.f32.mrb[0].mxu0
        %v1983 = vadd.f32 0.0, %v1982
        %v1984 = vpop.f32.mrb[0].mxu0
        %1985 = vmatprep.mubr.bf16.mxu0 0
        %1986 = vmatmul.mubr.bf16.gmra.mrb[0].mxu0 %v1380
        %v1987 = vpop.f32.mrb[0].mxu0
        %v1988 = vadd.f32 0.0, %v1987
        %v1989 = vpop.f32.mrb[0].mxu0
        %v1990 = vpop.f32.mrb[0].mxu0
        %v1991 = vadd.f32 0.0, %v1990
        %v1992 = vpop.f32.mrb[0].mxu0
        %1993 = vmatprep.mubr.bf16.mxu0 0
        %1994 = vmatmul.mubr.bf16.gmra.mrb[0].mxu0 %v1382
        %v1995 = vpop.f32.mrb[0].mxu0
        %v1996 = vadd.f32 0.0, %v1995
        %v1997 = vpop.f32.mrb[0].mxu0
        %v1998 = vpop.f32.mrb[0].mxu0
        %v1999 = vadd.f32 0.0, %v1998
        %v2000 = vpop.f32.mrb[0].mxu0
        %2001 = vmatprep.mubr.bf16.mxu0 0
        %2002 = vmatmul.mubr.bf16.gmra.mrb[0].mxu0 %v1384
        %v2003 = vpop.f32.mrb[0].mxu0
        %v2004 = vadd.f32 0.0, %v2003
        %v2005 = vpop.f32.mrb[0].mxu0
        %v2006 = vpop.f32.mrb[0].mxu0
        %v2007 = vadd.f32 0.0, %v2006
        %v2008 = vpop.f32.mrb[0].mxu0
        %2009 = vmatprep.mubr.bf16.mxu0 0
        %2010 = vmatmul.mubr.bf16.gmra.mrb[0].mxu0 %v1386
        %v2011 = vpop.f32.mrb[0].mxu0
        %v2012 = vadd.f32 0.0, %v2011
        %v2013 = vpop.f32.mrb[0].mxu0
        %v2014 = vpop.f32.mrb[0].mxu0
        %v2015 = vadd.f32 0.0, %v2014
        %v2016 = vpop.f32.mrb[0].mxu0
        %2017 = vmatprep.mubr.bf16.mxu0 0
        %2018 = vmatmul.mubr.bf16.gmra.mrb[0].mxu0 %v1388
        %v2019 = vpop.f32.mrb[0].mxu0
        %v2020 = vadd.f32 0.0, %v2019
        %v2021 = vpop.f32.mrb[0].mxu0
        %v2022 = vpop.f32.mrb[0].mxu0
        %v2023 = vadd.f32 0.0, %v2022
        %v2024 = vpop.f32.mrb[0].mxu0
        %2025 = vmatprep.mubr.bf16.mxu0 0
        %2026 = vmatmul.mubr.bf16.gmra.mrb[0].mxu0 %v1390
        %v2027 = vpop.f32.mrb[0].mxu0
        %v2028 = vadd.f32 0.0, %v2027
        %v2029 = vpop.f32.mrb[0].mxu0
        %v2030 = vpop.f32.mrb[0].mxu0
        %v2031 = vadd.f32 0.0, %v2030
        %v2032 = vpop.f32.mrb[0].mxu0
        %2033 = vmatprep.mubr.bf16.mxu0 0
        %2034 = vmatmul.mubr.bf16.gmra.mrb[0].mxu0 %v1392
        %v2035 = vpop.f32.mrb[0].mxu0
        %v2036 = vadd.f32 0.0, %v2035
        %v2037 = vpop.f32.mrb[0].mxu0
        %v2038 = vpop.f32.mrb[0].mxu0
        %v2039 = vadd.f32 0.0, %v2038
        %v2040 = vpop.f32.mrb[0].mxu0
        %2041 = vmatprep.mubr.bf16.mxu0 0
        %2042 = vmatmul.mubr.bf16.gmra.mrb[0].mxu0 %v1884
        %v2043 = vpop.f32.mrb[0].mxu0
        %v2044 = vadd.f32 0.0, %v2043
        %v2045 = vpop.f32.mrb[0].mxu0
        %v2046 = vpop.f32.mrb[0].mxu0
        %v2047 = vadd.f32 0.0, %v2046
        %v2048 = vpop.f32.mrb[0].mxu0
        %2049 = vdwg.mxu0
        %v2050 = vadd.f32 %v1851, %v1924
        %v2051 = vadd.f32 %v1852, %v1927
        %v2052 = vadd.f32 %v1853, %v1932
        %v2053 = vadd.f32 %v1854, %v1935
        %v2054 = vadd.f32 %v1855, %v1940
        %v2055 = vadd.f32 %v1856, %v1943
        %v2056 = vadd.f32 %v1857, %v1948
        %v2057 = vadd.f32 %v1858, %v1951
        %v2058 = vadd.f32 %v1859, %v1956
        %v2059 = vadd.f32 %v1860, %v1959
        %v2060 = vadd.f32 %v1861, %v1964
        %v2061 = vadd.f32 %v1862, %v1967
        %v2062 = vadd.f32 %v1863, %v1972
        %v2063 = vadd.f32 %v1864, %v1975
        %v2064 = vadd.f32 %v1865, %v1980
        %v2065 = vadd.f32 %v1866, %v1983
        %v2066 = vadd.f32 %v1867, %v1988
        %v2067 = vadd.f32 %v1868, %v1991
        %v2068 = vadd.f32 %v1869, %v1996
        %v2069 = vadd.f32 %v1870, %v1999
        %v2070 = vadd.f32 %v1871, %v2004
        %v2071 = vadd.f32 %v1872, %v2007
        %v2072 = vadd.f32 %v1873, %v2012
        %v2073 = vadd.f32 %v1874, %v2015
        %v2074 = vadd.f32 %v1875, %v2020
        %v2075 = vadd.f32 %v1876, %v2023
        %v2076 = vadd.f32 %v1877, %v2028
        %v2077 = vadd.f32 %v1878, %v2031
        %v2078 = vadd.f32 %v1879, %v2036
        %v2079 = vadd.f32 %v1880, %v2039
        %v2080 = vadd.f32 %v1881, %v2044
        %v2081 = vadd.f32 %v1882, %v2047
        %v2082 = vshrl.u32 %v944, 16
        %v2084 = vshll.u32 %v944, 16
        %v2086 = vrot.slane %v2084, 1
        %v2087 = vor.u32 %v2082, %v2086
        %v2089 = vshll.u32 %v945, 16
        %v2091 = vrot.slane %v2089, 1
        %v2092 = vsel %vm955, %v2087, %v2091
        %v2094 = vsel %vm1148, %v2092, 0
        %v2097 = vsel %vm1197, %v950, 0
        %2099 = vmatprep.subr.bf16.mxu0 0
        %2100 = vmatpush1.bf16.msra.mxu0 %v2097
        %2101 = vmatprep.subr.bf16.mxu0 0
        %2102 = vmatpush1.bf16.msra.mxu0 0
        %2103 = vmatprep.subr.bf16.mxu0 0
        %2104 = vmatpush1.bf16.msra.mxu0 0
        %2105 = vmatprep.subr.bf16.mxu0 0
        %2106 = vmatpush1.bf16.msra.mxu0 0
        %2107 = vmatprep.subr.bf16.mxu0 0
        %2108 = vmatpush1.bf16.msra.mxu0 0
        %2109 = vmatprep.subr.bf16.mxu0 0
        %2110 = vmatpush1.bf16.msra.mxu0 0
        %2111 = vmatprep.subr.bf16.mxu0 0
        %2112 = vmatpush1.bf16.msra.mxu0 0
        %2113 = vmatprep.subr.bf16.mxu0 0
        %2114 = vmatpush1.bf16.msra.mxu0 0
        %2115 = vmatprep.subr.bf16.mxu0 0
        %2116 = vmatpush1.bf16.msra.mxu0 0
        %2117 = vmatprep.subr.bf16.mxu0 0
        %2118 = vmatpush1.bf16.msra.mxu0 0
        %2119 = vmatprep.subr.bf16.mxu0 0
        %2120 = vmatpush1.bf16.msra.mxu0 0
        %2121 = vmatprep.subr.bf16.mxu0 0
        %2122 = vmatpush1.bf16.msra.mxu0 0
        %2123 = vmatprep.subr.bf16.mxu0 0
        %2124 = vmatpush1.bf16.msra.mxu0 0
        %2125 = vmatprep.subr.bf16.mxu0 0
        %2126 = vmatpush1.bf16.msra.mxu0 0
        %2127 = vmatprep.subr.bf16.mxu0 0
        %2128 = vmatpush1.bf16.msra.mxu0 0
        %2129 = vmatprep.subr.bf16.mxu0 0
        %2130 = vmatpush1.bf16.msra.mxu0 0
        %2131 = vmatprep.mubr.bf16.mxu0 0
        %2132 = vmatmul.mubr.bf16.gmra.mrb[0].mxu0 %v1153
        %v2133 = vpop.f32.mrb[0].mxu0
        %v2134 = vadd.f32 0.0, %v2133
        %v2135 = vpop.f32.mrb[0].mxu0
        %v2136 = vpop.f32.mrb[0].mxu0
        %v2137 = vadd.f32 0.0, %v2136
        %v2138 = vpop.f32.mrb[0].mxu0
        %2139 = vmatprep.mubr.bf16.mxu0 0
        %2140 = vmatmul.mubr.bf16.gmra.mrb[0].mxu0 %v1156
        %v2141 = vpop.f32.mrb[0].mxu0
        %v2142 = vadd.f32 0.0, %v2141
        %v2143 = vpop.f32.mrb[0].mxu0
        %v2144 = vpop.f32.mrb[0].mxu0
        %v2145 = vadd.f32 0.0, %v2144
        %v2146 = vpop.f32.mrb[0].mxu0
        %2147 = vmatprep.mubr.bf16.mxu0 0
        %2148 = vmatmul.mubr.bf16.gmra.mrb[0].mxu0 %v1159
        %v2149 = vpop.f32.mrb[0].mxu0
        %v2150 = vadd.f32 0.0, %v2149
        %v2151 = vpop.f32.mrb[0].mxu0
        %v2152 = vpop.f32.mrb[0].mxu0
        %v2153 = vadd.f32 0.0, %v2152
        %v2154 = vpop.f32.mrb[0].mxu0
        %2155 = vmatprep.mubr.bf16.mxu0 0
        %2156 = vmatmul.mubr.bf16.gmra.mrb[0].mxu0 %v1162
        %v2157 = vpop.f32.mrb[0].mxu0
        %v2158 = vadd.f32 0.0, %v2157
        %v2159 = vpop.f32.mrb[0].mxu0
        %v2160 = vpop.f32.mrb[0].mxu0
        %v2161 = vadd.f32 0.0, %v2160
        %v2162 = vpop.f32.mrb[0].mxu0
        %2163 = vmatprep.mubr.bf16.mxu0 0
        %2164 = vmatmul.mubr.bf16.gmra.mrb[0].mxu0 %v1165
        %v2165 = vpop.f32.mrb[0].mxu0
        %v2166 = vadd.f32 0.0, %v2165
        %v2167 = vpop.f32.mrb[0].mxu0
        %v2168 = vpop.f32.mrb[0].mxu0
        %v2169 = vadd.f32 0.0, %v2168
        %v2170 = vpop.f32.mrb[0].mxu0
        %2171 = vmatprep.mubr.bf16.mxu0 0
        %2172 = vmatmul.mubr.bf16.gmra.mrb[0].mxu0 %v1168
        %v2173 = vpop.f32.mrb[0].mxu0
        %v2174 = vadd.f32 0.0, %v2173
        %v2175 = vpop.f32.mrb[0].mxu0
        %v2176 = vpop.f32.mrb[0].mxu0
        %v2177 = vadd.f32 0.0, %v2176
        %v2178 = vpop.f32.mrb[0].mxu0
        %2179 = vmatprep.mubr.bf16.mxu0 0
        %2180 = vmatmul.mubr.bf16.gmra.mrb[0].mxu0 %v1171
        %v2181 = vpop.f32.mrb[0].mxu0
        %v2182 = vadd.f32 0.0, %v2181
        %v2183 = vpop.f32.mrb[0].mxu0
        %v2184 = vpop.f32.mrb[0].mxu0
        %v2185 = vadd.f32 0.0, %v2184
        %v2186 = vpop.f32.mrb[0].mxu0
        %2187 = vmatprep.mubr.bf16.mxu0 0
        %2188 = vmatmul.mubr.bf16.gmra.mrb[0].mxu0 %v1174
        %v2189 = vpop.f32.mrb[0].mxu0
        %v2190 = vadd.f32 0.0, %v2189
        %v2191 = vpop.f32.mrb[0].mxu0
        %v2192 = vpop.f32.mrb[0].mxu0
        %v2193 = vadd.f32 0.0, %v2192
        %v2194 = vpop.f32.mrb[0].mxu0
        %2195 = vmatprep.mubr.bf16.mxu0 0
        %2196 = vmatmul.mubr.bf16.gmra.mrb[0].mxu0 %v1177
        %v2197 = vpop.f32.mrb[0].mxu0
        %v2198 = vadd.f32 0.0, %v2197
        %v2199 = vpop.f32.mrb[0].mxu0
        %v2200 = vpop.f32.mrb[0].mxu0
        %v2201 = vadd.f32 0.0, %v2200
        %v2202 = vpop.f32.mrb[0].mxu0
        %2203 = vmatprep.mubr.bf16.mxu0 0
        %2204 = vmatmul.mubr.bf16.gmra.mrb[0].mxu0 %v1180
        %v2205 = vpop.f32.mrb[0].mxu0
        %v2206 = vadd.f32 0.0, %v2205
        %v2207 = vpop.f32.mrb[0].mxu0
        %v2208 = vpop.f32.mrb[0].mxu0
        %v2209 = vadd.f32 0.0, %v2208
        %v2210 = vpop.f32.mrb[0].mxu0
        %2211 = vmatprep.mubr.bf16.mxu0 0
        %2212 = vmatmul.mubr.bf16.gmra.mrb[0].mxu0 %v1183
        %v2213 = vpop.f32.mrb[0].mxu0
        %v2214 = vadd.f32 0.0, %v2213
        %v2215 = vpop.f32.mrb[0].mxu0
        %v2216 = vpop.f32.mrb[0].mxu0
        %v2217 = vadd.f32 0.0, %v2216
        %v2218 = vpop.f32.mrb[0].mxu0
        %2219 = vmatprep.mubr.bf16.mxu0 0
        %2220 = vmatmul.mubr.bf16.gmra.mrb[0].mxu0 %v1186
        %v2221 = vpop.f32.mrb[0].mxu0
        %v2222 = vadd.f32 0.0, %v2221
        %v2223 = vpop.f32.mrb[0].mxu0
        %v2224 = vpop.f32.mrb[0].mxu0
        %v2225 = vadd.f32 0.0, %v2224
        %v2226 = vpop.f32.mrb[0].mxu0
        %2227 = vmatprep.mubr.bf16.mxu0 0
        %2228 = vmatmul.mubr.bf16.gmra.mrb[0].mxu0 %v1189
        %v2229 = vpop.f32.mrb[0].mxu0
        %v2230 = vadd.f32 0.0, %v2229
        %v2231 = vpop.f32.mrb[0].mxu0
        %v2232 = vpop.f32.mrb[0].mxu0
        %v2233 = vadd.f32 0.0, %v2232
        %v2234 = vpop.f32.mrb[0].mxu0
        %2235 = vmatprep.mubr.bf16.mxu0 0
        %2236 = vmatmul.mubr.bf16.gmra.mrb[0].mxu0 %v1192
        %v2237 = vpop.f32.mrb[0].mxu0
        %v2238 = vadd.f32 0.0, %v2237
        %v2239 = vpop.f32.mrb[0].mxu0
        %v2240 = vpop.f32.mrb[0].mxu0
        %v2241 = vadd.f32 0.0, %v2240
        %v2242 = vpop.f32.mrb[0].mxu0
        %2243 = vmatprep.mubr.bf16.mxu0 0
        %2244 = vmatmul.mubr.bf16.gmra.mrb[0].mxu0 %v1195
        %v2245 = vpop.f32.mrb[0].mxu0
        %v2246 = vadd.f32 0.0, %v2245
        %v2247 = vpop.f32.mrb[0].mxu0
        %v2248 = vpop.f32.mrb[0].mxu0
        %v2249 = vadd.f32 0.0, %v2248
        %v2250 = vpop.f32.mrb[0].mxu0
        %2251 = vmatprep.mubr.bf16.mxu0 0
        %2252 = vmatmul.mubr.bf16.gmra.mrb[0].mxu0 %v2094
        %v2253 = vpop.f32.mrb[0].mxu0
        %v2254 = vadd.f32 0.0, %v2253
        %v2255 = vpop.f32.mrb[0].mxu0
        %v2256 = vpop.f32.mrb[0].mxu0
        %v2257 = vadd.f32 0.0, %v2256
        %v2258 = vpop.f32.mrb[0].mxu0
        %2259 = vdwg.mxu0
        %v2260 = vadd.f32 %v2050, %v2134
        %v2261 = vadd.f32 %v2051, %v2137
        %v2262 = vadd.f32 %v2052, %v2142
        %v2263 = vadd.f32 %v2053, %v2145
        %v2264 = vadd.f32 %v2054, %v2150
        %v2265 = vadd.f32 %v2055, %v2153
        %v2266 = vadd.f32 %v2056, %v2158
        %v2267 = vadd.f32 %v2057, %v2161
        %v2268 = vadd.f32 %v2058, %v2166
        %v2269 = vadd.f32 %v2059, %v2169
        %v2270 = vadd.f32 %v2060, %v2174
        %v2271 = vadd.f32 %v2061, %v2177
        %v2272 = vadd.f32 %v2062, %v2182
        %v2273 = vadd.f32 %v2063, %v2185
        %v2274 = vadd.f32 %v2064, %v2190
        %v2275 = vadd.f32 %v2065, %v2193
        %v2276 = vadd.f32 %v2066, %v2198
        %v2277 = vadd.f32 %v2067, %v2201
        %v2278 = vadd.f32 %v2068, %v2206
        %v2279 = vadd.f32 %v2069, %v2209
        %v2280 = vadd.f32 %v2070, %v2214
        %v2281 = vadd.f32 %v2071, %v2217
        %v2282 = vadd.f32 %v2072, %v2222
        %v2283 = vadd.f32 %v2073, %v2225
        %v2284 = vadd.f32 %v2074, %v2230
        %v2285 = vadd.f32 %v2075, %v2233
        %v2286 = vadd.f32 %v2076, %v2238
        %v2287 = vadd.f32 %v2077, %v2241
        %v2288 = vadd.f32 %v2078, %v2246
        %v2289 = vadd.f32 %v2079, %v2249
        %v2290 = vadd.f32 %v2080, %v2254
        %v2291 = vadd.f32 %v2081, %v2257
        %v2294 = vrot.slane %v944, 1
        %v2295 = vrot.slane %v945, 1
        %v2296 = vsel %vm1590, %v2294, %v2295
        %v2298 = vsel %vm1148, %v2296, 0
        %v2301 = vsel %vm1197, %v951, 0
        %2303 = vmatprep.subr.bf16.mxu0 0
        %2304 = vmatpush1.bf16.msra.mxu0 %v2301
        %2305 = vmatprep.subr.bf16.mxu0 0
        %2306 = vmatpush1.bf16.msra.mxu0 0
        %2307 = vmatprep.subr.bf16.mxu0 0
        %2308 = vmatpush1.bf16.msra.mxu0 0
        %2309 = vmatprep.subr.bf16.mxu0 0
        %2310 = vmatpush1.bf16.msra.mxu0 0
        %2311 = vmatprep.subr.bf16.mxu0 0
        %2312 = vmatpush1.bf16.msra.mxu0 0
        %2313 = vmatprep.subr.bf16.mxu0 0
        %2314 = vmatpush1.bf16.msra.mxu0 0
        %2315 = vmatprep.subr.bf16.mxu0 0
        %2316 = vmatpush1.bf16.msra.mxu0 0
        %2317 = vmatprep.subr.bf16.mxu0 0
        %2318 = vmatpush1.bf16.msra.mxu0 0
        %2319 = vmatprep.subr.bf16.mxu0 0
        %2320 = vmatpush1.bf16.msra.mxu0 0
        %2321 = vmatprep.subr.bf16.mxu0 0
        %2322 = vmatpush1.bf16.msra.mxu0 0
        %2323 = vmatprep.subr.bf16.mxu0 0
        %2324 = vmatpush1.bf16.msra.mxu0 0
        %2325 = vmatprep.subr.bf16.mxu0 0
        %2326 = vmatpush1.bf16.msra.mxu0 0
        %2327 = vmatprep.subr.bf16.mxu0 0
        %2328 = vmatpush1.bf16.msra.mxu0 0
        %2329 = vmatprep.subr.bf16.mxu0 0
        %2330 = vmatpush1.bf16.msra.mxu0 0
        %2331 = vmatprep.subr.bf16.mxu0 0
        %2332 = vmatpush1.bf16.msra.mxu0 0
        %2333 = vmatprep.subr.bf16.mxu0 0
        %2334 = vmatpush1.bf16.msra.mxu0 0
        %2335 = vmatprep.mubr.bf16.mxu0 0
        %2336 = vmatmul.mubr.bf16.gmra.mrb[0].mxu0 %v1643
        %v2337 = vpop.f32.mrb[0].mxu0
        %v2338 = vadd.f32 0.0, %v2337
        %v2339 = vpop.f32.mrb[0].mxu0
        %v2340 = vpop.f32.mrb[0].mxu0
        %v2341 = vadd.f32 0.0, %v2340
        %v2342 = vpop.f32.mrb[0].mxu0
        %2343 = vmatprep.mubr.bf16.mxu0 0
        %2344 = vmatmul.mubr.bf16.gmra.mrb[0].mxu0 %v1646
        %v2345 = vpop.f32.mrb[0].mxu0
        %v2346 = vadd.f32 0.0, %v2345
        %v2347 = vpop.f32.mrb[0].mxu0
        %v2348 = vpop.f32.mrb[0].mxu0
        %v2349 = vadd.f32 0.0, %v2348
        %v2350 = vpop.f32.mrb[0].mxu0
        %2351 = vmatprep.mubr.bf16.mxu0 0
        %2352 = vmatmul.mubr.bf16.gmra.mrb[0].mxu0 %v1649
        %v2353 = vpop.f32.mrb[0].mxu0
        %v2354 = vadd.f32 0.0, %v2353
        %v2355 = vpop.f32.mrb[0].mxu0
        %v2356 = vpop.f32.mrb[0].mxu0
        %v2357 = vadd.f32 0.0, %v2356
        %v2358 = vpop.f32.mrb[0].mxu0
        %2359 = vmatprep.mubr.bf16.mxu0 0
        %2360 = vmatmul.mubr.bf16.gmra.mrb[0].mxu0 %v1652
        %v2361 = vpop.f32.mrb[0].mxu0
        %v2362 = vadd.f32 0.0, %v2361
        %v2363 = vpop.f32.mrb[0].mxu0
        %v2364 = vpop.f32.mrb[0].mxu0
        %v2365 = vadd.f32 0.0, %v2364
        %v2366 = vpop.f32.mrb[0].mxu0
        %2367 = vmatprep.mubr.bf16.mxu0 0
        %2368 = vmatmul.mubr.bf16.gmra.mrb[0].mxu0 %v1655
        %v2369 = vpop.f32.mrb[0].mxu0
        %v2370 = vadd.f32 0.0, %v2369
        %v2371 = vpop.f32.mrb[0].mxu0
        %v2372 = vpop.f32.mrb[0].mxu0
        %v2373 = vadd.f32 0.0, %v2372
        %v2374 = vpop.f32.mrb[0].mxu0
        %2375 = vmatprep.mubr.bf16.mxu0 0
        %2376 = vmatmul.mubr.bf16.gmra.mrb[0].mxu0 %v1658
        %v2377 = vpop.f32.mrb[0].mxu0
        %v2378 = vadd.f32 0.0, %v2377
        %v2379 = vpop.f32.mrb[0].mxu0
        %v2380 = vpop.f32.mrb[0].mxu0
        %v2381 = vadd.f32 0.0, %v2380
        %v2382 = vpop.f32.mrb[0].mxu0
        %2383 = vmatprep.mubr.bf16.mxu0 0
        %2384 = vmatmul.mubr.bf16.gmra.mrb[0].mxu0 %v1661
        %v2385 = vpop.f32.mrb[0].mxu0
        %v2386 = vadd.f32 0.0, %v2385
        %v2387 = vpop.f32.mrb[0].mxu0
        %v2388 = vpop.f32.mrb[0].mxu0
        %v2389 = vadd.f32 0.0, %v2388
        %v2390 = vpop.f32.mrb[0].mxu0
        %2391 = vmatprep.mubr.bf16.mxu0 0
        %2392 = vmatmul.mubr.bf16.gmra.mrb[0].mxu0 %v1664
        %v2393 = vpop.f32.mrb[0].mxu0
        %v2394 = vadd.f32 0.0, %v2393
        %v2395 = vpop.f32.mrb[0].mxu0
        %v2396 = vpop.f32.mrb[0].mxu0
        %v2397 = vadd.f32 0.0, %v2396
        %v2398 = vpop.f32.mrb[0].mxu0
        %2399 = vmatprep.mubr.bf16.mxu0 0
        %2400 = vmatmul.mubr.bf16.gmra.mrb[0].mxu0 %v1667
        %v2401 = vpop.f32.mrb[0].mxu0
        %v2402 = vadd.f32 0.0, %v2401
        %v2403 = vpop.f32.mrb[0].mxu0
        %v2404 = vpop.f32.mrb[0].mxu0
        %v2405 = vadd.f32 0.0, %v2404
        %v2406 = vpop.f32.mrb[0].mxu0
        %2407 = vmatprep.mubr.bf16.mxu0 0
        %2408 = vmatmul.mubr.bf16.gmra.mrb[0].mxu0 %v1670
        %v2409 = vpop.f32.mrb[0].mxu0
        %v2410 = vadd.f32 0.0, %v2409
        %v2411 = vpop.f32.mrb[0].mxu0
        %v2412 = vpop.f32.mrb[0].mxu0
        %v2413 = vadd.f32 0.0, %v2412
        %v2414 = vpop.f32.mrb[0].mxu0
        %2415 = vmatprep.mubr.bf16.mxu0 0
        %2416 = vmatmul.mubr.bf16.gmra.mrb[0].mxu0 %v1673
        %v2417 = vpop.f32.mrb[0].mxu0
        %v2418 = vadd.f32 0.0, %v2417
        %v2419 = vpop.f32.mrb[0].mxu0
        %v2420 = vpop.f32.mrb[0].mxu0
        %v2421 = vadd.f32 0.0, %v2420
        %v2422 = vpop.f32.mrb[0].mxu0
        %2423 = vmatprep.mubr.bf16.mxu0 0
        %2424 = vmatmul.mubr.bf16.gmra.mrb[0].mxu0 %v1676
        %v2425 = vpop.f32.mrb[0].mxu0
        %v2426 = vadd.f32 0.0, %v2425
        %v2427 = vpop.f32.mrb[0].mxu0
        %v2428 = vpop.f32.mrb[0].mxu0
        %v2429 = vadd.f32 0.0, %v2428
        %v2430 = vpop.f32.mrb[0].mxu0
        %2431 = vmatprep.mubr.bf16.mxu0 0
        %2432 = vmatmul.mubr.bf16.gmra.mrb[0].mxu0 %v1679
        %v2433 = vpop.f32.mrb[0].mxu0
        %v2434 = vadd.f32 0.0, %v2433
        %v2435 = vpop.f32.mrb[0].mxu0
        %v2436 = vpop.f32.mrb[0].mxu0
        %v2437 = vadd.f32 0.0, %v2436
        %v2438 = vpop.f32.mrb[0].mxu0
        %2439 = vmatprep.mubr.bf16.mxu0 0
        %2440 = vmatmul.mubr.bf16.gmra.mrb[0].mxu0 %v1682
        %v2441 = vpop.f32.mrb[0].mxu0
        %v2442 = vadd.f32 0.0, %v2441
        %v2443 = vpop.f32.mrb[0].mxu0
        %v2444 = vpop.f32.mrb[0].mxu0
        %v2445 = vadd.f32 0.0, %v2444
        %v2446 = vpop.f32.mrb[0].mxu0
        %2447 = vmatprep.mubr.bf16.mxu0 0
        %2448 = vmatmul.mubr.bf16.gmra.mrb[0].mxu0 %v1685
        %v2449 = vpop.f32.mrb[0].mxu0
        %v2450 = vadd.f32 0.0, %v2449
        %v2451 = vpop.f32.mrb[0].mxu0
        %v2452 = vpop.f32.mrb[0].mxu0
        %v2453 = vadd.f32 0.0, %v2452
        %v2454 = vpop.f32.mrb[0].mxu0
        %2455 = vmatprep.mubr.bf16.mxu0 0
        %2456 = vmatmul.mubr.bf16.gmra.mrb[0].mxu0 %v2298
        %v2457 = vpop.f32.mrb[0].mxu0
        %v2458 = vadd.f32 0.0, %v2457
        %v2459 = vpop.f32.mrb[0].mxu0
        %v2460 = vpop.f32.mrb[0].mxu0
        %v2461 = vadd.f32 0.0, %v2460
        %v2462 = vpop.f32.mrb[0].mxu0
        %2463 = vdwg.mxu0
        %v2464 = vadd.f32 %v2260, %v2338
        %v2465 = vadd.f32 %v2261, %v2341
        %v2466 = vadd.f32 %v2262, %v2346
        %v2467 = vadd.f32 %v2263, %v2349
        %v2468 = vadd.f32 %v2264, %v2354
        %v2469 = vadd.f32 %v2265, %v2357
        %v2470 = vadd.f32 %v2266, %v2362
        %v2471 = vadd.f32 %v2267, %v2365
        %v2472 = vadd.f32 %v2268, %v2370
        %v2473 = vadd.f32 %v2269, %v2373
        %v2474 = vadd.f32 %v2270, %v2378
        %v2475 = vadd.f32 %v2271, %v2381
        %v2476 = vadd.f32 %v2272, %v2386
        %v2477 = vadd.f32 %v2273, %v2389
        %v2478 = vadd.f32 %v2274, %v2394
        %v2479 = vadd.f32 %v2275, %v2397
        %v2480 = vadd.f32 %v2276, %v2402
        %v2481 = vadd.f32 %v2277, %v2405
        %v2482 = vadd.f32 %v2278, %v2410
        %v2483 = vadd.f32 %v2279, %v2413
        %v2484 = vadd.f32 %v2280, %v2418
        %v2485 = vadd.f32 %v2281, %v2421
        %v2486 = vadd.f32 %v2282, %v2426
        %v2487 = vadd.f32 %v2283, %v2429
        %v2488 = vadd.f32 %v2284, %v2434
        %v2489 = vadd.f32 %v2285, %v2437
        %v2490 = vadd.f32 %v2286, %v2442
        %v2491 = vadd.f32 %v2287, %v2445
        %v2492 = vadd.f32 %v2288, %v2450
        %v2493 = vadd.f32 %v2289, %v2453
        %v2494 = vadd.f32 %v2290, %v2458
        %v2495 = vadd.f32 %v2291, %v2461
        %v2497 = vsel %vm1197, %v952, 0
        %2499 = vmatprep.subr.bf16.mxu0 0
        %2500 = vmatpush1.bf16.msra.mxu0 %v2497
        %2501 = vmatprep.subr.bf16.mxu0 0
        %2502 = vmatpush1.bf16.msra.mxu0 0
        %2503 = vmatprep.subr.bf16.mxu0 0
        %2504 = vmatpush1.bf16.msra.mxu0 0
        %2505 = vmatprep.subr.bf16.mxu0 0
        %2506 = vmatpush1.bf16.msra.mxu0 0
        %2507 = vmatprep.subr.bf16.mxu0 0
        %2508 = vmatpush1.bf16.msra.mxu0 0
        %2509 = vmatprep.subr.bf16.mxu0 0
        %2510 = vmatpush1.bf16.msra.mxu0 0
        %2511 = vmatprep.subr.bf16.mxu0 0
        %2512 = vmatpush1.bf16.msra.mxu0 0
        %2513 = vmatprep.subr.bf16.mxu0 0
        %2514 = vmatpush1.bf16.msra.mxu0 0
        %2515 = vmatprep.subr.bf16.mxu0 0
        %2516 = vmatpush1.bf16.msra.mxu0 0
        %2517 = vmatprep.subr.bf16.mxu0 0
        %2518 = vmatpush1.bf16.msra.mxu0 0
        %2519 = vmatprep.subr.bf16.mxu0 0
        %2520 = vmatpush1.bf16.msra.mxu0 0
        %2521 = vmatprep.subr.bf16.mxu0 0
        %2522 = vmatpush1.bf16.msra.mxu0 0
        %2523 = vmatprep.subr.bf16.mxu0 0
        %2524 = vmatpush1.bf16.msra.mxu0 0
        %2525 = vmatprep.subr.bf16.mxu0 0
        %2526 = vmatpush1.bf16.msra.mxu0 0
        %2527 = vmatprep.subr.bf16.mxu0 0
        %2528 = vmatpush1.bf16.msra.mxu0 0
        %2529 = vmatprep.subr.bf16.mxu0 0
        %2530 = vmatpush1.bf16.msra.mxu0 0
        %2531 = vmatprep.mubr.bf16.mxu0 0
        %2532 = vmatmul.mubr.bf16.gmra.mrb[0].mxu0 %v1366
        %v2533 = vpop.f32.mrb[0].mxu0
        %v2534 = vadd.f32 0.0, %v2533
        %v2535 = vpop.f32.mrb[0].mxu0
        %v2536 = vpop.f32.mrb[0].mxu0
        %v2537 = vadd.f32 0.0, %v2536
        %v2538 = vpop.f32.mrb[0].mxu0
        %2539 = vmatprep.mubr.bf16.mxu0 0
        %2540 = vmatmul.mubr.bf16.gmra.mrb[0].mxu0 %v1368
        %v2541 = vpop.f32.mrb[0].mxu0
        %v2542 = vadd.f32 0.0, %v2541
        %v2543 = vpop.f32.mrb[0].mxu0
        %v2544 = vpop.f32.mrb[0].mxu0
        %v2545 = vadd.f32 0.0, %v2544
        %v2546 = vpop.f32.mrb[0].mxu0
        %2547 = vmatprep.mubr.bf16.mxu0 0
        %2548 = vmatmul.mubr.bf16.gmra.mrb[0].mxu0 %v1370
        %v2549 = vpop.f32.mrb[0].mxu0
        %v2550 = vadd.f32 0.0, %v2549
        %v2551 = vpop.f32.mrb[0].mxu0
        %v2552 = vpop.f32.mrb[0].mxu0
        %v2553 = vadd.f32 0.0, %v2552
        %v2554 = vpop.f32.mrb[0].mxu0
        %2555 = vmatprep.mubr.bf16.mxu0 0
        %2556 = vmatmul.mubr.bf16.gmra.mrb[0].mxu0 %v1372
        %v2557 = vpop.f32.mrb[0].mxu0
        %v2558 = vadd.f32 0.0, %v2557
        %v2559 = vpop.f32.mrb[0].mxu0
        %v2560 = vpop.f32.mrb[0].mxu0
        %v2561 = vadd.f32 0.0, %v2560
        %v2562 = vpop.f32.mrb[0].mxu0
        %2563 = vmatprep.mubr.bf16.mxu0 0
        %2564 = vmatmul.mubr.bf16.gmra.mrb[0].mxu0 %v1374
        %v2565 = vpop.f32.mrb[0].mxu0
        %v2566 = vadd.f32 0.0, %v2565
        %v2567 = vpop.f32.mrb[0].mxu0
        %v2568 = vpop.f32.mrb[0].mxu0
        %v2569 = vadd.f32 0.0, %v2568
        %v2570 = vpop.f32.mrb[0].mxu0
        %2571 = vmatprep.mubr.bf16.mxu0 0
        %2572 = vmatmul.mubr.bf16.gmra.mrb[0].mxu0 %v1376
        %v2573 = vpop.f32.mrb[0].mxu0
        %v2574 = vadd.f32 0.0, %v2573
        %v2575 = vpop.f32.mrb[0].mxu0
        %v2576 = vpop.f32.mrb[0].mxu0
        %v2577 = vadd.f32 0.0, %v2576
        %v2578 = vpop.f32.mrb[0].mxu0
        %2579 = vmatprep.mubr.bf16.mxu0 0
        %2580 = vmatmul.mubr.bf16.gmra.mrb[0].mxu0 %v1378
        %v2581 = vpop.f32.mrb[0].mxu0
        %v2582 = vadd.f32 0.0, %v2581
        %v2583 = vpop.f32.mrb[0].mxu0
        %v2584 = vpop.f32.mrb[0].mxu0
        %v2585 = vadd.f32 0.0, %v2584
        %v2586 = vpop.f32.mrb[0].mxu0
        %2587 = vmatprep.mubr.bf16.mxu0 0
        %2588 = vmatmul.mubr.bf16.gmra.mrb[0].mxu0 %v1380
        %v2589 = vpop.f32.mrb[0].mxu0
        %v2590 = vadd.f32 0.0, %v2589
        %v2591 = vpop.f32.mrb[0].mxu0
        %v2592 = vpop.f32.mrb[0].mxu0
        %v2593 = vadd.f32 0.0, %v2592
        %v2594 = vpop.f32.mrb[0].mxu0
        %2595 = vmatprep.mubr.bf16.mxu0 0
        %2596 = vmatmul.mubr.bf16.gmra.mrb[0].mxu0 %v1382
        %v2597 = vpop.f32.mrb[0].mxu0
        %v2598 = vadd.f32 0.0, %v2597
        %v2599 = vpop.f32.mrb[0].mxu0
        %v2600 = vpop.f32.mrb[0].mxu0
        %v2601 = vadd.f32 0.0, %v2600
        %v2602 = vpop.f32.mrb[0].mxu0
        %2603 = vmatprep.mubr.bf16.mxu0 0
        %2604 = vmatmul.mubr.bf16.gmra.mrb[0].mxu0 %v1384
        %v2605 = vpop.f32.mrb[0].mxu0
        %v2606 = vadd.f32 0.0, %v2605
        %v2607 = vpop.f32.mrb[0].mxu0
        %v2608 = vpop.f32.mrb[0].mxu0
        %v2609 = vadd.f32 0.0, %v2608
        %v2610 = vpop.f32.mrb[0].mxu0
        %2611 = vmatprep.mubr.bf16.mxu0 0
        %2612 = vmatmul.mubr.bf16.gmra.mrb[0].mxu0 %v1386
        %v2613 = vpop.f32.mrb[0].mxu0
        %v2614 = vadd.f32 0.0, %v2613
        %v2615 = vpop.f32.mrb[0].mxu0
        %v2616 = vpop.f32.mrb[0].mxu0
        %v2617 = vadd.f32 0.0, %v2616
        %v2618 = vpop.f32.mrb[0].mxu0
        %2619 = vmatprep.mubr.bf16.mxu0 0
        %2620 = vmatmul.mubr.bf16.gmra.mrb[0].mxu0 %v1388
        %v2621 = vpop.f32.mrb[0].mxu0
        %v2622 = vadd.f32 0.0, %v2621
        %v2623 = vpop.f32.mrb[0].mxu0
        %v2624 = vpop.f32.mrb[0].mxu0
        %v2625 = vadd.f32 0.0, %v2624
        %v2626 = vpop.f32.mrb[0].mxu0
        %2627 = vmatprep.mubr.bf16.mxu0 0
        %2628 = vmatmul.mubr.bf16.gmra.mrb[0].mxu0 %v1390
        %v2629 = vpop.f32.mrb[0].mxu0
        %v2630 = vadd.f32 0.0, %v2629
        %v2631 = vpop.f32.mrb[0].mxu0
        %v2632 = vpop.f32.mrb[0].mxu0
        %v2633 = vadd.f32 0.0, %v2632
        %v2634 = vpop.f32.mrb[0].mxu0
        %2635 = vmatprep.mubr.bf16.mxu0 0
        %2636 = vmatmul.mubr.bf16.gmra.mrb[0].mxu0 %v1392
        %v2637 = vpop.f32.mrb[0].mxu0
        %v2638 = vadd.f32 0.0, %v2637
        %v2639 = vpop.f32.mrb[0].mxu0
        %v2640 = vpop.f32.mrb[0].mxu0
        %v2641 = vadd.f32 0.0, %v2640
        %v2642 = vpop.f32.mrb[0].mxu0
        %2643 = vmatprep.mubr.bf16.mxu0 0
        %2644 = vmatmul.mubr.bf16.gmra.mrb[0].mxu0 %v1884
        %v2645 = vpop.f32.mrb[0].mxu0
        %v2646 = vadd.f32 0.0, %v2645
        %v2647 = vpop.f32.mrb[0].mxu0
        %v2648 = vpop.f32.mrb[0].mxu0
        %v2649 = vadd.f32 0.0, %v2648
        %v2650 = vpop.f32.mrb[0].mxu0
        %2651 = vmatprep.mubr.bf16.mxu0 0
        %2652 = vmatmul.mubr.bf16.gmra.mrb[0].mxu0 %v1362
        %v2653 = vpop.f32.mrb[0].mxu0
        %v2654 = vadd.f32 0.0, %v2653
        %v2655 = vpop.f32.mrb[0].mxu0
        %v2656 = vpop.f32.mrb[0].mxu0
        %v2657 = vadd.f32 0.0, %v2656
        %v2658 = vpop.f32.mrb[0].mxu0
        %2659 = vdwg.mxu0
        %v2660 = vadd.f32 %v2464, %v2534
        %v2661 = vadd.f32 %v2465, %v2537
        %v2662 = vadd.f32 %v2466, %v2542
        %v2663 = vadd.f32 %v2467, %v2545
        %v2664 = vadd.f32 %v2468, %v2550
        %v2665 = vadd.f32 %v2469, %v2553
        %v2666 = vadd.f32 %v2470, %v2558
        %v2667 = vadd.f32 %v2471, %v2561
        %v2668 = vadd.f32 %v2472, %v2566
        %v2669 = vadd.f32 %v2473, %v2569
        %v2670 = vadd.f32 %v2474, %v2574
        %v2671 = vadd.f32 %v2475, %v2577
        %v2672 = vadd.f32 %v2476, %v2582
        %v2673 = vadd.f32 %v2477, %v2585
        %v2674 = vadd.f32 %v2478, %v2590
        %v2675 = vadd.f32 %v2479, %v2593
        %v2676 = vadd.f32 %v2480, %v2598
        %v2677 = vadd.f32 %v2481, %v2601
        %v2678 = vadd.f32 %v2482, %v2606
        %v2679 = vadd.f32 %v2483, %v2609
        %v2680 = vadd.f32 %v2484, %v2614
        %v2681 = vadd.f32 %v2485, %v2617
        %v2682 = vadd.f32 %v2486, %v2622
        %v2683 = vadd.f32 %v2487, %v2625
        %v2684 = vadd.f32 %v2488, %v2630
        %v2685 = vadd.f32 %v2489, %v2633
        %v2686 = vadd.f32 %v2490, %v2638
        %v2687 = vadd.f32 %v2491, %v2641
        %v2688 = vadd.f32 %v2492, %v2646
        %v2689 = vadd.f32 %v2493, %v2649
        %v2690 = vadd.f32 %v2494, %v2654
        %v2691 = vadd.f32 %v2495, %v2657
        %v2693 = vsel %vm1197, %v953, 0
        %2695 = vmatprep.subr.bf16.mxu0 0
        %2696 = vmatpush1.bf16.msra.mxu0 %v2693
        %2697 = vmatprep.subr.bf16.mxu0 0
        %2698 = vmatpush1.bf16.msra.mxu0 0
        %2699 = vmatprep.subr.bf16.mxu0 0
        %2700 = vmatpush1.bf16.msra.mxu0 0
        %2701 = vmatprep.subr.bf16.mxu0 0
        %2702 = vmatpush1.bf16.msra.mxu0 0
        %2703 = vmatprep.subr.bf16.mxu0 0
        %2704 = vmatpush1.bf16.msra.mxu0 0
        %2705 = vmatprep.subr.bf16.mxu0 0
        %2706 = vmatpush1.bf16.msra.mxu0 0
        %2707 = vmatprep.subr.bf16.mxu0 0
        %2708 = vmatpush1.bf16.msra.mxu0 0
        %2709 = vmatprep.subr.bf16.mxu0 0
        %2710 = vmatpush1.bf16.msra.mxu0 0
        %2711 = vmatprep.subr.bf16.mxu0 0
        %2712 = vmatpush1.bf16.msra.mxu0 0
        %2713 = vmatprep.subr.bf16.mxu0 0
        %2714 = vmatpush1.bf16.msra.mxu0 0
        %2715 = vmatprep.subr.bf16.mxu0 0
        %2716 = vmatpush1.bf16.msra.mxu0 0
        %2717 = vmatprep.subr.bf16.mxu0 0
        %2718 = vmatpush1.bf16.msra.mxu0 0
        %2719 = vmatprep.subr.bf16.mxu0 0
        %2720 = vmatpush1.bf16.msra.mxu0 0
        %2721 = vmatprep.subr.bf16.mxu0 0
        %2722 = vmatpush1.bf16.msra.mxu0 0
        %2723 = vmatprep.subr.bf16.mxu0 0
        %2724 = vmatpush1.bf16.msra.mxu0 0
        %2725 = vmatprep.subr.bf16.mxu0 0
        %2726 = vmatpush1.bf16.msra.mxu0 0
        %2727 = vmatprep.mubr.bf16.mxu0 0
        %2728 = vmatmul.mubr.bf16.gmra.mrb[0].mxu0 %v1156
        %v2729 = vpop.f32.mrb[0].mxu0
        %v2730 = vadd.f32 0.0, %v2729
        %v2731 = vpop.f32.mrb[0].mxu0
        %v2732 = vpop.f32.mrb[0].mxu0
        %v2733 = vadd.f32 0.0, %v2732
        %v2734 = vpop.f32.mrb[0].mxu0
        %2735 = vmatprep.mubr.bf16.mxu0 0
        %2736 = vmatmul.mubr.bf16.gmra.mrb[0].mxu0 %v1159
        %v2737 = vpop.f32.mrb[0].mxu0
        %v2738 = vadd.f32 0.0, %v2737
        %v2739 = vpop.f32.mrb[0].mxu0
        %v2740 = vpop.f32.mrb[0].mxu0
        %v2741 = vadd.f32 0.0, %v2740
        %v2742 = vpop.f32.mrb[0].mxu0
        %2743 = vmatprep.mubr.bf16.mxu0 0
        %2744 = vmatmul.mubr.bf16.gmra.mrb[0].mxu0 %v1162
        %v2745 = vpop.f32.mrb[0].mxu0
        %v2746 = vadd.f32 0.0, %v2745
        %v2747 = vpop.f32.mrb[0].mxu0
        %v2748 = vpop.f32.mrb[0].mxu0
        %v2749 = vadd.f32 0.0, %v2748
        %v2750 = vpop.f32.mrb[0].mxu0
        %2751 = vmatprep.mubr.bf16.mxu0 0
        %2752 = vmatmul.mubr.bf16.gmra.mrb[0].mxu0 %v1165
        %v2753 = vpop.f32.mrb[0].mxu0
        %v2754 = vadd.f32 0.0, %v2753
        %v2755 = vpop.f32.mrb[0].mxu0
        %v2756 = vpop.f32.mrb[0].mxu0
        %v2757 = vadd.f32 0.0, %v2756
        %v2758 = vpop.f32.mrb[0].mxu0
        %2759 = vmatprep.mubr.bf16.mxu0 0
        %2760 = vmatmul.mubr.bf16.gmra.mrb[0].mxu0 %v1168
        %v2761 = vpop.f32.mrb[0].mxu0
        %v2762 = vadd.f32 0.0, %v2761
        %v2763 = vpop.f32.mrb[0].mxu0
        %v2764 = vpop.f32.mrb[0].mxu0
        %v2765 = vadd.f32 0.0, %v2764
        %v2766 = vpop.f32.mrb[0].mxu0
        %2767 = vmatprep.mubr.bf16.mxu0 0
        %2768 = vmatmul.mubr.bf16.gmra.mrb[0].mxu0 %v1171
        %v2769 = vpop.f32.mrb[0].mxu0
        %v2770 = vadd.f32 0.0, %v2769
        %v2771 = vpop.f32.mrb[0].mxu0
        %v2772 = vpop.f32.mrb[0].mxu0
        %v2773 = vadd.f32 0.0, %v2772
        %v2774 = vpop.f32.mrb[0].mxu0
        %2775 = vmatprep.mubr.bf16.mxu0 0
        %2776 = vmatmul.mubr.bf16.gmra.mrb[0].mxu0 %v1174
        %v2777 = vpop.f32.mrb[0].mxu0
        %v2778 = vadd.f32 0.0, %v2777
        %v2779 = vpop.f32.mrb[0].mxu0
        %v2780 = vpop.f32.mrb[0].mxu0
        %v2781 = vadd.f32 0.0, %v2780
        %v2782 = vpop.f32.mrb[0].mxu0
        %2783 = vmatprep.mubr.bf16.mxu0 0
        %2784 = vmatmul.mubr.bf16.gmra.mrb[0].mxu0 %v1177
        %v2785 = vpop.f32.mrb[0].mxu0
        %v2786 = vadd.f32 0.0, %v2785
        %v2787 = vpop.f32.mrb[0].mxu0
        %v2788 = vpop.f32.mrb[0].mxu0
        %v2789 = vadd.f32 0.0, %v2788
        %v2790 = vpop.f32.mrb[0].mxu0
        %2791 = vmatprep.mubr.bf16.mxu0 0
        %2792 = vmatmul.mubr.bf16.gmra.mrb[0].mxu0 %v1180
        %v2793 = vpop.f32.mrb[0].mxu0
        %v2794 = vadd.f32 0.0, %v2793
        %v2795 = vpop.f32.mrb[0].mxu0
        %v2796 = vpop.f32.mrb[0].mxu0
        %v2797 = vadd.f32 0.0, %v2796
        %v2798 = vpop.f32.mrb[0].mxu0
        %2799 = vmatprep.mubr.bf16.mxu0 0
        %2800 = vmatmul.mubr.bf16.gmra.mrb[0].mxu0 %v1183
        %v2801 = vpop.f32.mrb[0].mxu0
        %v2802 = vadd.f32 0.0, %v2801
        %v2803 = vpop.f32.mrb[0].mxu0
        %v2804 = vpop.f32.mrb[0].mxu0
        %v2805 = vadd.f32 0.0, %v2804
        %v2806 = vpop.f32.mrb[0].mxu0
        %2807 = vmatprep.mubr.bf16.mxu0 0
        %2808 = vmatmul.mubr.bf16.gmra.mrb[0].mxu0 %v1186
        %v2809 = vpop.f32.mrb[0].mxu0
        %v2810 = vadd.f32 0.0, %v2809
        %v2811 = vpop.f32.mrb[0].mxu0
        %v2812 = vpop.f32.mrb[0].mxu0
        %v2813 = vadd.f32 0.0, %v2812
        %v2814 = vpop.f32.mrb[0].mxu0
        %2815 = vmatprep.mubr.bf16.mxu0 0
        %2816 = vmatmul.mubr.bf16.gmra.mrb[0].mxu0 %v1189
        %v2817 = vpop.f32.mrb[0].mxu0
        %v2818 = vadd.f32 0.0, %v2817
        %v2819 = vpop.f32.mrb[0].mxu0
        %v2820 = vpop.f32.mrb[0].mxu0
        %v2821 = vadd.f32 0.0, %v2820
        %v2822 = vpop.f32.mrb[0].mxu0
        %2823 = vmatprep.mubr.bf16.mxu0 0
        %2824 = vmatmul.mubr.bf16.gmra.mrb[0].mxu0 %v1192
        %v2825 = vpop.f32.mrb[0].mxu0
        %v2826 = vadd.f32 0.0, %v2825
        %v2827 = vpop.f32.mrb[0].mxu0
        %v2828 = vpop.f32.mrb[0].mxu0
        %v2829 = vadd.f32 0.0, %v2828
        %v2830 = vpop.f32.mrb[0].mxu0
        %2831 = vmatprep.mubr.bf16.mxu0 0
        %2832 = vmatmul.mubr.bf16.gmra.mrb[0].mxu0 %v1195
        %v2833 = vpop.f32.mrb[0].mxu0
        %v2834 = vadd.f32 0.0, %v2833
        %v2835 = vpop.f32.mrb[0].mxu0
        %v2836 = vpop.f32.mrb[0].mxu0
        %v2837 = vadd.f32 0.0, %v2836
        %v2838 = vpop.f32.mrb[0].mxu0
        %2839 = vmatprep.mubr.bf16.mxu0 0
        %2840 = vmatmul.mubr.bf16.gmra.mrb[0].mxu0 %v2094
        %v2841 = vpop.f32.mrb[0].mxu0
        %v2842 = vadd.f32 0.0, %v2841
        %v2843 = vpop.f32.mrb[0].mxu0
        %v2844 = vpop.f32.mrb[0].mxu0
        %v2845 = vadd.f32 0.0, %v2844
        %v2846 = vpop.f32.mrb[0].mxu0
        %2847 = vmatprep.mubr.bf16.mxu0 0
        %2848 = vmatmul.mubr.bf16.gmra.mrb[0].mxu0 %v1150
        %v2849 = vpop.f32.mrb[0].mxu0
        %v2850 = vadd.f32 0.0, %v2849
        %v2851 = vpop.f32.mrb[0].mxu0
        %v2852 = vpop.f32.mrb[0].mxu0
        %v2853 = vadd.f32 0.0, %v2852
        %v2854 = vpop.f32.mrb[0].mxu0
        %2855 = vdwg.mxu0
        %v2856 = vadd.f32 %v2660, %v2730
        %v2857 = vadd.f32 %v2661, %v2733
        %v2858 = vadd.f32 %v2662, %v2738
        %v2859 = vadd.f32 %v2663, %v2741
        %v2860 = vadd.f32 %v2664, %v2746
        %v2861 = vadd.f32 %v2665, %v2749
        %v2862 = vadd.f32 %v2666, %v2754
        %v2863 = vadd.f32 %v2667, %v2757
        %v2864 = vadd.f32 %v2668, %v2762
        %v2865 = vadd.f32 %v2669, %v2765
        %v2866 = vadd.f32 %v2670, %v2770
        %v2867 = vadd.f32 %v2671, %v2773
        %v2868 = vadd.f32 %v2672, %v2778
        %v2869 = vadd.f32 %v2673, %v2781
        %v2870 = vadd.f32 %v2674, %v2786
        %v2871 = vadd.f32 %v2675, %v2789
        %v2872 = vadd.f32 %v2676, %v2794
        %v2873 = vadd.f32 %v2677, %v2797
        %v2874 = vadd.f32 %v2678, %v2802
        %v2875 = vadd.f32 %v2679, %v2805
        %v2876 = vadd.f32 %v2680, %v2810
        %v2877 = vadd.f32 %v2681, %v2813
        %v2878 = vadd.f32 %v2682, %v2818
        %v2879 = vadd.f32 %v2683, %v2821
        %v2880 = vadd.f32 %v2684, %v2826
        %v2881 = vadd.f32 %v2685, %v2829
        %v2882 = vadd.f32 %v2686, %v2834
        %v2883 = vadd.f32 %v2687, %v2837
        %v2884 = vadd.f32 %v2688, %v2842
        %v2885 = vadd.f32 %v2689, %v2845
        %v2886 = vadd.f32 %v2690, %v2850
        %v2887 = vadd.f32 %v2691, %v2853
        %v2889 = vsel %vm1197, %v954, 0
        %2891 = vmatprep.subr.bf16.mxu0 0
        %2892 = vmatpush1.bf16.msra.mxu0 %v2889
        %2893 = vmatprep.subr.bf16.mxu0 0
        %2894 = vmatpush1.bf16.msra.mxu0 0
        %2895 = vmatprep.subr.bf16.mxu0 0
        %2896 = vmatpush1.bf16.msra.mxu0 0
        %2897 = vmatprep.subr.bf16.mxu0 0
        %2898 = vmatpush1.bf16.msra.mxu0 0
        %2899 = vmatprep.subr.bf16.mxu0 0
        %2900 = vmatpush1.bf16.msra.mxu0 0
        %2901 = vmatprep.subr.bf16.mxu0 0
        %2902 = vmatpush1.bf16.msra.mxu0 0
        %2903 = vmatprep.subr.bf16.mxu0 0
        %2904 = vmatpush1.bf16.msra.mxu0 0
        %2905 = vmatprep.subr.bf16.mxu0 0
        %2906 = vmatpush1.bf16.msra.mxu0 0
        %2907 = vmatprep.subr.bf16.mxu0 0
        %2908 = vmatpush1.bf16.msra.mxu0 0
        %2909 = vmatprep.subr.bf16.mxu0 0
        %2910 = vmatpush1.bf16.msra.mxu0 0
        %2911 = vmatprep.subr.bf16.mxu0 0
        %2912 = vmatpush1.bf16.msra.mxu0 0
        %2913 = vmatprep.subr.bf16.mxu0 0
        %2914 = vmatpush1.bf16.msra.mxu0 0
        %2915 = vmatprep.subr.bf16.mxu0 0
        %2916 = vmatpush1.bf16.msra.mxu0 0
        %2917 = vmatprep.subr.bf16.mxu0 0
        %2918 = vmatpush1.bf16.msra.mxu0 0
        %2919 = vmatprep.subr.bf16.mxu0 0
        %2920 = vmatpush1.bf16.msra.mxu0 0
        %2921 = vmatprep.subr.bf16.mxu0 0
        %2922 = vmatpush1.bf16.msra.mxu0 0
        %2923 = vmatprep.mubr.bf16.mxu0 0
        %2924 = vmatmul.mubr.bf16.gmra.mrb[0].mxu0 %v1646
        %v2925 = vpop.f32.mrb[0].mxu0
        %v2926 = vadd.f32 0.0, %v2925
        %v2927 = vpop.f32.mrb[0].mxu0
        %v2928 = vpop.f32.mrb[0].mxu0
        %v2929 = vadd.f32 0.0, %v2928
        %v2930 = vpop.f32.mrb[0].mxu0
        %2931 = vmatprep.mubr.bf16.mxu0 0
        %2932 = vmatmul.mubr.bf16.gmra.mrb[0].mxu0 %v1649
        %v2933 = vpop.f32.mrb[0].mxu0
        %v2934 = vadd.f32 0.0, %v2933
        %v2935 = vpop.f32.mrb[0].mxu0
        %v2936 = vpop.f32.mrb[0].mxu0
        %v2937 = vadd.f32 0.0, %v2936
        %v2938 = vpop.f32.mrb[0].mxu0
        %2939 = vmatprep.mubr.bf16.mxu0 0
        %2940 = vmatmul.mubr.bf16.gmra.mrb[0].mxu0 %v1652
        %v2941 = vpop.f32.mrb[0].mxu0
        %v2942 = vadd.f32 0.0, %v2941
        %v2943 = vpop.f32.mrb[0].mxu0
        %v2944 = vpop.f32.mrb[0].mxu0
        %v2945 = vadd.f32 0.0, %v2944
        %v2946 = vpop.f32.mrb[0].mxu0
        %2947 = vmatprep.mubr.bf16.mxu0 0
        %2948 = vmatmul.mubr.bf16.gmra.mrb[0].mxu0 %v1655
        %v2949 = vpop.f32.mrb[0].mxu0
        %v2950 = vadd.f32 0.0, %v2949
        %v2951 = vpop.f32.mrb[0].mxu0
        %v2952 = vpop.f32.mrb[0].mxu0
        %v2953 = vadd.f32 0.0, %v2952
        %v2954 = vpop.f32.mrb[0].mxu0
        %2955 = vmatprep.mubr.bf16.mxu0 0
        %2956 = vmatmul.mubr.bf16.gmra.mrb[0].mxu0 %v1658
        %v2957 = vpop.f32.mrb[0].mxu0
        %v2958 = vadd.f32 0.0, %v2957
        %v2959 = vpop.f32.mrb[0].mxu0
        %v2960 = vpop.f32.mrb[0].mxu0
        %v2961 = vadd.f32 0.0, %v2960
        %v2962 = vpop.f32.mrb[0].mxu0
        %2963 = vmatprep.mubr.bf16.mxu0 0
        %2964 = vmatmul.mubr.bf16.gmra.mrb[0].mxu0 %v1661
        %v2965 = vpop.f32.mrb[0].mxu0
        %v2966 = vadd.f32 0.0, %v2965
        %v2967 = vpop.f32.mrb[0].mxu0
        %v2968 = vpop.f32.mrb[0].mxu0
        %v2969 = vadd.f32 0.0, %v2968
        %v2970 = vpop.f32.mrb[0].mxu0
        %2971 = vmatprep.mubr.bf16.mxu0 0
        %2972 = vmatmul.mubr.bf16.gmra.mrb[0].mxu0 %v1664
        %v2973 = vpop.f32.mrb[0].mxu0
        %v2974 = vadd.f32 0.0, %v2973
        %v2975 = vpop.f32.mrb[0].mxu0
        %v2976 = vpop.f32.mrb[0].mxu0
        %v2977 = vadd.f32 0.0, %v2976
        %v2978 = vpop.f32.mrb[0].mxu0
        %2979 = vmatprep.mubr.bf16.mxu0 0
        %2980 = vmatmul.mubr.bf16.gmra.mrb[0].mxu0 %v1667
        %v2981 = vpop.f32.mrb[0].mxu0
        %v2982 = vadd.f32 0.0, %v2981
        %v2983 = vpop.f32.mrb[0].mxu0
        %v2984 = vpop.f32.mrb[0].mxu0
        %v2985 = vadd.f32 0.0, %v2984
        %v2986 = vpop.f32.mrb[0].mxu0
        %2987 = vmatprep.mubr.bf16.mxu0 0
        %2988 = vmatmul.mubr.bf16.gmra.mrb[0].mxu0 %v1670
        %v2989 = vpop.f32.mrb[0].mxu0
        %v2990 = vadd.f32 0.0, %v2989
        %v2991 = vpop.f32.mrb[0].mxu0
        %v2992 = vpop.f32.mrb[0].mxu0
        %v2993 = vadd.f32 0.0, %v2992
        %v2994 = vpop.f32.mrb[0].mxu0
        %2995 = vmatprep.mubr.bf16.mxu0 0
        %2996 = vmatmul.mubr.bf16.gmra.mrb[0].mxu0 %v1673
        %v2997 = vpop.f32.mrb[0].mxu0
        %v2998 = vadd.f32 0.0, %v2997
        %v2999 = vpop.f32.mrb[0].mxu0
        %v3000 = vpop.f32.mrb[0].mxu0
        %v3001 = vadd.f32 0.0, %v3000
        %v3002 = vpop.f32.mrb[0].mxu0
        %3003 = vmatprep.mubr.bf16.mxu0 0
        %3004 = vmatmul.mubr.bf16.gmra.mrb[0].mxu0 %v1676
        %v3005 = vpop.f32.mrb[0].mxu0
        %v3006 = vadd.f32 0.0, %v3005
        %v3007 = vpop.f32.mrb[0].mxu0
        %v3008 = vpop.f32.mrb[0].mxu0
        %v3009 = vadd.f32 0.0, %v3008
        %v3010 = vpop.f32.mrb[0].mxu0
        %3011 = vmatprep.mubr.bf16.mxu0 0
        %3012 = vmatmul.mubr.bf16.gmra.mrb[0].mxu0 %v1679
        %v3013 = vpop.f32.mrb[0].mxu0
        %v3014 = vadd.f32 0.0, %v3013
        %v3015 = vpop.f32.mrb[0].mxu0
        %v3016 = vpop.f32.mrb[0].mxu0
        %v3017 = vadd.f32 0.0, %v3016
        %v3018 = vpop.f32.mrb[0].mxu0
        %3019 = vmatprep.mubr.bf16.mxu0 0
        %3020 = vmatmul.mubr.bf16.gmra.mrb[0].mxu0 %v1682
        %v3021 = vpop.f32.mrb[0].mxu0
        %v3022 = vadd.f32 0.0, %v3021
        %v3023 = vpop.f32.mrb[0].mxu0
        %v3024 = vpop.f32.mrb[0].mxu0
        %v3025 = vadd.f32 0.0, %v3024
        %v3026 = vpop.f32.mrb[0].mxu0
        %3027 = vmatprep.mubr.bf16.mxu0 0
        %3028 = vmatmul.mubr.bf16.gmra.mrb[0].mxu0 %v1685
        %v3029 = vpop.f32.mrb[0].mxu0
        %v3030 = vadd.f32 0.0, %v3029
        %v3031 = vpop.f32.mrb[0].mxu0
        %v3032 = vpop.f32.mrb[0].mxu0
        %v3033 = vadd.f32 0.0, %v3032
        %v3034 = vpop.f32.mrb[0].mxu0
        %3035 = vmatprep.mubr.bf16.mxu0 0
        %3036 = vmatmul.mubr.bf16.gmra.mrb[0].mxu0 %v2298
        %v3037 = vpop.f32.mrb[0].mxu0
        %v3038 = vadd.f32 0.0, %v3037
        %v3039 = vpop.f32.mrb[0].mxu0
        %v3040 = vpop.f32.mrb[0].mxu0
        %v3041 = vadd.f32 0.0, %v3040
        %v3042 = vpop.f32.mrb[0].mxu0
        %3043 = vmatprep.mubr.bf16.mxu0 0
        %3044 = vmatmul.mubr.bf16.gmra.mrb[0].mxu0 %v1640
        %v3045 = vpop.f32.mrb[0].mxu0
        %v3046 = vadd.f32 0.0, %v3045
        %v3047 = vpop.f32.mrb[0].mxu0
        %v3048 = vpop.f32.mrb[0].mxu0
        %v3049 = vadd.f32 0.0, %v3048
        %v3050 = vpop.f32.mrb[0].mxu0
        %3051 = vdwg.mxu0
        %v3052 = vadd.f32 %v2856, %v2926
        %v3053 = vadd.f32 %v2857, %v2929
        %v3054 = vadd.f32 %v2858, %v2934
        %v3055 = vadd.f32 %v2859, %v2937
        %v3056 = vadd.f32 %v2860, %v2942
        %v3057 = vadd.f32 %v2861, %v2945
        %v3058 = vadd.f32 %v2862, %v2950
        %v3059 = vadd.f32 %v2863, %v2953
        %v3060 = vadd.f32 %v2864, %v2958
        %v3061 = vadd.f32 %v2865, %v2961
        %v3062 = vadd.f32 %v2866, %v2966
        %v3063 = vadd.f32 %v2867, %v2969
        %v3064 = vadd.f32 %v2868, %v2974
        %v3065 = vadd.f32 %v2869, %v2977
        %v3066 = vadd.f32 %v2870, %v2982
        %v3067 = vadd.f32 %v2871, %v2985
        %v3068 = vadd.f32 %v2872, %v2990
        %v3069 = vadd.f32 %v2873, %v2993
        %v3070 = vadd.f32 %v2874, %v2998
        %v3071 = vadd.f32 %v2875, %v3001
        %v3072 = vadd.f32 %v2876, %v3006
        %v3073 = vadd.f32 %v2877, %v3009
        %v3074 = vadd.f32 %v2878, %v3014
        %v3075 = vadd.f32 %v2879, %v3017
        %v3076 = vadd.f32 %v2880, %v3022
        %v3077 = vadd.f32 %v2881, %v3025
        %v3078 = vadd.f32 %v2882, %v3030
        %v3079 = vadd.f32 %v2883, %v3033
        %v3080 = vadd.f32 %v2884, %v3038
        %v3081 = vadd.f32 %v2885, %v3041
        %v3082 = vadd.f32 %v2886, %v3046
        %v3083 = vadd.f32 %v2887, %v3049
        %v3084 = vld [vmem:[%s6] sm:$0x1]
        %v3086 = vlaneseq
        %v3087 = vshrl.u32 %v3086, 7
        %v3088 = vsub.s32 0, %v3087
        %v3089 = vrot.slane %v3084, %v3088
        %v3091 = vadd.f32 %v3052, %v3089
        %v3092 = vadd.f32 %v3053, %v3089
        %v3093 = vadd.f32 %v3054, %v3089
        %v3094 = vadd.f32 %v3055, %v3089
        %v3095 = vadd.f32 %v3056, %v3089
        %v3096 = vadd.f32 %v3057, %v3089
        %v3097 = vadd.f32 %v3058, %v3089
        %v3098 = vadd.f32 %v3059, %v3089
        %v3099 = vadd.f32 %v3060, %v3089
        %v3100 = vadd.f32 %v3061, %v3089
        %v3101 = vadd.f32 %v3062, %v3089
        %v3102 = vadd.f32 %v3063, %v3089
        %v3103 = vadd.f32 %v3064, %v3089
        %v3104 = vadd.f32 %v3065, %v3089
        %v3105 = vadd.f32 %v3066, %v3089
        %v3106 = vadd.f32 %v3067, %v3089
        %v3107 = vadd.f32 %v3068, %v3089
        %v3108 = vadd.f32 %v3069, %v3089
        %v3109 = vadd.f32 %v3070, %v3089
        %v3110 = vadd.f32 %v3071, %v3089
        %v3111 = vadd.f32 %v3072, %v3089
        %v3112 = vadd.f32 %v3073, %v3089
        %v3113 = vadd.f32 %v3074, %v3089
        %v3114 = vadd.f32 %v3075, %v3089
        %v3115 = vadd.f32 %v3076, %v3089
        %v3116 = vadd.f32 %v3077, %v3089
        %v3117 = vadd.f32 %v3078, %v3089
        %v3118 = vadd.f32 %v3079, %v3089
        %v3119 = vadd.f32 %v3080, %v3089
        %v3120 = vadd.f32 %v3081, %v3089
        %v3121 = vadd.f32 %v3082, %v3089
        %v3122 = vadd.f32 %v3083, %v3089
        %v3123 = vmax.f32 %v3091, 0.0
        %v3124 = vmax.f32 %v3092, 0.0
        %v3125 = vmax.f32 %v3093, 0.0
        %v3126 = vmax.f32 %v3094, 0.0
        %v3127 = vmax.f32 %v3095, 0.0
        %v3128 = vmax.f32 %v3096, 0.0
        %v3129 = vmax.f32 %v3097, 0.0
        %v3130 = vmax.f32 %v3098, 0.0
        %v3131 = vmax.f32 %v3099, 0.0
        %v3132 = vmax.f32 %v3100, 0.0
        %v3133 = vmax.f32 %v3101, 0.0
        %v3134 = vmax.f32 %v3102, 0.0
        %v3135 = vmax.f32 %v3103, 0.0
        %v3136 = vmax.f32 %v3104, 0.0
        %v3137 = vmax.f32 %v3105, 0.0
        %v3138 = vmax.f32 %v3106, 0.0
        %v3139 = vmax.f32 %v3107, 0.0
        %v3140 = vmax.f32 %v3108, 0.0
        %v3141 = vmax.f32 %v3109, 0.0
        %v3142 = vmax.f32 %v3110, 0.0
        %v3143 = vmax.f32 %v3111, 0.0
        %v3144 = vmax.f32 %v3112, 0.0
        %v3145 = vmax.f32 %v3113, 0.0
        %v3146 = vmax.f32 %v3114, 0.0
        %v3147 = vmax.f32 %v3115, 0.0
        %v3148 = vmax.f32 %v3116, 0.0
        %v3149 = vmax.f32 %v3117, 0.0
        %v3150 = vmax.f32 %v3118, 0.0
        %v3151 = vmax.f32 %v3119, 0.0
        %v3152 = vmax.f32 %v3120, 0.0
        %v3153 = vmax.f32 %v3121, 0.0
        %v3154 = vmax.f32 %v3122, 0.0
        %v3155 = vpack.c.bf16 %v3124, %v3123
        %v3156 = vpack.c.bf16 %v3126, %v3125
        %v3157 = vpack.c.bf16 %v3128, %v3127
        %v3158 = vpack.c.bf16 %v3130, %v3129
        %v3159 = vpack.c.bf16 %v3132, %v3131
        %v3160 = vpack.c.bf16 %v3134, %v3133
        %v3161 = vpack.c.bf16 %v3136, %v3135
        %v3162 = vpack.c.bf16 %v3138, %v3137
        %v3163 = vpack.c.bf16 %v3140, %v3139
        %v3164 = vpack.c.bf16 %v3142, %v3141
        %v3165 = vpack.c.bf16 %v3144, %v3143
        %v3166 = vpack.c.bf16 %v3146, %v3145
        %v3167 = vpack.c.bf16 %v3148, %v3147
        %v3168 = vpack.c.bf16 %v3150, %v3149
        %v3169 = vpack.c.bf16 %v3152, %v3151
        %v3170 = vpack.c.bf16 %v3154, %v3153
        %v3171 = vld [vmem:[%s7] sm:$0x3]
        %v3172 = vld [vmem:[%s8] sm:$0xf]
        %v3174 = vsel %vm547, %v3172, 0
        %3176 = vmatprep.subr.bf16.mxu0 0
        %3177 = vmatpush1.bf16.msra.mxu0 %v3174
        %3178 = vmatprep.subr.bf16.mxu0 0
        %3179 = vmatpush1.bf16.msra.mxu0 0
        %3180 = vmatprep.subr.bf16.mxu0 0
        %3181 = vmatpush1.bf16.msra.mxu0 0
        %3182 = vmatprep.subr.bf16.mxu0 0
        %3183 = vmatpush1.bf16.msra.mxu0 0
        %3184 = vmatprep.subr.bf16.mxu0 0
        %3185 = vmatpush1.bf16.msra.mxu0 0
        %3186 = vmatprep.subr.bf16.mxu0 0
        %3187 = vmatpush1.bf16.msra.mxu0 0
        %3188 = vmatprep.subr.bf16.mxu0 0
        %3189 = vmatpush1.bf16.msra.mxu0 0
        %3190 = vmatprep.subr.bf16.mxu0 0
        %3191 = vmatpush1.bf16.msra.mxu0 0
        %3192 = vmatprep.subr.bf16.mxu0 0
        %3193 = vmatpush1.bf16.msra.mxu0 0
        %3194 = vmatprep.subr.bf16.mxu0 0
        %3195 = vmatpush1.bf16.msra.mxu0 0
        %3196 = vmatprep.subr.bf16.mxu0 0
        %3197 = vmatpush1.bf16.msra.mxu0 0
        %3198 = vmatprep.subr.bf16.mxu0 0
        %3199 = vmatpush1.bf16.msra.mxu0 0
        %3200 = vmatprep.subr.bf16.mxu0 0
        %3201 = vmatpush1.bf16.msra.mxu0 0
        %3202 = vmatprep.subr.bf16.mxu0 0
        %3203 = vmatpush1.bf16.msra.mxu0 0
        %3204 = vmatprep.subr.bf16.mxu0 0
        %3205 = vmatpush1.bf16.msra.mxu0 0
        %3206 = vmatprep.subr.bf16.mxu0 0
        %3207 = vmatpush1.bf16.msra.mxu0 0
        %3208 = vmatprep.mubr.bf16.mxu0 0
        %3209 = vmatmul.mubr.bf16.gmra.mrb[0].mxu0 %v500
        %v3210 = vpop.f32.mrb[0].mxu0
        %v3211 = vadd.f32 0.0, %v3210
        %v3212 = vpop.f32.mrb[0].mxu0
        %v3213 = vpop.f32.mrb[0].mxu0
        %v3214 = vadd.f32 0.0, %v3213
        %v3215 = vpop.f32.mrb[0].mxu0
        %3216 = vmatprep.mubr.bf16.mxu0 0
        %3217 = vmatmul.mubr.bf16.gmra.mrb[0].mxu0 %v503
        %v3218 = vpop.f32.mrb[0].mxu0
        %v3219 = vadd.f32 0.0, %v3218
        %v3220 = vpop.f32.mrb[0].mxu0
        %v3221 = vpop.f32.mrb[0].mxu0
        %v3222 = vadd.f32 0.0, %v3221
        %v3223 = vpop.f32.mrb[0].mxu0
        %3224 = vmatprep.mubr.bf16.mxu0 0
        %3225 = vmatmul.mubr.bf16.gmra.mrb[0].mxu0 %v506
        %v3226 = vpop.f32.mrb[0].mxu0
        %v3227 = vadd.f32 0.0, %v3226
        %v3228 = vpop.f32.mrb[0].mxu0
        %v3229 = vpop.f32.mrb[0].mxu0
        %v3230 = vadd.f32 0.0, %v3229
        %v3231 = vpop.f32.mrb[0].mxu0
        %3232 = vmatprep.mubr.bf16.mxu0 0
        %3233 = vmatmul.mubr.bf16.gmra.mrb[0].mxu0 %v509
        %v3234 = vpop.f32.mrb[0].mxu0
        %v3235 = vadd.f32 0.0, %v3234
        %v3236 = vpop.f32.mrb[0].mxu0
        %v3237 = vpop.f32.mrb[0].mxu0
        %v3238 = vadd.f32 0.0, %v3237
        %v3239 = vpop.f32.mrb[0].mxu0
        %3240 = vmatprep.mubr.bf16.mxu0 0
        %3241 = vmatmul.mubr.bf16.gmra.mrb[0].mxu0 %v512
        %v3242 = vpop.f32.mrb[0].mxu0
        %v3243 = vadd.f32 0.0, %v3242
        %v3244 = vpop.f32.mrb[0].mxu0
        %v3245 = vpop.f32.mrb[0].mxu0
        %v3246 = vadd.f32 0.0, %v3245
        %v3247 = vpop.f32.mrb[0].mxu0
        %3248 = vmatprep.mubr.bf16.mxu0 0
        %3249 = vmatmul.mubr.bf16.gmra.mrb[0].mxu0 %v515
        %v3250 = vpop.f32.mrb[0].mxu0
        %v3251 = vadd.f32 0.0, %v3250
        %v3252 = vpop.f32.mrb[0].mxu0
        %v3253 = vpop.f32.mrb[0].mxu0
        %v3254 = vadd.f32 0.0, %v3253
        %v3255 = vpop.f32.mrb[0].mxu0
        %3256 = vmatprep.mubr.bf16.mxu0 0
        %3257 = vmatmul.mubr.bf16.gmra.mrb[0].mxu0 %v518
        %v3258 = vpop.f32.mrb[0].mxu0
        %v3259 = vadd.f32 0.0, %v3258
        %v3260 = vpop.f32.mrb[0].mxu0
        %v3261 = vpop.f32.mrb[0].mxu0
        %v3262 = vadd.f32 0.0, %v3261
        %v3263 = vpop.f32.mrb[0].mxu0
        %3264 = vmatprep.mubr.bf16.mxu0 0
        %3265 = vmatmul.mubr.bf16.gmra.mrb[0].mxu0 %v521
        %v3266 = vpop.f32.mrb[0].mxu0
        %v3267 = vadd.f32 0.0, %v3266
        %v3268 = vpop.f32.mrb[0].mxu0
        %v3269 = vpop.f32.mrb[0].mxu0
        %v3270 = vadd.f32 0.0, %v3269
        %v3271 = vpop.f32.mrb[0].mxu0
        %3272 = vmatprep.mubr.bf16.mxu0 0
        %3273 = vmatmul.mubr.bf16.gmra.mrb[0].mxu0 %v524
        %v3274 = vpop.f32.mrb[0].mxu0
        %v3275 = vadd.f32 0.0, %v3274
        %v3276 = vpop.f32.mrb[0].mxu0
        %v3277 = vpop.f32.mrb[0].mxu0
        %v3278 = vadd.f32 0.0, %v3277
        %v3279 = vpop.f32.mrb[0].mxu0
        %3280 = vmatprep.mubr.bf16.mxu0 0
        %3281 = vmatmul.mubr.bf16.gmra.mrb[0].mxu0 %v527
        %v3282 = vpop.f32.mrb[0].mxu0
        %v3283 = vadd.f32 0.0, %v3282
        %v3284 = vpop.f32.mrb[0].mxu0
        %v3285 = vpop.f32.mrb[0].mxu0
        %v3286 = vadd.f32 0.0, %v3285
        %v3287 = vpop.f32.mrb[0].mxu0
        %3288 = vmatprep.mubr.bf16.mxu0 0
        %3289 = vmatmul.mubr.bf16.gmra.mrb[0].mxu0 %v530
        %v3290 = vpop.f32.mrb[0].mxu0
        %v3291 = vadd.f32 0.0, %v3290
        %v3292 = vpop.f32.mrb[0].mxu0
        %v3293 = vpop.f32.mrb[0].mxu0
        %v3294 = vadd.f32 0.0, %v3293
        %v3295 = vpop.f32.mrb[0].mxu0
        %3296 = vmatprep.mubr.bf16.mxu0 0
        %3297 = vmatmul.mubr.bf16.gmra.mrb[0].mxu0 %v533
        %v3298 = vpop.f32.mrb[0].mxu0
        %v3299 = vadd.f32 0.0, %v3298
        %v3300 = vpop.f32.mrb[0].mxu0
        %v3301 = vpop.f32.mrb[0].mxu0
        %v3302 = vadd.f32 0.0, %v3301
        %v3303 = vpop.f32.mrb[0].mxu0
        %3304 = vmatprep.mubr.bf16.mxu0 0
        %3305 = vmatmul.mubr.bf16.gmra.mrb[0].mxu0 %v536
        %v3306 = vpop.f32.mrb[0].mxu0
        %v3307 = vadd.f32 0.0, %v3306
        %v3308 = vpop.f32.mrb[0].mxu0
        %v3309 = vpop.f32.mrb[0].mxu0
        %v3310 = vadd.f32 0.0, %v3309
        %v3311 = vpop.f32.mrb[0].mxu0
        %3312 = vmatprep.mubr.bf16.mxu0 0
        %3313 = vmatmul.mubr.bf16.gmra.mrb[0].mxu0 %v539
        %v3314 = vpop.f32.mrb[0].mxu0
        %v3315 = vadd.f32 0.0, %v3314
        %v3316 = vpop.f32.mrb[0].mxu0
        %v3317 = vpop.f32.mrb[0].mxu0
        %v3318 = vadd.f32 0.0, %v3317
        %v3319 = vpop.f32.mrb[0].mxu0
        %3320 = vmatprep.mubr.bf16.mxu0 0
        %3321 = vmatmul.mubr.bf16.gmra.mrb[0].mxu0 %v542
        %v3322 = vpop.f32.mrb[0].mxu0
        %v3323 = vadd.f32 0.0, %v3322
        %v3324 = vpop.f32.mrb[0].mxu0
        %v3325 = vpop.f32.mrb[0].mxu0
        %v3326 = vadd.f32 0.0, %v3325
        %v3327 = vpop.f32.mrb[0].mxu0
        %3328 = vmatprep.mubr.bf16.mxu0 0
        %3329 = vmatmul.mubr.bf16.gmra.mrb[0].mxu0 %v545
        %v3330 = vpop.f32.mrb[0].mxu0
        %v3331 = vadd.f32 0.0, %v3330
        %v3332 = vpop.f32.mrb[0].mxu0
        %v3333 = vpop.f32.mrb[0].mxu0
        %v3334 = vadd.f32 0.0, %v3333
        %v3335 = vpop.f32.mrb[0].mxu0
        %3336 = vdwg.mxu0
        %v3338 = vsel %vm1148, %v3155, 0
        %v3341 = vsel %vm1148, %v3156, 0
        %v3344 = vsel %vm1148, %v3157, 0
        %v3347 = vsel %vm1148, %v3158, 0
        %v3350 = vsel %vm1148, %v3159, 0
        %v3353 = vsel %vm1148, %v3160, 0
        %v3356 = vsel %vm1148, %v3161, 0
        %v3359 = vsel %vm1148, %v3162, 0
        %v3362 = vsel %vm1148, %v3163, 0
        %v3365 = vsel %vm1148, %v3164, 0
        %v3368 = vsel %vm1148, %v3165, 0
        %v3371 = vsel %vm1148, %v3166, 0
        %v3374 = vsel %vm1148, %v3167, 0
        %v3377 = vsel %vm1148, %v3168, 0
        %v3380 = vsel %vm1148, %v3169, 0
        %v3383 = vsel %vm1148, %v3170, 0
        %v3386 = vsel %vm1197, %v3171, 0
        %3388 = vmatprep.subr.bf16.mxu0 0
        %3389 = vmatpush1.bf16.msra.mxu0 %v3386
        %3390 = vmatprep.subr.bf16.mxu0 0
        %3391 = vmatpush1.bf16.msra.mxu0 0
        %3392 = vmatprep.subr.bf16.mxu0 0
        %3393 = vmatpush1.bf16.msra.mxu0 0
        %3394 = vmatprep.subr.bf16.mxu0 0
        %3395 = vmatpush1.bf16.msra.mxu0 0
        %3396 = vmatprep.subr.bf16.mxu0 0
        %3397 = vmatpush1.bf16.msra.mxu0 0
        %3398 = vmatprep.subr.bf16.mxu0 0
        %3399 = vmatpush1.bf16.msra.mxu0 0
        %3400 = vmatprep.subr.bf16.mxu0 0
        %3401 = vmatpush1.bf16.msra.mxu0 0
        %3402 = vmatprep.subr.bf16.mxu0 0
        %3403 = vmatpush1.bf16.msra.mxu0 0
        %3404 = vmatprep.subr.bf16.mxu0 0
        %3405 = vmatpush1.bf16.msra.mxu0 0
        %3406 = vmatprep.subr.bf16.mxu0 0
        %3407 = vmatpush1.bf16.msra.mxu0 0
        %3408 = vmatprep.subr.bf16.mxu0 0
        %3409 = vmatpush1.bf16.msra.mxu0 0
        %3410 = vmatprep.subr.bf16.mxu0 0
        %3411 = vmatpush1.bf16.msra.mxu0 0
        %3412 = vmatprep.subr.bf16.mxu0 0
        %3413 = vmatpush1.bf16.msra.mxu0 0
        %3414 = vmatprep.subr.bf16.mxu0 0
        %3415 = vmatpush1.bf16.msra.mxu0 0
        %3416 = vmatprep.subr.bf16.mxu0 0
        %3417 = vmatpush1.bf16.msra.mxu0 0
        %3418 = vmatprep.subr.bf16.mxu0 0
        %3419 = vmatpush1.bf16.msra.mxu0 0
        %3420 = vmatprep.mubr.bf16.mxu0 0
        %3421 = vmatmul.mubr.bf16.gmra.mrb[0].mxu0 %v3338
        %v3422 = vpop.f32.mrb[0].mxu0
        %v3423 = vadd.f32 %v3211, %v3422
        %v3424 = vpop.f32.mrb[0].mxu0
        %v3425 = vpop.f32.mrb[0].mxu0
        %v3426 = vadd.f32 %v3214, %v3425
        %v3427 = vpop.f32.mrb[0].mxu0
        %3428 = vmatprep.mubr.bf16.mxu0 0
        %3429 = vmatmul.mubr.bf16.gmra.mrb[0].mxu0 %v3341
        %v3430 = vpop.f32.mrb[0].mxu0
        %v3431 = vadd.f32 %v3219, %v3430
        %v3432 = vpop.f32.mrb[0].mxu0
        %v3433 = vpop.f32.mrb[0].mxu0
        %v3434 = vadd.f32 %v3222, %v3433
        %v3435 = vpop.f32.mrb[0].mxu0
        %3436 = vmatprep.mubr.bf16.mxu0 0
        %3437 = vmatmul.mubr.bf16.gmra.mrb[0].mxu0 %v3344
        %v3438 = vpop.f32.mrb[0].mxu0
        %v3439 = vadd.f32 %v3227, %v3438
        %v3440 = vpop.f32.mrb[0].mxu0
        %v3441 = vpop.f32.mrb[0].mxu0
        %v3442 = vadd.f32 %v3230, %v3441
        %v3443 = vpop.f32.mrb[0].mxu0
        %3444 = vmatprep.mubr.bf16.mxu0 0
        %3445 = vmatmul.mubr.bf16.gmra.mrb[0].mxu0 %v3347
        %v3446 = vpop.f32.mrb[0].mxu0
        %v3447 = vadd.f32 %v3235, %v3446
        %v3448 = vpop.f32.mrb[0].mxu0
        %v3449 = vpop.f32.mrb[0].mxu0
        %v3450 = vadd.f32 %v3238, %v3449
        %v3451 = vpop.f32.mrb[0].mxu0
        %3452 = vmatprep.mubr.bf16.mxu0 0
        %3453 = vmatmul.mubr.bf16.gmra.mrb[0].mxu0 %v3350
        %v3454 = vpop.f32.mrb[0].mxu0
        %v3455 = vadd.f32 %v3243, %v3454
        %v3456 = vpop.f32.mrb[0].mxu0
        %v3457 = vpop.f32.mrb[0].mxu0
        %v3458 = vadd.f32 %v3246, %v3457
        %v3459 = vpop.f32.mrb[0].mxu0
        %3460 = vmatprep.mubr.bf16.mxu0 0
        %3461 = vmatmul.mubr.bf16.gmra.mrb[0].mxu0 %v3353
        %v3462 = vpop.f32.mrb[0].mxu0
        %v3463 = vadd.f32 %v3251, %v3462
        %v3464 = vpop.f32.mrb[0].mxu0
        %v3465 = vpop.f32.mrb[0].mxu0
        %v3466 = vadd.f32 %v3254, %v3465
        %v3467 = vpop.f32.mrb[0].mxu0
        %3468 = vmatprep.mubr.bf16.mxu0 0
        %3469 = vmatmul.mubr.bf16.gmra.mrb[0].mxu0 %v3356
        %v3470 = vpop.f32.mrb[0].mxu0
        %v3471 = vadd.f32 %v3259, %v3470
        %v3472 = vpop.f32.mrb[0].mxu0
        %v3473 = vpop.f32.mrb[0].mxu0
        %v3474 = vadd.f32 %v3262, %v3473
        %v3475 = vpop.f32.mrb[0].mxu0
        %3476 = vmatprep.mubr.bf16.mxu0 0
        %3477 = vmatmul.mubr.bf16.gmra.mrb[0].mxu0 %v3359
        %v3478 = vpop.f32.mrb[0].mxu0
        %v3479 = vadd.f32 %v3267, %v3478
        %v3480 = vpop.f32.mrb[0].mxu0
        %v3481 = vpop.f32.mrb[0].mxu0
        %v3482 = vadd.f32 %v3270, %v3481
        %v3483 = vpop.f32.mrb[0].mxu0
        %3484 = vmatprep.mubr.bf16.mxu0 0
        %3485 = vmatmul.mubr.bf16.gmra.mrb[0].mxu0 %v3362
        %v3486 = vpop.f32.mrb[0].mxu0
        %v3487 = vadd.f32 %v3275, %v3486
        %v3488 = vpop.f32.mrb[0].mxu0
        %v3489 = vpop.f32.mrb[0].mxu0
        %v3490 = vadd.f32 %v3278, %v3489
        %v3491 = vpop.f32.mrb[0].mxu0
        %3492 = vmatprep.mubr.bf16.mxu0 0
        %3493 = vmatmul.mubr.bf16.gmra.mrb[0].mxu0 %v3365
        %v3494 = vpop.f32.mrb[0].mxu0
        %v3495 = vadd.f32 %v3283, %v3494
        %v3496 = vpop.f32.mrb[0].mxu0
        %v3497 = vpop.f32.mrb[0].mxu0
        %v3498 = vadd.f32 %v3286, %v3497
        %v3499 = vpop.f32.mrb[0].mxu0
        %3500 = vmatprep.mubr.bf16.mxu0 0
        %3501 = vmatmul.mubr.bf16.gmra.mrb[0].mxu0 %v3368
        %v3502 = vpop.f32.mrb[0].mxu0
        %v3503 = vadd.f32 %v3291, %v3502
        %v3504 = vpop.f32.mrb[0].mxu0
        %v3505 = vpop.f32.mrb[0].mxu0
        %v3506 = vadd.f32 %v3294, %v3505
        %v3507 = vpop.f32.mrb[0].mxu0
        %3508 = vmatprep.mubr.bf16.mxu0 0
        %3509 = vmatmul.mubr.bf16.gmra.mrb[0].mxu0 %v3371
        %v3510 = vpop.f32.mrb[0].mxu0
        %v3511 = vadd.f32 %v3299, %v3510
        %v3512 = vpop.f32.mrb[0].mxu0
        %v3513 = vpop.f32.mrb[0].mxu0
        %v3514 = vadd.f32 %v3302, %v3513
        %v3515 = vpop.f32.mrb[0].mxu0
        %3516 = vmatprep.mubr.bf16.mxu0 0
        %3517 = vmatmul.mubr.bf16.gmra.mrb[0].mxu0 %v3374
        %v3518 = vpop.f32.mrb[0].mxu0
        %v3519 = vadd.f32 %v3307, %v3518
        %v3520 = vpop.f32.mrb[0].mxu0
        %v3521 = vpop.f32.mrb[0].mxu0
        %v3522 = vadd.f32 %v3310, %v3521
        %v3523 = vpop.f32.mrb[0].mxu0
        %3524 = vmatprep.mubr.bf16.mxu0 0
        %3525 = vmatmul.mubr.bf16.gmra.mrb[0].mxu0 %v3377
        %v3526 = vpop.f32.mrb[0].mxu0
        %v3527 = vadd.f32 %v3315, %v3526
        %v3528 = vpop.f32.mrb[0].mxu0
        %v3529 = vpop.f32.mrb[0].mxu0
        %v3530 = vadd.f32 %v3318, %v3529
        %v3531 = vpop.f32.mrb[0].mxu0
        %3532 = vmatprep.mubr.bf16.mxu0 0
        %3533 = vmatmul.mubr.bf16.gmra.mrb[0].mxu0 %v3380
        %v3534 = vpop.f32.mrb[0].mxu0
        %v3535 = vadd.f32 %v3323, %v3534
        %v3536 = vpop.f32.mrb[0].mxu0
        %v3537 = vpop.f32.mrb[0].mxu0
        %v3538 = vadd.f32 %v3326, %v3537
        %v3539 = vpop.f32.mrb[0].mxu0
        %3540 = vmatprep.mubr.bf16.mxu0 0
        %3541 = vmatmul.mubr.bf16.gmra.mrb[0].mxu0 %v3383
        %v3542 = vpop.f32.mrb[0].mxu0
        %v3543 = vadd.f32 %v3331, %v3542
        %v3544 = vpop.f32.mrb[0].mxu0
        %v3545 = vpop.f32.mrb[0].mxu0
        %v3546 = vadd.f32 %v3334, %v3545
        %v3547 = vpop.f32.mrb[0].mxu0
        %3548 = vdwg.mxu0
        %vm3549 = vcmask 130048
        %3550 = vst.msk [vmem:[%s325] sm:$0xff] %vm3549, %v3423
        %3551 = vst.msk [vmem:[%s325 + $0x8] sm:$0xff] %vm3549, %v3426
        %3552 = vst.msk [vmem:[%s325 + $0x10] sm:$0xff] %vm3549, %v3431
        %3553 = vst.msk [vmem:[%s325 + $0x18] sm:$0xff] %vm3549, %v3434
        %3554 = vst.msk [vmem:[%s325 + $0x20] sm:$0xff] %vm3549, %v3439
        %3555 = vst.msk [vmem:[%s325 + $0x28] sm:$0xff] %vm3549, %v3442
        %3556 = vst.msk [vmem:[%s325 + $0x30] sm:$0xff] %vm3549, %v3447
        %3557 = vst.msk [vmem:[%s325 + $0x38] sm:$0xff] %vm3549, %v3450
        %3558 = vst.msk [vmem:[%s325 + $0x40] sm:$0xff] %vm3549, %v3455
        %3559 = vst.msk [vmem:[%s325 + $0x48] sm:$0xff] %vm3549, %v3458
        %3560 = vst.msk [vmem:[%s325 + $0x50] sm:$0xff] %vm3549, %v3463
        %3561 = vst.msk [vmem:[%s325 + $0x58] sm:$0xff] %vm3549, %v3466
        %3562 = vst.msk [vmem:[%s325 + $0x60] sm:$0xff] %vm3549, %v3471
        %3563 = vst.msk [vmem:[%s325 + $0x68] sm:$0xff] %vm3549, %v3474
        %3564 = vst.msk [vmem:[%s325 + $0x70] sm:$0xff] %vm3549, %v3479
        %3565 = vst.msk [vmem:[%s325 + $0x78] sm:$0xff] %vm3549, %v3482
        %3566 = vst.msk [vmem:[%s325 + $0x80] sm:$0xff] %vm3549, %v3487
        %3567 = vst.msk [vmem:[%s325 + $0x88] sm:$0xff] %vm3549, %v3490
        %3568 = vst.msk [vmem:[%s325 + $0x90] sm:$0xff] %vm3549, %v3495
        %3569 = vst.msk [vmem:[%s325 + $0x98] sm:$0xff] %vm3549, %v3498
        %3570 = vst.msk [vmem:[%s325 + $0xa0] sm:$0xff] %vm3549, %v3503
        %3571 = vst.msk [vmem:[%s325 + $0xa8] sm:$0xff] %vm3549, %v3506
        %3572 = vst.msk [vmem:[%s325 + $0xb0] sm:$0xff] %vm3549, %v3511
        %3573 = vst.msk [vmem:[%s325 + $0xb8] sm:$0xff] %vm3549, %v3514
        %3574 = vst.msk [vmem:[%s325 + $0xc0] sm:$0xff] %vm3549, %v3519
        %3575 = vst.msk [vmem:[%s325 + $0xc8] sm:$0xff] %vm3549, %v3522
        %3576 = vst.msk [vmem:[%s325 + $0xd0] sm:$0xff] %vm3549, %v3527
        %3577 = vst.msk [vmem:[%s325 + $0xd8] sm:$0xff] %vm3549, %v3530
        %3578 = vst.msk [vmem:[%s325 + $0xe0] sm:$0xff] %vm3549, %v3535
        %3579 = vst.msk [vmem:[%s325 + $0xe8] sm:$0xff] %vm3549, %v3538
        %3580 = vst.msk [vmem:[%s325 + $0xf0] sm:$0xff] %vm3549, %v3543
        %3581 = vst.msk [vmem:[%s325 + $0xf8] sm:$0xff] %vm3549, %v3546
        %s3582 = sand.u32 %s225, 1
        %s3583 = scalar_lea.sflag [#allocation3], %s3582
        %s3584 = sand.u32 %s225, 1
        %s3585 = smul.addr %s3584, 256
        %s3586 = scalar_lea.vmem [#allocation2], %s3585
        // Predicated region
        $region57: #{tpu_custom_call.1} parent=55 // pred_check
          %p3587 = pneg %p235
        $region58: #{tpu_custom_call.1} parent=55 // pred_check_branch
          %3589 = sbr.rel (%p3587) target = $region60
        $region59: #{tpu_custom_call.1} parent=55 // pred_region
          %s3591 = ssub.s32 4096, 4096
          %3592 = vsyncadd %s3583, %s3591
          %s3593 = smul.addr %s23, 32
          %s3594 = smul.addr %s3593, 128
          %s3595 = scalar_lea.hbm %s9, %s3594
          %s3596 = sshll.u32 %s3586, 4
          %s3597 = int_to_ptr.vmem [resolvable:$true] %s3596
          %3602 = dma.vmem_to_hbm [thread:$0]  %s3597, 4096, %s3595, %s3583, 128, 128, 8
        $region60: #{tpu_custom_call.1} parent=55 // pred_fallthru
          _
      $region56: #{tpu_custom_call.1} parent=5 // pred_fallthru
        _
      %p3603 = scmp.le.s32.totalorder 2, %s18
      // Predicated region
      $region61: #{tpu_custom_call.1} parent=5 // pred_check
        %p3604 = pneg %p3603
      $region62: #{tpu_custom_call.1} parent=5 // pred_check_branch
        %3606 = sbr.rel (%p3604) target = $region64
      $region63: #{tpu_custom_call.1} parent=5 // pred_region
        %s3607 = ssub.s32 %s18, 2
        // Predicated region
        $region65: #{tpu_custom_call.1} parent=63 // pred_check
          %p3608 = pneg %p241
        $region66: #{tpu_custom_call.1} parent=63 // pred_check_branch
          %3610 = sbr.rel (%p3608) target = $region68
        $region67: #{tpu_custom_call.1} parent=63 // pred_region
          %s3611 = sand.u32 %s226, 1
          %s3612 = scalar_lea.sflag [#allocation3], %s3611
          %s3613 = sand.u32 %s226, 1
          %s3614 = smul.addr %s3613, 256
          %s3615 = scalar_lea.vmem [#allocation2], %s3614
          %3616 = dma.done %s3612, 4096
        $region68: #{tpu_custom_call.1} parent=63 // pred_fallthru
          _
      $region64: #{tpu_custom_call.1} parent=5 // pred_fallthru
        _
    $region6: #{tpu_custom_call.1} parent=1 // loop_footer
      %s22 = sadd.s32 1, %s18
    $region7: #{tpu_custom_call.1} parent=1 // loop_footer_branch
      %17 = sbr.rel target = $region3
    $region8: #{tpu_custom_call.1} parent=1 // loop_exit
      _
    %3617 = vsyncpa [#allocation3], 1
    %s3618 = scalar_lea.sflag [#allocation3], 1
    %3619 = vsyncpa %s3618, 1

</llo_original>
